<compile_context>
chip_gen: v5e
topology: v5e:2x2
jax: 0.10.0
libtpu: 0.0.40
codegen_flags: <defaults>
</compile_context>

<pallas_src>
import jax
import jax.numpy as jnp
from jax.experimental import pallas as pl
from jax.experimental.pallas import tpu as pltpu


# ------------------------------ small helpers --------------------------------

def _round_up(x, m):
    return ((x + m - 1) // m) * m


def _pick_time_tile(T, max_tt=32):
    tt = min(T, max_tt)
    while T % tt:
        tt -= 1
    return tt


def _pad_gate_cols(w, H, Hp):
    """Pad the trailing 4H gate axis so each of the 4 gate chunks becomes Hp."""
    if Hp == H:
        return w
    chunks = jnp.split(w, 4, axis=-1)
    pad = [(0, 0)] * (w.ndim - 1) + [(0, Hp - H)]
    return jnp.concatenate([jnp.pad(c, pad) for c in chunks], axis=-1)


def _pad_dim(x, axis, new_size):
    if x.shape[axis] == new_size:
        return x
    pad = [(0, 0)] * x.ndim
    pad[axis] = (0, new_size - x.shape[axis])
    return jnp.pad(x, pad)


# ----------------------- fused 2-layer LSTM recurrence ------------------------

def _fused_lstm2_kernel(x_ref, wih1_ref, whh1_ref, b1_ref,
                        wih2_ref, whh2_ref, b2_ref,
                        h10_ref, c10_ref, h20_ref, c20_ref,
                        h1_ref, c1_ref, h2_ref, c2_ref,
                        gx_scr):
    g = pl.program_id(0)

    @pl.when(g == 0)
    def _():
        h1_ref[...] = h10_ref[...]
        c1_ref[...] = c10_ref[...]
        h2_ref[...] = h20_ref[...]
        c2_ref[...] = c20_ref[...]

    tt, bp, ip = x_ref.shape
    h1p = whh1_ref.shape[0]
    h2p = whh2_ref.shape[0]

    # Hoisted layer-1 input projection for the whole time tile:
    # one MXU matmul with M = Tt*B instead of Tt serial M = B matmuls.
    # Bias b1 is folded here so it never appears on the serial path.
    x2d = x_ref[...].reshape(tt * bp, ip)
    gx = (jnp.dot(x2d, wih1_ref[...], preferred_element_type=jnp.float32)
          + b1_ref[...])
    gx_scr[...] = gx.reshape(tt, bp, 4 * h1p)

    # Hoist the layer-2 bias broadcast out of the per-step loop.
    b2b = jnp.broadcast_to(b2_ref[...], (bp, 4 * h2p))

    def step(t, carry):
        h1, c1, h2, c2 = carry

        # ---- layer 1: only the recurrent matmul is on the serial path ----
        g1 = gx_scr[t] + jnp.dot(h1, whh1_ref[...],
                                 preferred_element_type=jnp.float32)
        i1 = jax.nn.sigmoid(g1[:, 0 * h1p:1 * h1p])
        f1 = jax.nn.sigmoid(g1[:, 1 * h1p:2 * h1p])
        n1 = jnp.tanh(g1[:, 2 * h1p:3 * h1p])
        o1 = jax.nn.sigmoid(g1[:, 3 * h1p:4 * h1p])
        c1n = f1 * c1 + i1 * n1
        h1n = o1 * jnp.tanh(c1n)

        # ---- layer 2, same timestep (fused: no HBM roundtrip for out1) ----
        g2 = (jnp.dot(h1n, wih2_ref[...], preferred_element_type=jnp.float32)
              + jnp.dot(h2, whh2_ref[...], preferred_element_type=jnp.float32)
              + b2b)
        i2 = jax.nn.sigmoid(g2[:, 0 * h2p:1 * h2p])
        f2 = jax.nn.sigmoid(g2[:, 1 * h2p:2 * h2p])
        n2 = jnp.tanh(g2[:, 2 * h2p:3 * h2p])
        o2 = jax.nn.sigmoid(g2[:, 3 * h2p:4 * h2p])
        c2n = f2 * c2 + i2 * n2
        h2n = o2 * jnp.tanh(c2n)
        return h1n, c1n, h2n, c2n

    carry0 = (h1_ref[...], c1_ref[...], h2_ref[...], c2_ref[...])
    h1n, c1n, h2n, c2n = jax.lax.fori_loop(0, tt, step, carry0, unroll=True)

    # Single slab write per grid step; resident output blocks carry the state.
    h1_ref[...] = h1n
    c1_ref[...] = c1n
    h2_ref[...] = h2n
    c2_ref[...] = c2n


def fused_lstm2(emb_p, wih1, whh1, b1, wih2, whh2, b2,
                h10, c10, h20, c20, *, time_tile):
    """Fused 2-layer LSTM over a time-major, padded sequence.

    emb_p: (T, Bp, Ip) f32    wih1: (Ip, 4H1p)  whh1: (H1p, 4H1p)  b1: (1, 4H1p)
    wih2:  (H1p, 4H2p)        whh2: (H2p, 4H2p) b2: (1, 4H2p)
    h10,c10: (Bp, H1p)        h20,c20: (Bp, H2p)
    Returns final (h1T, c1T, h2T, c2T).  (h2T == layer-2 output at t = T-1.)
    """
    T, Bp, Ip = emb_p.shape
    H1p = whh1.shape[0]
    H2p = whh2.shape[0]
    Tt = time_tile
    const = lambda g: (0, 0)

    out_shapes = (jax.ShapeDtypeStruct((Bp, H1p), jnp.float32),
                  jax.ShapeDtypeStruct((Bp, H1p), jnp.float32),
                  jax.ShapeDtypeStruct((Bp, H2p), jnp.float32),
                  jax.ShapeDtypeStruct((Bp, H2p), jnp.float32))

    return pl.pallas_call(
        _fused_lstm2_kernel,
        out_shape=out_shapes,
        grid_spec=pltpu.PrefetchScalarGridSpec(
            num_scalar_prefetch=0,
            grid=(T // Tt,),
            in_specs=[
                pl.BlockSpec((Tt, Bp, Ip), lambda g: (g, 0, 0)),
                pl.BlockSpec((Ip, 4 * H1p), const),
                pl.BlockSpec((H1p, 4 * H1p), const),
                pl.BlockSpec((1, 4 * H1p), const),
                pl.BlockSpec((H1p, 4 * H2p), const),
                pl.BlockSpec((H2p, 4 * H2p), const),
                pl.BlockSpec((1, 4 * H2p), const),
                pl.BlockSpec((Bp, H1p), const),
                pl.BlockSpec((Bp, H1p), const),
                pl.BlockSpec((Bp, H2p), const),
                pl.BlockSpec((Bp, H2p), const),
            ],
            out_specs=[
                pl.BlockSpec((Bp, H1p), const),
                pl.BlockSpec((Bp, H1p), const),
                pl.BlockSpec((Bp, H2p), const),
                pl.BlockSpec((Bp, H2p), const),
            ],
            scratch_shapes=[pltpu.VMEM((Tt, Bp, 4 * H1p), jnp.float32)]),
        compiler_params=pltpu.CompilerParams(
            dimension_semantics=("arbitrary",)),
    )(emb_p, wih1, whh1, b1, wih2, whh2, b2, h10, c10, h20, c20)


# -------------------------------- decoder -------------------------------------

def _decoder_kernel(x_ref, w_ref, b_ref, o_ref):
    # x: (Bp, H2p)  w: (H2p, Vt)  b: (1, Vt)  ->  o: (Bp, Vt) (lane-dense in V)
    o_ref[...] = (jnp.dot(x_ref[...], w_ref[...],
                          preferred_element_type=jnp.float32) + b_ref[...])


def decoder(x_p, w_p, b_p, *, v_tile):
    Bp, H2p = x_p.shape
    Vp = w_p.shape[1]
    return pl.pallas_call(
        _decoder_kernel,
        out_shape=jax.ShapeDtypeStruct((Bp, Vp), jnp.float32),
        grid_spec=pltpu.PrefetchScalarGridSpec(
            num_scalar_prefetch=0,
            grid=(Vp // v_tile,),
            in_specs=[
                pl.BlockSpec((Bp, H2p), lambda j: (0, 0)),
                pl.BlockSpec((H2p, v_tile), lambda j: (0, j)),
                pl.BlockSpec((1, v_tile), lambda j: (0, j)),
            ],
            out_specs=pl.BlockSpec((Bp, v_tile), lambda j: (0, j))),
        compiler_params=pltpu.CompilerParams(
            dimension_semantics=("parallel",)),
    )(x_p, w_p, b_p)


# ------------------------------- full forward ----------------------------------

def rnn_model_forward(params, tokens, hidden):
    """tokens: (T, B) int32; hidden = ((h1,c1),(h2,c2)), each (1, B, H_l).

    Returns (decoded.t() of shape (ntoken, B), ((h1,c1),(h2,c2))), like PyTorch.
    """
    T, B = tokens.shape
    I = params["enc_w"].shape[1]
    H1 = params["w_hh1"].shape[0]
    H2 = params["w_hh2"].shape[0]
    V = params["dec_w"].shape[0]

    # Lane/sublane-aligned padded sizes.
    Bp = _round_up(B, 8)
    Ip = _round_up(I, 128)
    H1p = _round_up(H1, 128)
    H2p = _round_up(H2, 128)
    Vt = 512 if V > 512 else 128
    Vp = _round_up(V, Vt)
    Tt = _pick_time_tile(T)

    # ---- glue: embedding gather (tokens padded first -> no pad of the big
    #      (T,Bp,Ip) activation tensor afterwards) ----
    # TODO(synk): the embedding gather stays as XLA glue (data-dependent row
    # gather; a Pallas DMA-gather kernel adds complexity for no measured win).
    enc_w_p = _pad_dim(params["enc_w"], 1, Ip)             # (ntoken, Ip)
    tokens_p = _pad_dim(tokens, 1, Bp)                     # (T, Bp), pad = token 0
    emb = jnp.take(enc_w_p, tokens_p, axis=0)              # (T, Bp, Ip)

    wih1 = _pad_dim(_pad_gate_cols(params["w_ih1"], H1, H1p), 0, Ip)
    whh1 = _pad_dim(_pad_gate_cols(params["w_hh1"], H1, H1p), 0, H1p)
    b1 = _pad_gate_cols(params["b1"], H1, H1p)
    wih2 = _pad_dim(_pad_gate_cols(params["w_ih2"], H2, H2p), 0, H1p)
    whh2 = _pad_dim(_pad_gate_cols(params["w_hh2"], H2, H2p), 0, H2p)
    b2 = _pad_gate_cols(params["b2"], H2, H2p)

    (h1, c1), (h2, c2) = hidden
    h10 = _pad_dim(_pad_dim(h1[0], 0, Bp), 1, H1p)
    c10 = _pad_dim(_pad_dim(c1[0], 0, Bp), 1, H1p)
    h20 = _pad_dim(_pad_dim(h2[0], 0, Bp), 1, H2p)
    c20 = _pad_dim(_pad_dim(c2[0], 0, Bp), 1, H2p)

    # ---- fused 2-layer LSTM recurrence (Pallas) ----
    h1T, c1T, h2T, c2T = fused_lstm2(emb, wih1, whh1, b1, wih2, whh2, b2,
                                     h10, c10, h20, c20, time_tile=Tt)

    # ---- decoder: lane-dense (B, V) output tiled over V (Pallas) ----
    dec_w = _pad_dim(_pad_dim(params["dec_w"], 0, Vp), 1, H2p)   # (Vp, H2p)
    dec_wT = dec_w.T                                             # (H2p, Vp), glue
    dec_b = _pad_dim(params["dec_b"], 0, Vp).reshape(1, Vp)
    dec = decoder(h2T, dec_wT, dec_b, v_tile=Vt)                 # (Bp, Vp)

    # output2[-1] == h2T, so the decoder consumed the right activations.
    decoded_t = dec[:B, :V].T                                    # (ntoken, B)
    hidden1 = (h1T[:B, :H1][None], c1T[:B, :H1][None])
    hidden2 = (h2T[:B, :H2][None], c2T[:B, :H2][None])
    return decoded_t, (hidden1, hidden2)


# ----------------------------- pure-JAX reference -------------------------------

def _lstm_ref(x, w_ih, w_hh, b, h0, c0):
    def step(carry, x_t):
        h, c = carry
        gates = x_t @ w_ih + h @ w_hh + b
        i_g, f_g, g_g, o_g = jnp.split(gates, 4, axis=-1)
        i_g, f_g, o_g = jax.nn.sigmoid(i_g), jax.nn.sigmoid(f_g), jax.nn.sigmoid(o_g)
        g_g = jnp.tanh(g_g)
        c_new = f_g * c + i_g * g_g
        h_new = o_g * jnp.tanh(c_new)
        return (h_new, c_new), h_new

    (hT, cT), ys = jax.lax.scan(step, (h0, c0), x)
    return ys, hT, cT


def rnn_model_forward_ref(params, tokens, hidden):
    emb = jnp.take(params["enc_w"], tokens, axis=0)
    (h1, c1), (h2, c2) = hidden
    out1, h1n, c1n = _lstm_ref(emb, params["w_ih1"], params["w_hh1"],
                               params["b1"], h1[0], c1[0])
    out2, h2n, c2n = _lstm_ref(out1, params["w_ih2"], params["w_hh2"],
                               params["b2"], h2[0], c2[0])
    decoded_t = (out2[-1] @ params["dec_w"].T + params["dec_b"]).T
    return decoded_t, ((h1n[None], c1n[None]), (h2n[None], c2n[None]))


# ------------------------------------ main --------------------------------------

def init_params(key, ntoken, ninp_l1, nhid_l1, ninp_l2, nhid_l2):
    ks = jax.random.split(key, 10)
    initrange = 0.1
    k1 = 1.0 / jnp.sqrt(nhid_l1)
    k2 = 1.0 / jnp.sqrt(nhid_l2)
    u = lambda k, shape, r: jax.random.uniform(k, shape, jnp.float32, -r, r)
    return {
        "enc_w": u(ks[0], (ntoken, ninp_l1), initrange),
        # LSTM 1 (stored transposed: (in, 4H)); bias = b_ih + b_hh folded.
        "w_ih1": u(ks[1], (ninp_l1, 4 * nhid_l1), k1),
        "w_hh1": u(ks[2], (nhid_l1, 4 * nhid_l1), k1),
        "b1": u(ks[3], (1, 4 * nhid_l1), k1) + u(ks[4], (1, 4 * nhid_l1), k1),
        # LSTM 2
        "w_ih2": u(ks[5], (ninp_l2, 4 * nhid_l2), k2),
        "w_hh2": u(ks[6], (nhid_l2, 4 * nhid_l2), k2),
        "b2": u(ks[7], (1, 4 * nhid_l2), k2) + u(ks[8], (1, 4 * nhid_l2), k2),
        # Decoder
        "dec_w": u(ks[9], (ntoken, nhid_l2), initrange),
        "dec_b": jnp.zeros((ntoken,), jnp.float32),
    }


def init_hidden(bsz, nhid_l1, nhid_l2):
    z = lambda h: jnp.zeros((1, bsz, h), jnp.float32)
    return ((z(nhid_l1), z(nhid_l1)), (z(nhid_l2), z(nhid_l2)))


if __name__ == "__main__":
    ntoken, ninp_l1, nhid_l1, ninp_l2, nhid_l2 = 16, 32, 32, 32, 32
    T, B = 8, 4

    key = jax.random.PRNGKey(0)
    kp, kt = jax.random.split(key)
    params = init_params(kp, ntoken, ninp_l1, nhid_l1, ninp_l2, nhid_l2)
    tokens = jax.random.randint(kt, (T, B), 0, ntoken, dtype=jnp.int32)
    hidden = init_hidden(B, nhid_l1, nhid_l2)

    fwd = jax.jit(rnn_model_forward)
    decoded_t, (hid1, hid2) = fwd(params, tokens, hidden)
    decoded_t = jax.block_until_ready(decoded_t)
    jax.block_until_ready(hid1)
    jax.block_until_ready(hid2)

    assert decoded_t.shape == (ntoken, B)
    assert hid1[0].shape == (1, B, nhid_l1) and hid2[0].shape == (1, B, nhid_l2)

    ref_dec, (ref_h1, ref_h2) = rnn_model_forward_ref(params, tokens, hidden)
    assert jnp.allclose(decoded_t, ref_dec, rtol=1e-4, atol=1e-4), "decoded mismatch"
    assert jnp.allclose(hid1[0], ref_h1[0], rtol=1e-4, atol=1e-4), "h1 mismatch"
    assert jnp.allclose(hid1[1], ref_h1[1], rtol=1e-4, atol=1e-4), "c1 mismatch"
    assert jnp.allclose(hid2[0], ref_h2[0], rtol=1e-4, atol=1e-4), "h2 mismatch"
    assert jnp.allclose(hid2[1], ref_h2[1], rtol=1e-4, atol=1e-4), "c2 mismatch"

    print("KERNEL_OK")
</pallas_src>

<mosaic_0001>
module attributes {stable_mosaic.version = 11 : i64} {
  func.func @_decoder_kernel(%arg0: i32, %arg1: memref<8x128xf32, #tpu.memory_space<vmem>>, %arg2: memref<128x128xf32, #tpu.memory_space<vmem>>, %arg3: memref<1x128xf32, #tpu.memory_space<vmem>>, %arg4: memref<8x128xf32, #tpu.memory_space<vmem>>) attributes {dimension_semantics = [#tpu.dimension_semantics<parallel>], iteration_bounds = array<i64: 1>, scalar_prefetch = 0 : i64, scratch_operands = 0 : i64, tpu.core_type = #tpu.core_type<tc>, window_params = [{pipeline_mode = #tpu.pipeline_mode<synchronous>, transform_indices = @transform_0, window_bounds = array<i64: 8, 128>}, {transform_indices = @transform_1, window_bounds = array<i64: 128, 128>}, {transform_indices = @transform_2, window_bounds = array<i64: 1, 128>}, {transform_indices = @transform_3, window_bounds = array<i64: 8, 128>}]} {
    %c0 = arith.constant 0 : index
    %c0_0 = arith.constant 0 : index
    %0 = vector.load %arg1[%c0, %c0_0] : memref<8x128xf32, #tpu.memory_space<vmem>>, vector<8x128xf32>
    %c0_1 = arith.constant 0 : index
    %c0_2 = arith.constant 0 : index
    %1 = vector.load %arg2[%c0_1, %c0_2] : memref<128x128xf32, #tpu.memory_space<vmem>>, vector<128x128xf32>
    %cst = arith.constant dense<0.000000e+00> : vector<8x128xf32>
    %2 = tpu.matmul %0, %1, %cst {dimension_numbers = #tpu.dot_dimension_numbers<[1], [0], [0], [1], [0, 0, 1, 1], [], []>} : vector<8x128xf32>, vector<128x128xf32>, vector<8x128xf32> -> vector<8x128xf32>
    %c0_3 = arith.constant 0 : index
    %c0_4 = arith.constant 0 : index
    %3 = vector.load %arg3[%c0_3, %c0_4] : memref<1x128xf32, #tpu.memory_space<vmem>>, vector<1x128xf32>
    %4 = vector.broadcast %3 : vector<1x128xf32> to vector<8x128xf32>
    %5 = arith.addf %2, %4 : vector<8x128xf32>
    %c0_5 = arith.constant 0 : index
    %c0_6 = arith.constant 0 : index
    %6 = vector.load %arg4[%c0_5, %c0_6] : memref<8x128xf32, #tpu.memory_space<vmem>>, vector<8x128xf32>
    tpu.vector_store %arg4[%c0_5, %c0_6], %5 {strides = array<i32>} : memref<8x128xf32, #tpu.memory_space<vmem>>, vector<8x128xf32>,
    return
  }
  func.func @transform_0(%arg0: i32) -> (i32, i32) {
    %c0_i32 = arith.constant 0 : i32
    %c0_i32_0 = arith.constant 0 : i32
    %c0_i32_1 = arith.constant 0 : i32
    return %c0_i32, %c0_i32_0 : i32, i32
  }
  func.func @transform_1(%arg0: i32) -> (i32, i32) {
    %c0_i32 = arith.constant 0 : i32
    %c0_i32_0 = arith.constant 0 : i32
    return %c0_i32, %arg0 : i32, i32
  }
  func.func @transform_2(%arg0: i32) -> (i32, i32) {
    %c0_i32 = arith.constant 0 : i32
    %c0_i32_0 = arith.constant 0 : i32
    return %c0_i32, %arg0 : i32, i32
  }
  func.func @transform_3(%arg0: i32) -> (i32, i32) {
    %c0_i32 = arith.constant 0 : i32
    %c0_i32_0 = arith.constant 0 : i32
    return %c0_i32, %arg0 : i32, i32
  }
}

module attributes {stable_mosaic.version = 11 : i64} {
  func.func @_fused_lstm2_kernel(%arg0: i32, %arg1: memref<8x8x128xf32, #tpu.memory_space<vmem>>, %arg2: memref<128x512xf32, #tpu.memory_space<vmem>>, %arg3: memref<128x512xf32, #tpu.memory_space<vmem>>, %arg4: memref<1x512xf32, #tpu.memory_space<vmem>>, %arg5: memref<128x512xf32, #tpu.memory_space<vmem>>, %arg6: memref<128x512xf32, #tpu.memory_space<vmem>>, %arg7: memref<1x512xf32, #tpu.memory_space<vmem>>, %arg8: memref<8x128xf32, #tpu.memory_space<vmem>>, %arg9: memref<8x128xf32, #tpu.memory_space<vmem>>, %arg10: memref<8x128xf32, #tpu.memory_space<vmem>>, %arg11: memref<8x128xf32, #tpu.memory_space<vmem>>, %arg12: memref<8x128xf32, #tpu.memory_space<vmem>>, %arg13: memref<8x128xf32, #tpu.memory_space<vmem>>, %arg14: memref<8x128xf32, #tpu.memory_space<vmem>>, %arg15: memref<8x128xf32, #tpu.memory_space<vmem>>, %arg16: memref<8x8x512xf32, #tpu.memory_space<vmem>>) attributes {dimension_semantics = [#tpu.dimension_semantics<arbitrary>], iteration_bounds = array<i64: 1>, scalar_prefetch = 0 : i64, scratch_operands = 1 : i64, tpu.core_type = #tpu.core_type<tc>, window_params = [{transform_indices = @transform_0, window_bounds = array<i64: 8, 8, 128>}, {pipeline_mode = #tpu.pipeline_mode<synchronous>, transform_indices = @transform_1, window_bounds = array<i64: 128, 512>}, {pipeline_mode = #tpu.pipeline_mode<synchronous>, transform_indices = @transform_2, window_bounds = array<i64: 128, 512>}, {pipeline_mode = #tpu.pipeline_mode<synchronous>, transform_indices = @transform_3, window_bounds = array<i64: 1, 512>}, {pipeline_mode = #tpu.pipeline_mode<synchronous>, transform_indices = @transform_4, window_bounds = array<i64: 128, 512>}, {pipeline_mode = #tpu.pipeline_mode<synchronous>, transform_indices = @transform_5, window_bounds = array<i64: 128, 512>}, {pipeline_mode = #tpu.pipeline_mode<synchronous>, transform_indices = @transform_6, window_bounds = array<i64: 1, 512>}, {pipeline_mode = #tpu.pipeline_mode<synchronous>, transform_indices = @transform_7, window_bounds = array<i64: 8, 128>}, {pipeline_mode = #tpu.pipeline_mode<synchronous>, transform_indices = @transform_8, window_bounds = array<i64: 8, 128>}, {pipeline_mode = #tpu.pipeline_mode<synchronous>, transform_indices = @transform_9, window_bounds = array<i64: 8, 128>}, {pipeline_mode = #tpu.pipeline_mode<synchronous>, transform_indices = @transform_10, window_bounds = array<i64: 8, 128>}, {pipeline_mode = #tpu.pipeline_mode<synchronous>, transform_indices = @transform_11, window_bounds = array<i64: 8, 128>}, {pipeline_mode = #tpu.pipeline_mode<synchronous>, transform_indices = @transform_12, window_bounds = array<i64: 8, 128>}, {pipeline_mode = #tpu.pipeline_mode<synchronous>, transform_indices = @transform_13, window_bounds = array<i64: 8, 128>}, {pipeline_mode = #tpu.pipeline_mode<synchronous>, transform_indices = @transform_14, window_bounds = array<i64: 8, 128>}]} {
    %c0_i32 = arith.constant 0 : i32
    %0 = arith.cmpi eq, %arg0, %c0_i32 : i32
    %1 = arith.extui %0 : i1 to i32
    %c0_i32_0 = arith.constant 0 : i32
    %2 = arith.cmpi ne, %1, %c0_i32_0 : i32
    scf.if %2 {
      %c0_165 = arith.constant 0 : index
      %c0_166 = arith.constant 0 : index
      %519 = vector.load %arg8[%c0_165, %c0_166] : memref<8x128xf32, #tpu.memory_space<vmem>>, vector<8x128xf32>
      %c0_167 = arith.constant 0 : index
      %c0_168 = arith.constant 0 : index
      %520 = vector.load %arg12[%c0_167, %c0_168] : memref<8x128xf32, #tpu.memory_space<vmem>>, vector<8x128xf32>
      tpu.vector_store %arg12[%c0_167, %c0_168], %519 {strides = array<i32>} : memref<8x128xf32, #tpu.memory_space<vmem>>, vector<8x128xf32>,
      %c0_169 = arith.constant 0 : index
      %c0_170 = arith.constant 0 : index
      %521 = vector.load %arg9[%c0_169, %c0_170] : memref<8x128xf32, #tpu.memory_space<vmem>>, vector<8x128xf32>
      %c0_171 = arith.constant 0 : index
      %c0_172 = arith.constant 0 : index
      %522 = vector.load %arg13[%c0_171, %c0_172] : memref<8x128xf32, #tpu.memory_space<vmem>>, vector<8x128xf32>
      tpu.vector_store %arg13[%c0_171, %c0_172], %521 {strides = array<i32>} : memref<8x128xf32, #tpu.memory_space<vmem>>, vector<8x128xf32>,
      %c0_173 = arith.constant 0 : index
      %c0_174 = arith.constant 0 : index
      %523 = vector.load %arg10[%c0_173, %c0_174] : memref<8x128xf32, #tpu.memory_space<vmem>>, vector<8x128xf32>
      %c0_175 = arith.constant 0 : index
      %c0_176 = arith.constant 0 : index
      %524 = vector.load %arg14[%c0_175, %c0_176] : memref<8x128xf32, #tpu.memory_space<vmem>>, vector<8x128xf32>
      tpu.vector_store %arg14[%c0_175, %c0_176], %523 {strides = array<i32>} : memref<8x128xf32, #tpu.memory_space<vmem>>, vector<8x128xf32>,
      %c0_177 = arith.constant 0 : index
      %c0_178 = arith.constant 0 : index
      %525 = vector.load %arg11[%c0_177, %c0_178] : memref<8x128xf32, #tpu.memory_space<vmem>>, vector<8x128xf32>
      %c0_179 = arith.constant 0 : index
      %c0_180 = arith.constant 0 : index
      %526 = vector.load %arg15[%c0_179, %c0_180] : memref<8x128xf32, #tpu.memory_space<vmem>>, vector<8x128xf32>
      tpu.vector_store %arg15[%c0_179, %c0_180], %525 {strides = array<i32>} : memref<8x128xf32, #tpu.memory_space<vmem>>, vector<8x128xf32>,
    } else {
    }
    %c0 = arith.constant 0 : index
    %c0_1 = arith.constant 0 : index
    %c0_2 = arith.constant 0 : index
    %3 = vector.load %arg1[%c0, %c0_1, %c0_2] : memref<8x8x128xf32, #tpu.memory_space<vmem>>, vector<8x8x128xf32>
    %4 = vector.shape_cast %3 : vector<8x8x128xf32> to vector<64x128xf32>
    %c0_3 = arith.constant 0 : index
    %c0_4 = arith.constant 0 : index
    %5 = vector.load %arg2[%c0_3, %c0_4] : memref<128x512xf32, #tpu.memory_space<vmem>>, vector<128x512xf32>
    %cst = arith.constant dense<0.000000e+00> : vector<64x512xf32>
    %6 = tpu.matmul %4, %5, %cst {dimension_numbers = #tpu.dot_dimension_numbers<[1], [0], [0], [1], [0, 0, 1, 1], [], []>} : vector<64x128xf32>, vector<128x512xf32>, vector<64x512xf32> -> vector<64x512xf32>
    %c0_5 = arith.constant 0 : index
    %c0_6 = arith.constant 0 : index
    %7 = vector.load %arg4[%c0_5, %c0_6] : memref<1x512xf32, #tpu.memory_space<vmem>>, vector<1x512xf32>
    %8 = vector.broadcast %7 : vector<1x512xf32> to vector<64x512xf32>
    %9 = arith.addf %6, %8 : vector<64x512xf32>
    %10 = vector.shape_cast %9 : vector<64x512xf32> to vector<8x8x512xf32>
    %c0_7 = arith.constant 0 : index
    %c0_8 = arith.constant 0 : index
    %c0_9 = arith.constant 0 : index
    %11 = vector.load %arg16[%c0_7, %c0_8, %c0_9] : memref<8x8x512xf32, #tpu.memory_space<vmem>>, vector<8x8x512xf32>
    tpu.vector_store %arg16[%c0_7, %c0_8, %c0_9], %10 {strides = array<i32>} : memref<8x8x512xf32, #tpu.memory_space<vmem>>, vector<8x8x512xf32>,
    %c0_10 = arith.constant 0 : index
    %c0_11 = arith.constant 0 : index
    %12 = vector.load %arg7[%c0_10, %c0_11] : memref<1x512xf32, #tpu.memory_space<vmem>>, vector<1x512xf32>
    %13 = vector.shape_cast %12 : vector<1x512xf32> to vector<1x512xf32>
    %14 = vector.broadcast %13 : vector<1x512xf32> to vector<8x512xf32>
    %c0_12 = arith.constant 0 : index
    %c0_13 = arith.constant 0 : index
    %15 = vector.load %arg12[%c0_12, %c0_13] : memref<8x128xf32, #tpu.memory_space<vmem>>, vector<8x128xf32>
    %c0_14 = arith.constant 0 : index
    %c0_15 = arith.constant 0 : index
    %16 = vector.load %arg13[%c0_14, %c0_15] : memref<8x128xf32, #tpu.memory_space<vmem>>, vector<8x128xf32>
    %c0_16 = arith.constant 0 : index
    %c0_17 = arith.constant 0 : index
    %17 = vector.load %arg14[%c0_16, %c0_17] : memref<8x128xf32, #tpu.memory_space<vmem>>, vector<8x128xf32>
    %c0_18 = arith.constant 0 : index
    %c0_19 = arith.constant 0 : index
    %18 = vector.load %arg15[%c0_18, %c0_19] : memref<8x128xf32, #tpu.memory_space<vmem>>, vector<8x128xf32>
    %c0_i32_20 = arith.constant 0 : i32
    %19 = arith.index_cast %c0_i32_20 : i32 to index
    %c0_21 = arith.constant 0 : index
    %c0_22 = arith.constant 0 : index
    %20 = vector.load %arg16[%19, %c0_21, %c0_22] : memref<8x8x512xf32, #tpu.memory_space<vmem>>, vector<1x8x512xf32>
    %21 = vector.shape_cast %20 : vector<1x8x512xf32> to vector<8x512xf32>
    %c0_23 = arith.constant 0 : index
    %c0_24 = arith.constant 0 : index
    %22 = vector.load %arg3[%c0_23, %c0_24] : memref<128x512xf32, #tpu.memory_space<vmem>>, vector<128x512xf32>
    %cst_25 = arith.constant dense<0.000000e+00> : vector<8x512xf32>
    %23 = tpu.matmul %15, %22, %cst_25 {dimension_numbers = #tpu.dot_dimension_numbers<[1], [0], [0], [1], [0, 0, 1, 1], [], []>} : vector<8x128xf32>, vector<128x512xf32>, vector<8x512xf32> -> vector<8x512xf32>
    %24 = arith.addf %21, %23 : vector<8x512xf32>
    %25 = vector.extract_strided_slice %24 {offsets = [0, 0], sizes = [8, 128], strides = [1, 1]} : vector<8x512xf32> to vector<8x128xf32>
    %26 = arith.negf %25 : vector<8x128xf32>
    %27 = math.exp %26 : vector<8x128xf32>
    %cst_26 = arith.constant 1.000000e+00 : f32
    %28 = vector.broadcast %cst_26 : f32 to vector<8x128xf32>
    %29 = arith.addf %28, %27 : vector<8x128xf32>
    %30 = arith.divf %28, %29 : vector<8x128xf32>
    %31 = vector.extract_strided_slice %24 {offsets = [0, 128], sizes = [8, 128], strides = [1, 1]} : vector<8x512xf32> to vector<8x128xf32>
    %32 = arith.negf %31 : vector<8x128xf32>
    %33 = math.exp %32 : vector<8x128xf32>
    %cst_27 = arith.constant 1.000000e+00 : f32
    %34 = vector.broadcast %cst_27 : f32 to vector<8x128xf32>
    %35 = arith.addf %34, %33 : vector<8x128xf32>
    %36 = arith.divf %34, %35 : vector<8x128xf32>
    %37 = vector.extract_strided_slice %24 {offsets = [0, 256], sizes = [8, 128], strides = [1, 1]} : vector<8x512xf32> to vector<8x128xf32>
    %38 = math.tanh %37 : vector<8x128xf32>
    %39 = vector.extract_strided_slice %24 {offsets = [0, 384], sizes = [8, 128], strides = [1, 1]} : vector<8x512xf32> to vector<8x128xf32>
    %40 = arith.negf %39 : vector<8x128xf32>
    %41 = math.exp %40 : vector<8x128xf32>
    %cst_28 = arith.constant 1.000000e+00 : f32
    %42 = vector.broadcast %cst_28 : f32 to vector<8x128xf32>
    %43 = arith.addf %42, %41 : vector<8x128xf32>
    %44 = arith.divf %42, %43 : vector<8x128xf32>
    %45 = arith.mulf %36, %16 : vector<8x128xf32>
    %46 = arith.mulf %30, %38 : vector<8x128xf32>
    %47 = arith.addf %45, %46 : vector<8x128xf32>
    %48 = math.tanh %47 : vector<8x128xf32>
    %49 = arith.mulf %44, %48 : vector<8x128xf32>
    %c0_29 = arith.constant 0 : index
    %c0_30 = arith.constant 0 : index
    %50 = vector.load %arg5[%c0_29, %c0_30] : memref<128x512xf32, #tpu.memory_space<vmem>>, vector<128x512xf32>
    %cst_31 = arith.constant dense<0.000000e+00> : vector<8x512xf32>
    %51 = tpu.matmul %49, %50, %cst_31 {dimension_numbers = #tpu.dot_dimension_numbers<[1], [0], [0], [1], [0, 0, 1, 1], [], []>} : vector<8x128xf32>, vector<128x512xf32>, vector<8x512xf32> -> vector<8x512xf32>
    %c0_32 = arith.constant 0 : index
    %c0_33 = arith.constant 0 : index
    %52 = vector.load %arg6[%c0_32, %c0_33] : memref<128x512xf32, #tpu.memory_space<vmem>>, vector<128x512xf32>
    %cst_34 = arith.constant dense<0.000000e+00> : vector<8x512xf32>
    %53 = tpu.matmul %17, %52, %cst_34 {dimension_numbers = #tpu.dot_dimension_numbers<[1], [0], [0], [1], [0, 0, 1, 1], [], []>} : vector<8x128xf32>, vector<128x512xf32>, vector<8x512xf32> -> vector<8x512xf32>
    %54 = arith.addf %51, %53 : vector<8x512xf32>
    %55 = arith.addf %54, %14 : vector<8x512xf32>
    %56 = vector.extract_strided_slice %55 {offsets = [0, 0], sizes = [8, 128], strides = [1, 1]} : vector<8x512xf32> to vector<8x128xf32>
    %57 = arith.negf %56 : vector<8x128xf32>
    %58 = math.exp %57 : vector<8x128xf32>
    %cst_35 = arith.constant 1.000000e+00 : f32
    %59 = vector.broadcast %cst_35 : f32 to vector<8x128xf32>
    %60 = arith.addf %59, %58 : vector<8x128xf32>
    %61 = arith.divf %59, %60 : vector<8x128xf32>
    %62 = vector.extract_strided_slice %55 {offsets = [0, 128], sizes = [8, 128], strides = [1, 1]} : vector<8x512xf32> to vector<8x128xf32>
    %63 = arith.negf %62 : vector<8x128xf32>
    %64 = math.exp %63 : vector<8x128xf32>
    %cst_36 = arith.constant 1.000000e+00 : f32
    %65 = vector.broadcast %cst_36 : f32 to vector<8x128xf32>
    %66 = arith.addf %65, %64 : vector<8x128xf32>
    %67 = arith.divf %65, %66 : vector<8x128xf32>
    %68 = vector.extract_strided_slice %55 {offsets = [0, 256], sizes = [8, 128], strides = [1, 1]} : vector<8x512xf32> to vector<8x128xf32>
    %69 = math.tanh %68 : vector<8x128xf32>
    %70 = vector.extract_strided_slice %55 {offsets = [0, 384], sizes = [8, 128], strides = [1, 1]} : vector<8x512xf32> to vector<8x128xf32>
    %71 = arith.negf %70 : vector<8x128xf32>
    %72 = math.exp %71 : vector<8x128xf32>
    %cst_37 = arith.constant 1.000000e+00 : f32
    %73 = vector.broadcast %cst_37 : f32 to vector<8x128xf32>
    %74 = arith.addf %73, %72 : vector<8x128xf32>
    %75 = arith.divf %73, %74 : vector<8x128xf32>
    %76 = arith.mulf %67, %18 : vector<8x128xf32>
    %77 = arith.mulf %61, %69 : vector<8x128xf32>
    %78 = arith.addf %76, %77 : vector<8x128xf32>
    %79 = math.tanh %78 : vector<8x128xf32>
    %80 = arith.mulf %75, %79 : vector<8x128xf32>
    %c1_i32 = arith.constant 1 : i32
    %81 = arith.index_cast %c1_i32 : i32 to index
    %c0_38 = arith.constant 0 : index
    %c0_39 = arith.constant 0 : index
    %82 = vector.load %arg16[%81, %c0_38, %c0_39] : memref<8x8x512xf32, #tpu.memory_space<vmem>>, vector<1x8x512xf32>
    %83 = vector.shape_cast %82 : vector<1x8x512xf32> to vector<8x512xf32>
    %c0_40 = arith.constant 0 : index
    %c0_41 = arith.constant 0 : index
    %84 = vector.load %arg3[%c0_40, %c0_41] : memref<128x512xf32, #tpu.memory_space<vmem>>, vector<128x512xf32>
    %cst_42 = arith.constant dense<0.000000e+00> : vector<8x512xf32>
    %85 = tpu.matmul %49, %84, %cst_42 {dimension_numbers = #tpu.dot_dimension_numbers<[1], [0], [0], [1], [0, 0, 1, 1], [], []>} : vector<8x128xf32>, vector<128x512xf32>, vector<8x512xf32> -> vector<8x512xf32>
    %86 = arith.addf %83, %85 : vector<8x512xf32>
    %87 = vector.extract_strided_slice %86 {offsets = [0, 0], sizes = [8, 128], strides = [1, 1]} : vector<8x512xf32> to vector<8x128xf32>
    %88 = arith.negf %87 : vector<8x128xf32>
    %89 = math.exp %88 : vector<8x128xf32>
    %cst_43 = arith.constant 1.000000e+00 : f32
    %90 = vector.broadcast %cst_43 : f32 to vector<8x128xf32>
    %91 = arith.addf %90, %89 : vector<8x128xf32>
    %92 = arith.divf %90, %91 : vector<8x128xf32>
    %93 = vector.extract_strided_slice %86 {offsets = [0, 128], sizes = [8, 128], strides = [1, 1]} : vector<8x512xf32> to vector<8x128xf32>
    %94 = arith.negf %93 : vector<8x128xf32>
    %95 = math.exp %94 : vector<8x128xf32>
    %cst_44 = arith.constant 1.000000e+00 : f32
    %96 = vector.broadcast %cst_44 : f32 to vector<8x128xf32>
    %97 = arith.addf %96, %95 : vector<8x128xf32>
    %98 = arith.divf %96, %97 : vector<8x128xf32>
    %99 = vector.extract_strided_slice %86 {offsets = [0, 256], sizes = [8, 128], strides = [1, 1]} : vector<8x512xf32> to vector<8x128xf32>
    %100 = math.tanh %99 : vector<8x128xf32>
    %101 = vector.extract_strided_slice %86 {offsets = [0, 384], sizes = [8, 128], strides = [1, 1]} : vector<8x512xf32> to vector<8x128xf32>
    %102 = arith.negf %101 : vector<8x128xf32>
    %103 = math.exp %102 : vector<8x128xf32>
    %cst_45 = arith.constant 1.000000e+00 : f32
    %104 = vector.broadcast %cst_45 : f32 to vector<8x128xf32>
    %105 = arith.addf %104, %103 : vector<8x128xf32>
    %106 = arith.divf %104, %105 : vector<8x128xf32>
    %107 = arith.mulf %98, %47 : vector<8x128xf32>
    %108 = arith.mulf %92, %100 : vector<8x128xf32>
    %109 = arith.addf %107, %108 : vector<8x128xf32>
    %110 = math.tanh %109 : vector<8x128xf32>
    %111 = arith.mulf %106, %110 : vector<8x128xf32>
    %c0_46 = arith.constant 0 : index
    %c0_47 = arith.constant 0 : index
    %112 = vector.load %arg5[%c0_46, %c0_47] : memref<128x512xf32, #tpu.memory_space<vmem>>, vector<128x512xf32>
    %cst_48 = arith.constant dense<0.000000e+00> : vector<8x512xf32>
    %113 = tpu.matmul %111, %112, %cst_48 {dimension_numbers = #tpu.dot_dimension_numbers<[1], [0], [0], [1], [0, 0, 1, 1], [], []>} : vector<8x128xf32>, vector<128x512xf32>, vector<8x512xf32> -> vector<8x512xf32>
    %c0_49 = arith.constant 0 : index
    %c0_50 = arith.constant 0 : index
    %114 = vector.load %arg6[%c0_49, %c0_50] : memref<128x512xf32, #tpu.memory_space<vmem>>, vector<128x512xf32>
    %cst_51 = arith.constant dense<0.000000e+00> : vector<8x512xf32>
    %115 = tpu.matmul %80, %114, %cst_51 {dimension_numbers = #tpu.dot_dimension_numbers<[1], [0], [0], [1], [0, 0, 1, 1], [], []>} : vector<8x128xf32>, vector<128x512xf32>, vector<8x512xf32> -> vector<8x512xf32>
    %116 = arith.addf %113, %115 : vector<8x512xf32>
    %117 = arith.addf %116, %14 : vector<8x512xf32>
    %118 = vector.extract_strided_slice %117 {offsets = [0, 0], sizes = [8, 128], strides = [1, 1]} : vector<8x512xf32> to vector<8x128xf32>
    %119 = arith.negf %118 : vector<8x128xf32>
    %120 = math.exp %119 : vector<8x128xf32>
    %cst_52 = arith.constant 1.000000e+00 : f32
    %121 = vector.broadcast %cst_52 : f32 to vector<8x128xf32>
    %122 = arith.addf %121, %120 : vector<8x128xf32>
    %123 = arith.divf %121, %122 : vector<8x128xf32>
    %124 = vector.extract_strided_slice %117 {offsets = [0, 128], sizes = [8, 128], strides = [1, 1]} : vector<8x512xf32> to vector<8x128xf32>
    %125 = arith.negf %124 : vector<8x128xf32>
    %126 = math.exp %125 : vector<8x128xf32>
    %cst_53 = arith.constant 1.000000e+00 : f32
    %127 = vector.broadcast %cst_53 : f32 to vector<8x128xf32>
    %128 = arith.addf %127, %126 : vector<8x128xf32>
    %129 = arith.divf %127, %128 : vector<8x128xf32>
    %130 = vector.extract_strided_slice %117 {offsets = [0, 256], sizes = [8, 128], strides = [1, 1]} : vector<8x512xf32> to vector<8x128xf32>
    %131 = math.tanh %130 : vector<8x128xf32>
    %132 = vector.extract_strided_slice %117 {offsets = [0, 384], sizes = [8, 128], strides = [1, 1]} : vector<8x512xf32> to vector<8x128xf32>
    %133 = arith.negf %132 : vector<8x128xf32>
    %134 = math.exp %133 : vector<8x128xf32>
    %cst_54 = arith.constant 1.000000e+00 : f32
    %135 = vector.broadcast %cst_54 : f32 to vector<8x128xf32>
    %136 = arith.addf %135, %134 : vector<8x128xf32>
    %137 = arith.divf %135, %136 : vector<8x128xf32>
    %138 = arith.mulf %129, %78 : vector<8x128xf32>
    %139 = arith.mulf %123, %131 : vector<8x128xf32>
    %140 = arith.addf %138, %139 : vector<8x128xf32>
    %141 = math.tanh %140 : vector<8x128xf32>
    %142 = arith.mulf %137, %141 : vector<8x128xf32>
    %c2_i32 = arith.constant 2 : i32
    %143 = arith.index_cast %c2_i32 : i32 to index
    %c0_55 = arith.constant 0 : index
    %c0_56 = arith.constant 0 : index
    %144 = vector.load %arg16[%143, %c0_55, %c0_56] : memref<8x8x512xf32, #tpu.memory_space<vmem>>, vector<1x8x512xf32>
    %145 = vector.shape_cast %144 : vector<1x8x512xf32> to vector<8x512xf32>
    %c0_57 = arith.constant 0 : index
    %c0_58 = arith.constant 0 : index
    %146 = vector.load %arg3[%c0_57, %c0_58] : memref<128x512xf32, #tpu.memory_space<vmem>>, vector<128x512xf32>
    %cst_59 = arith.constant dense<0.000000e+00> : vector<8x512xf32>
    %147 = tpu.matmul %111, %146, %cst_59 {dimension_numbers = #tpu.dot_dimension_numbers<[1], [0], [0], [1], [0, 0, 1, 1], [], []>} : vector<8x128xf32>, vector<128x512xf32>, vector<8x512xf32> -> vector<8x512xf32>
    %148 = arith.addf %145, %147 : vector<8x512xf32>
    %149 = vector.extract_strided_slice %148 {offsets = [0, 0], sizes = [8, 128], strides = [1, 1]} : vector<8x512xf32> to vector<8x128xf32>
    %150 = arith.negf %149 : vector<8x128xf32>
    %151 = math.exp %150 : vector<8x128xf32>
    %cst_60 = arith.constant 1.000000e+00 : f32
    %152 = vector.broadcast %cst_60 : f32 to vector<8x128xf32>
    %153 = arith.addf %152, %151 : vector<8x128xf32>
    %154 = arith.divf %152, %153 : vector<8x128xf32>
    %155 = vector.extract_strided_slice %148 {offsets = [0, 128], sizes = [8, 128], strides = [1, 1]} : vector<8x512xf32> to vector<8x128xf32>
    %156 = arith.negf %155 : vector<8x128xf32>
    %157 = math.exp %156 : vector<8x128xf32>
    %cst_61 = arith.constant 1.000000e+00 : f32
    %158 = vector.broadcast %cst_61 : f32 to vector<8x128xf32>
    %159 = arith.addf %158, %157 : vector<8x128xf32>
    %160 = arith.divf %158, %159 : vector<8x128xf32>
    %161 = vector.extract_strided_slice %148 {offsets = [0, 256], sizes = [8, 128], strides = [1, 1]} : vector<8x512xf32> to vector<8x128xf32>
    %162 = math.tanh %161 : vector<8x128xf32>
    %163 = vector.extract_strided_slice %148 {offsets = [0, 384], sizes = [8, 128], strides = [1, 1]} : vector<8x512xf32> to vector<8x128xf32>
    %164 = arith.negf %163 : vector<8x128xf32>
    %165 = math.exp %164 : vector<8x128xf32>
    %cst_62 = arith.constant 1.000000e+00 : f32
    %166 = vector.broadcast %cst_62 : f32 to vector<8x128xf32>
    %167 = arith.addf %166, %165 : vector<8x128xf32>
    %168 = arith.divf %166, %167 : vector<8x128xf32>
    %169 = arith.mulf %160, %109 : vector<8x128xf32>
    %170 = arith.mulf %154, %162 : vector<8x128xf32>
    %171 = arith.addf %169, %170 : vector<8x128xf32>
    %172 = math.tanh %171 : vector<8x128xf32>
    %173 = arith.mulf %168, %172 : vector<8x128xf32>
    %c0_63 = arith.constant 0 : index
    %c0_64 = arith.constant 0 : index
    %174 = vector.load %arg5[%c0_63, %c0_64] : memref<128x512xf32, #tpu.memory_space<vmem>>, vector<128x512xf32>
    %cst_65 = arith.constant dense<0.000000e+00> : vector<8x512xf32>
    %175 = tpu.matmul %173, %174, %cst_65 {dimension_numbers = #tpu.dot_dimension_numbers<[1], [0], [0], [1], [0, 0, 1, 1], [], []>} : vector<8x128xf32>, vector<128x512xf32>, vector<8x512xf32> -> vector<8x512xf32>
    %c0_66 = arith.constant 0 : index
    %c0_67 = arith.constant 0 : index
    %176 = vector.load %arg6[%c0_66, %c0_67] : memref<128x512xf32, #tpu.memory_space<vmem>>, vector<128x512xf32>
    %cst_68 = arith.constant dense<0.000000e+00> : vector<8x512xf32>
    %177 = tpu.matmul %142, %176, %cst_68 {dimension_numbers = #tpu.dot_dimension_numbers<[1], [0], [0], [1], [0, 0, 1, 1], [], []>} : vector<8x128xf32>, vector<128x512xf32>, vector<8x512xf32> -> vector<8x512xf32>
    %178 = arith.addf %175, %177 : vector<8x512xf32>
    %179 = arith.addf %178, %14 : vector<8x512xf32>
    %180 = vector.extract_strided_slice %179 {offsets = [0, 0], sizes = [8, 128], strides = [1, 1]} : vector<8x512xf32> to vector<8x128xf32>
    %181 = arith.negf %180 : vector<8x128xf32>
    %182 = math.exp %181 : vector<8x128xf32>
    %cst_69 = arith.constant 1.000000e+00 : f32
    %183 = vector.broadcast %cst_69 : f32 to vector<8x128xf32>
    %184 = arith.addf %183, %182 : vector<8x128xf32>
    %185 = arith.divf %183, %184 : vector<8x128xf32>
    %186 = vector.extract_strided_slice %179 {offsets = [0, 128], sizes = [8, 128], strides = [1, 1]} : vector<8x512xf32> to vector<8x128xf32>
    %187 = arith.negf %186 : vector<8x128xf32>
    %188 = math.exp %187 : vector<8x128xf32>
    %cst_70 = arith.constant 1.000000e+00 : f32
    %189 = vector.broadcast %cst_70 : f32 to vector<8x128xf32>
    %190 = arith.addf %189, %188 : vector<8x128xf32>
    %191 = arith.divf %189, %190 : vector<8x128xf32>
    %192 = vector.extract_strided_slice %179 {offsets = [0, 256], sizes = [8, 128], strides = [1, 1]} : vector<8x512xf32> to vector<8x128xf32>
    %193 = math.tanh %192 : vector<8x128xf32>
    %194 = vector.extract_strided_slice %179 {offsets = [0, 384], sizes = [8, 128], strides = [1, 1]} : vector<8x512xf32> to vector<8x128xf32>
    %195 = arith.negf %194 : vector<8x128xf32>
    %196 = math.exp %195 : vector<8x128xf32>
    %cst_71 = arith.constant 1.000000e+00 : f32
    %197 = vector.broadcast %cst_71 : f32 to vector<8x128xf32>
    %198 = arith.addf %197, %196 : vector<8x128xf32>
    %199 = arith.divf %197, %198 : vector<8x128xf32>
    %200 = arith.mulf %191, %140 : vector<8x128xf32>
    %201 = arith.mulf %185, %193 : vector<8x128xf32>
    %202 = arith.addf %200, %201 : vector<8x128xf32>
    %203 = math.tanh %202 : vector<8x128xf32>
    %204 = arith.mulf %199, %203 : vector<8x128xf32>
    %c3_i32 = arith.constant 3 : i32
    %205 = arith.index_cast %c3_i32 : i32 to index
    %c0_72 = arith.constant 0 : index
    %c0_73 = arith.constant 0 : index
    %206 = vector.load %arg16[%205, %c0_72, %c0_73] : memref<8x8x512xf32, #tpu.memory_space<vmem>>, vector<1x8x512xf32>
    %207 = vector.shape_cast %206 : vector<1x8x512xf32> to vector<8x512xf32>
    %c0_74 = arith.constant 0 : index
    %c0_75 = arith.constant 0 : index
    %208 = vector.load %arg3[%c0_74, %c0_75] : memref<128x512xf32, #tpu.memory_space<vmem>>, vector<128x512xf32>
    %cst_76 = arith.constant dense<0.000000e+00> : vector<8x512xf32>
    %209 = tpu.matmul %173, %208, %cst_76 {dimension_numbers = #tpu.dot_dimension_numbers<[1], [0], [0], [1], [0, 0, 1, 1], [], []>} : vector<8x128xf32>, vector<128x512xf32>, vector<8x512xf32> -> vector<8x512xf32>
    %210 = arith.addf %207, %209 : vector<8x512xf32>
    %211 = vector.extract_strided_slice %210 {offsets = [0, 0], sizes = [8, 128], strides = [1, 1]} : vector<8x512xf32> to vector<8x128xf32>
    %212 = arith.negf %211 : vector<8x128xf32>
    %213 = math.exp %212 : vector<8x128xf32>
    %cst_77 = arith.constant 1.000000e+00 : f32
    %214 = vector.broadcast %cst_77 : f32 to vector<8x128xf32>
    %215 = arith.addf %214, %213 : vector<8x128xf32>
    %216 = arith.divf %214, %215 : vector<8x128xf32>
    %217 = vector.extract_strided_slice %210 {offsets = [0, 128], sizes = [8, 128], strides = [1, 1]} : vector<8x512xf32> to vector<8x128xf32>
    %218 = arith.negf %217 : vector<8x128xf32>
    %219 = math.exp %218 : vector<8x128xf32>
    %cst_78 = arith.constant 1.000000e+00 : f32
    %220 = vector.broadcast %cst_78 : f32 to vector<8x128xf32>
    %221 = arith.addf %220, %219 : vector<8x128xf32>
    %222 = arith.divf %220, %221 : vector<8x128xf32>
    %223 = vector.extract_strided_slice %210 {offsets = [0, 256], sizes = [8, 128], strides = [1, 1]} : vector<8x512xf32> to vector<8x128xf32>
    %224 = math.tanh %223 : vector<8x128xf32>
    %225 = vector.extract_strided_slice %210 {offsets = [0, 384], sizes = [8, 128], strides = [1, 1]} : vector<8x512xf32> to vector<8x128xf32>
    %226 = arith.negf %225 : vector<8x128xf32>
    %227 = math.exp %226 : vector<8x128xf32>
    %cst_79 = arith.constant 1.000000e+00 : f32
    %228 = vector.broadcast %cst_79 : f32 to vector<8x128xf32>
    %229 = arith.addf %228, %227 : vector<8x128xf32>
    %230 = arith.divf %228, %229 : vector<8x128xf32>
    %231 = arith.mulf %222, %171 : vector<8x128xf32>
    %232 = arith.mulf %216, %224 : vector<8x128xf32>
    %233 = arith.addf %231, %232 : vector<8x128xf32>
    %234 = math.tanh %233 : vector<8x128xf32>
    %235 = arith.mulf %230, %234 : vector<8x128xf32>
    %c0_80 = arith.constant 0 : index
    %c0_81 = arith.constant 0 : index
    %236 = vector.load %arg5[%c0_80, %c0_81] : memref<128x512xf32, #tpu.memory_space<vmem>>, vector<128x512xf32>
    %cst_82 = arith.constant dense<0.000000e+00> : vector<8x512xf32>
    %237 = tpu.matmul %235, %236, %cst_82 {dimension_numbers = #tpu.dot_dimension_numbers<[1], [0], [0], [1], [0, 0, 1, 1], [], []>} : vector<8x128xf32>, vector<128x512xf32>, vector<8x512xf32> -> vector<8x512xf32>
    %c0_83 = arith.constant 0 : index
    %c0_84 = arith.constant 0 : index
    %238 = vector.load %arg6[%c0_83, %c0_84] : memref<128x512xf32, #tpu.memory_space<vmem>>, vector<128x512xf32>
    %cst_85 = arith.constant dense<0.000000e+00> : vector<8x512xf32>
    %239 = tpu.matmul %204, %238, %cst_85 {dimension_numbers = #tpu.dot_dimension_numbers<[1], [0], [0], [1], [0, 0, 1, 1], [], []>} : vector<8x128xf32>, vector<128x512xf32>, vector<8x512xf32> -> vector<8x512xf32>
    %240 = arith.addf %237, %239 : vector<8x512xf32>
    %241 = arith.addf %240, %14 : vector<8x512xf32>
    %242 = vector.extract_strided_slice %241 {offsets = [0, 0], sizes = [8, 128], strides = [1, 1]} : vector<8x512xf32> to vector<8x128xf32>
    %243 = arith.negf %242 : vector<8x128xf32>
    %244 = math.exp %243 : vector<8x128xf32>
    %cst_86 = arith.constant 1.000000e+00 : f32
    %245 = vector.broadcast %cst_86 : f32 to vector<8x128xf32>
    %246 = arith.addf %245, %244 : vector<8x128xf32>
    %247 = arith.divf %245, %246 : vector<8x128xf32>
    %248 = vector.extract_strided_slice %241 {offsets = [0, 128], sizes = [8, 128], strides = [1, 1]} : vector<8x512xf32> to vector<8x128xf32>
    %249 = arith.negf %248 : vector<8x128xf32>
    %250 = math.exp %249 : vector<8x128xf32>
    %cst_87 = arith.constant 1.000000e+00 : f32
    %251 = vector.broadcast %cst_87 : f32 to vector<8x128xf32>
    %252 = arith.addf %251, %250 : vector<8x128xf32>
    %253 = arith.divf %251, %252 : vector<8x128xf32>
    %254 = vector.extract_strided_slice %241 {offsets = [0, 256], sizes = [8, 128], strides = [1, 1]} : vector<8x512xf32> to vector<8x128xf32>
    %255 = math.tanh %254 : vector<8x128xf32>
    %256 = vector.extract_strided_slice %241 {offsets = [0, 384], sizes = [8, 128], strides = [1, 1]} : vector<8x512xf32> to vector<8x128xf32>
    %257 = arith.negf %256 : vector<8x128xf32>
    %258 = math.exp %257 : vector<8x128xf32>
    %cst_88 = arith.constant 1.000000e+00 : f32
    %259 = vector.broadcast %cst_88 : f32 to vector<8x128xf32>
    %260 = arith.addf %259, %258 : vector<8x128xf32>
    %261 = arith.divf %259, %260 : vector<8x128xf32>
    %262 = arith.mulf %253, %202 : vector<8x128xf32>
    %263 = arith.mulf %247, %255 : vector<8x128xf32>
    %264 = arith.addf %262, %263 : vector<8x128xf32>
    %265 = math.tanh %264 : vector<8x128xf32>
    %266 = arith.mulf %261, %265 : vector<8x128xf32>
    %c4_i32 = arith.constant 4 : i32
    %267 = arith.index_cast %c4_i32 : i32 to index
    %c0_89 = arith.constant 0 : index
    %c0_90 = arith.constant 0 : index
    %268 = vector.load %arg16[%267, %c0_89, %c0_90] : memref<8x8x512xf32, #tpu.memory_space<vmem>>, vector<1x8x512xf32>
    %269 = vector.shape_cast %268 : vector<1x8x512xf32> to vector<8x512xf32>
    %c0_91 = arith.constant 0 : index
    %c0_92 = arith.constant 0 : index
    %270 = vector.load %arg3[%c0_91, %c0_92] : memref<128x512xf32, #tpu.memory_space<vmem>>, vector<128x512xf32>
    %cst_93 = arith.constant dense<0.000000e+00> : vector<8x512xf32>
    %271 = tpu.matmul %235, %270, %cst_93 {dimension_numbers = #tpu.dot_dimension_numbers<[1], [0], [0], [1], [0, 0, 1, 1], [], []>} : vector<8x128xf32>, vector<128x512xf32>, vector<8x512xf32> -> vector<8x512xf32>
    %272 = arith.addf %269, %271 : vector<8x512xf32>
    %273 = vector.extract_strided_slice %272 {offsets = [0, 0], sizes = [8, 128], strides = [1, 1]} : vector<8x512xf32> to vector<8x128xf32>
    %274 = arith.negf %273 : vector<8x128xf32>
    %275 = math.exp %274 : vector<8x128xf32>
    %cst_94 = arith.constant 1.000000e+00 : f32
    %276 = vector.broadcast %cst_94 : f32 to vector<8x128xf32>
    %277 = arith.addf %276, %275 : vector<8x128xf32>
    %278 = arith.divf %276, %277 : vector<8x128xf32>
    %279 = vector.extract_strided_slice %272 {offsets = [0, 128], sizes = [8, 128], strides = [1, 1]} : vector<8x512xf32> to vector<8x128xf32>
    %280 = arith.negf %279 : vector<8x128xf32>
    %281 = math.exp %280 : vector<8x128xf32>
    %cst_95 = arith.constant 1.000000e+00 : f32
    %282 = vector.broadcast %cst_95 : f32 to vector<8x128xf32>
    %283 = arith.addf %282, %281 : vector<8x128xf32>
    %284 = arith.divf %282, %283 : vector<8x128xf32>
    %285 = vector.extract_strided_slice %272 {offsets = [0, 256], sizes = [8, 128], strides = [1, 1]} : vector<8x512xf32> to vector<8x128xf32>
    %286 = math.tanh %285 : vector<8x128xf32>
    %287 = vector.extract_strided_slice %272 {offsets = [0, 384], sizes = [8, 128], strides = [1, 1]} : vector<8x512xf32> to vector<8x128xf32>
    %288 = arith.negf %287 : vector<8x128xf32>
    %289 = math.exp %288 : vector<8x128xf32>
    %cst_96 = arith.constant 1.000000e+00 : f32
    %290 = vector.broadcast %cst_96 : f32 to vector<8x128xf32>
    %291 = arith.addf %290, %289 : vector<8x128xf32>
    %292 = arith.divf %290, %291 : vector<8x128xf32>
    %293 = arith.mulf %284, %233 : vector<8x128xf32>
    %294 = arith.mulf %278, %286 : vector<8x128xf32>
    %295 = arith.addf %293, %294 : vector<8x128xf32>
    %296 = math.tanh %295 : vector<8x128xf32>
    %297 = arith.mulf %292, %296 : vector<8x128xf32>
    %c0_97 = arith.constant 0 : index
    %c0_98 = arith.constant 0 : index
    %298 = vector.load %arg5[%c0_97, %c0_98] : memref<128x512xf32, #tpu.memory_space<vmem>>, vector<128x512xf32>
    %cst_99 = arith.constant dense<0.000000e+00> : vector<8x512xf32>
    %299 = tpu.matmul %297, %298, %cst_99 {dimension_numbers = #tpu.dot_dimension_numbers<[1], [0], [0], [1], [0, 0, 1, 1], [], []>} : vector<8x128xf32>, vector<128x512xf32>, vector<8x512xf32> -> vector<8x512xf32>
    %c0_100 = arith.constant 0 : index
    %c0_101 = arith.constant 0 : index
    %300 = vector.load %arg6[%c0_100, %c0_101] : memref<128x512xf32, #tpu.memory_space<vmem>>, vector<128x512xf32>
    %cst_102 = arith.constant dense<0.000000e+00> : vector<8x512xf32>
    %301 = tpu.matmul %266, %300, %cst_102 {dimension_numbers = #tpu.dot_dimension_numbers<[1], [0], [0], [1], [0, 0, 1, 1], [], []>} : vector<8x128xf32>, vector<128x512xf32>, vector<8x512xf32> -> vector<8x512xf32>
    %302 = arith.addf %299, %301 : vector<8x512xf32>
    %303 = arith.addf %302, %14 : vector<8x512xf32>
    %304 = vector.extract_strided_slice %303 {offsets = [0, 0], sizes = [8, 128], strides = [1, 1]} : vector<8x512xf32> to vector<8x128xf32>
    %305 = arith.negf %304 : vector<8x128xf32>
    %306 = math.exp %305 : vector<8x128xf32>
    %cst_103 = arith.constant 1.000000e+00 : f32
    %307 = vector.broadcast %cst_103 : f32 to vector<8x128xf32>
    %308 = arith.addf %307, %306 : vector<8x128xf32>
    %309 = arith.divf %307, %308 : vector<8x128xf32>
    %310 = vector.extract_strided_slice %303 {offsets = [0, 128], sizes = [8, 128], strides = [1, 1]} : vector<8x512xf32> to vector<8x128xf32>
    %311 = arith.negf %310 : vector<8x128xf32>
    %312 = math.exp %311 : vector<8x128xf32>
    %cst_104 = arith.constant 1.000000e+00 : f32
    %313 = vector.broadcast %cst_104 : f32 to vector<8x128xf32>
    %314 = arith.addf %313, %312 : vector<8x128xf32>
    %315 = arith.divf %313, %314 : vector<8x128xf32>
    %316 = vector.extract_strided_slice %303 {offsets = [0, 256], sizes = [8, 128], strides = [1, 1]} : vector<8x512xf32> to vector<8x128xf32>
    %317 = math.tanh %316 : vector<8x128xf32>
    %318 = vector.extract_strided_slice %303 {offsets = [0, 384], sizes = [8, 128], strides = [1, 1]} : vector<8x512xf32> to vector<8x128xf32>
    %319 = arith.negf %318 : vector<8x128xf32>
    %320 = math.exp %319 : vector<8x128xf32>
    %cst_105 = arith.constant 1.000000e+00 : f32
    %321 = vector.broadcast %cst_105 : f32 to vector<8x128xf32>
    %322 = arith.addf %321, %320 : vector<8x128xf32>
    %323 = arith.divf %321, %322 : vector<8x128xf32>
    %324 = arith.mulf %315, %264 : vector<8x128xf32>
    %325 = arith.mulf %309, %317 : vector<8x128xf32>
    %326 = arith.addf %324, %325 : vector<8x128xf32>
    %327 = math.tanh %326 : vector<8x128xf32>
    %328 = arith.mulf %323, %327 : vector<8x128xf32>
    %c5_i32 = arith.constant 5 : i32
    %329 = arith.index_cast %c5_i32 : i32 to index
    %c0_106 = arith.constant 0 : index
    %c0_107 = arith.constant 0 : index
    %330 = vector.load %arg16[%329, %c0_106, %c0_107] : memref<8x8x512xf32, #tpu.memory_space<vmem>>, vector<1x8x512xf32>
    %331 = vector.shape_cast %330 : vector<1x8x512xf32> to vector<8x512xf32>
    %c0_108 = arith.constant 0 : index
    %c0_109 = arith.constant 0 : index
    %332 = vector.load %arg3[%c0_108, %c0_109] : memref<128x512xf32, #tpu.memory_space<vmem>>, vector<128x512xf32>
    %cst_110 = arith.constant dense<0.000000e+00> : vector<8x512xf32>
    %333 = tpu.matmul %297, %332, %cst_110 {dimension_numbers = #tpu.dot_dimension_numbers<[1], [0], [0], [1], [0, 0, 1, 1], [], []>} : vector<8x128xf32>, vector<128x512xf32>, vector<8x512xf32> -> vector<8x512xf32>
    %334 = arith.addf %331, %333 : vector<8x512xf32>
    %335 = vector.extract_strided_slice %334 {offsets = [0, 0], sizes = [8, 128], strides = [1, 1]} : vector<8x512xf32> to vector<8x128xf32>
    %336 = arith.negf %335 : vector<8x128xf32>
    %337 = math.exp %336 : vector<8x128xf32>
    %cst_111 = arith.constant 1.000000e+00 : f32
    %338 = vector.broadcast %cst_111 : f32 to vector<8x128xf32>
    %339 = arith.addf %338, %337 : vector<8x128xf32>
    %340 = arith.divf %338, %339 : vector<8x128xf32>
    %341 = vector.extract_strided_slice %334 {offsets = [0, 128], sizes = [8, 128], strides = [1, 1]} : vector<8x512xf32> to vector<8x128xf32>
    %342 = arith.negf %341 : vector<8x128xf32>
    %343 = math.exp %342 : vector<8x128xf32>
    %cst_112 = arith.constant 1.000000e+00 : f32
    %344 = vector.broadcast %cst_112 : f32 to vector<8x128xf32>
    %345 = arith.addf %344, %343 : vector<8x128xf32>
    %346 = arith.divf %344, %345 : vector<8x128xf32>
    %347 = vector.extract_strided_slice %334 {offsets = [0, 256], sizes = [8, 128], strides = [1, 1]} : vector<8x512xf32> to vector<8x128xf32>
    %348 = math.tanh %347 : vector<8x128xf32>
    %349 = vector.extract_strided_slice %334 {offsets = [0, 384], sizes = [8, 128], strides = [1, 1]} : vector<8x512xf32> to vector<8x128xf32>
    %350 = arith.negf %349 : vector<8x128xf32>
    %351 = math.exp %350 : vector<8x128xf32>
    %cst_113 = arith.constant 1.000000e+00 : f32
    %352 = vector.broadcast %cst_113 : f32 to vector<8x128xf32>
    %353 = arith.addf %352, %351 : vector<8x128xf32>
    %354 = arith.divf %352, %353 : vector<8x128xf32>
    %355 = arith.mulf %346, %295 : vector<8x128xf32>
    %356 = arith.mulf %340, %348 : vector<8x128xf32>
    %357 = arith.addf %355, %356 : vector<8x128xf32>
    %358 = math.tanh %357 : vector<8x128xf32>
    %359 = arith.mulf %354, %358 : vector<8x128xf32>
    %c0_114 = arith.constant 0 : index
    %c0_115 = arith.constant 0 : index
    %360 = vector.load %arg5[%c0_114, %c0_115] : memref<128x512xf32, #tpu.memory_space<vmem>>, vector<128x512xf32>
    %cst_116 = arith.constant dense<0.000000e+00> : vector<8x512xf32>
    %361 = tpu.matmul %359, %360, %cst_116 {dimension_numbers = #tpu.dot_dimension_numbers<[1], [0], [0], [1], [0, 0, 1, 1], [], []>} : vector<8x128xf32>, vector<128x512xf32>, vector<8x512xf32> -> vector<8x512xf32>
    %c0_117 = arith.constant 0 : index
    %c0_118 = arith.constant 0 : index
    %362 = vector.load %arg6[%c0_117, %c0_118] : memref<128x512xf32, #tpu.memory_space<vmem>>, vector<128x512xf32>
    %cst_119 = arith.constant dense<0.000000e+00> : vector<8x512xf32>
    %363 = tpu.matmul %328, %362, %cst_119 {dimension_numbers = #tpu.dot_dimension_numbers<[1], [0], [0], [1], [0, 0, 1, 1], [], []>} : vector<8x128xf32>, vector<128x512xf32>, vector<8x512xf32> -> vector<8x512xf32>
    %364 = arith.addf %361, %363 : vector<8x512xf32>
    %365 = arith.addf %364, %14 : vector<8x512xf32>
    %366 = vector.extract_strided_slice %365 {offsets = [0, 0], sizes = [8, 128], strides = [1, 1]} : vector<8x512xf32> to vector<8x128xf32>
    %367 = arith.negf %366 : vector<8x128xf32>
    %368 = math.exp %367 : vector<8x128xf32>
    %cst_120 = arith.constant 1.000000e+00 : f32
    %369 = vector.broadcast %cst_120 : f32 to vector<8x128xf32>
    %370 = arith.addf %369, %368 : vector<8x128xf32>
    %371 = arith.divf %369, %370 : vector<8x128xf32>
    %372 = vector.extract_strided_slice %365 {offsets = [0, 128], sizes = [8, 128], strides = [1, 1]} : vector<8x512xf32> to vector<8x128xf32>
    %373 = arith.negf %372 : vector<8x128xf32>
    %374 = math.exp %373 : vector<8x128xf32>
    %cst_121 = arith.constant 1.000000e+00 : f32
    %375 = vector.broadcast %cst_121 : f32 to vector<8x128xf32>
    %376 = arith.addf %375, %374 : vector<8x128xf32>
    %377 = arith.divf %375, %376 : vector<8x128xf32>
    %378 = vector.extract_strided_slice %365 {offsets = [0, 256], sizes = [8, 128], strides = [1, 1]} : vector<8x512xf32> to vector<8x128xf32>
    %379 = math.tanh %378 : vector<8x128xf32>
    %380 = vector.extract_strided_slice %365 {offsets = [0, 384], sizes = [8, 128], strides = [1, 1]} : vector<8x512xf32> to vector<8x128xf32>
    %381 = arith.negf %380 : vector<8x128xf32>
    %382 = math.exp %381 : vector<8x128xf32>
    %cst_122 = arith.constant 1.000000e+00 : f32
    %383 = vector.broadcast %cst_122 : f32 to vector<8x128xf32>
    %384 = arith.addf %383, %382 : vector<8x128xf32>
    %385 = arith.divf %383, %384 : vector<8x128xf32>
    %386 = arith.mulf %377, %326 : vector<8x128xf32>
    %387 = arith.mulf %371, %379 : vector<8x128xf32>
    %388 = arith.addf %386, %387 : vector<8x128xf32>
    %389 = math.tanh %388 : vector<8x128xf32>
    %390 = arith.mulf %385, %389 : vector<8x128xf32>
    %c6_i32 = arith.constant 6 : i32
    %391 = arith.index_cast %c6_i32 : i32 to index
    %c0_123 = arith.constant 0 : index
    %c0_124 = arith.constant 0 : index
    %392 = vector.load %arg16[%391, %c0_123, %c0_124] : memref<8x8x512xf32, #tpu.memory_space<vmem>>, vector<1x8x512xf32>
    %393 = vector.shape_cast %392 : vector<1x8x512xf32> to vector<8x512xf32>
    %c0_125 = arith.constant 0 : index
    %c0_126 = arith.constant 0 : index
    %394 = vector.load %arg3[%c0_125, %c0_126] : memref<128x512xf32, #tpu.memory_space<vmem>>, vector<128x512xf32>
    %cst_127 = arith.constant dense<0.000000e+00> : vector<8x512xf32>
    %395 = tpu.matmul %359, %394, %cst_127 {dimension_numbers = #tpu.dot_dimension_numbers<[1], [0], [0], [1], [0, 0, 1, 1], [], []>} : vector<8x128xf32>, vector<128x512xf32>, vector<8x512xf32> -> vector<8x512xf32>
    %396 = arith.addf %393, %395 : vector<8x512xf32>
    %397 = vector.extract_strided_slice %396 {offsets = [0, 0], sizes = [8, 128], strides = [1, 1]} : vector<8x512xf32> to vector<8x128xf32>
    %398 = arith.negf %397 : vector<8x128xf32>
    %399 = math.exp %398 : vector<8x128xf32>
    %cst_128 = arith.constant 1.000000e+00 : f32
    %400 = vector.broadcast %cst_128 : f32 to vector<8x128xf32>
    %401 = arith.addf %400, %399 : vector<8x128xf32>
    %402 = arith.divf %400, %401 : vector<8x128xf32>
    %403 = vector.extract_strided_slice %396 {offsets = [0, 128], sizes = [8, 128], strides = [1, 1]} : vector<8x512xf32> to vector<8x128xf32>
    %404 = arith.negf %403 : vector<8x128xf32>
    %405 = math.exp %404 : vector<8x128xf32>
    %cst_129 = arith.constant 1.000000e+00 : f32
    %406 = vector.broadcast %cst_129 : f32 to vector<8x128xf32>
    %407 = arith.addf %406, %405 : vector<8x128xf32>
    %408 = arith.divf %406, %407 : vector<8x128xf32>
    %409 = vector.extract_strided_slice %396 {offsets = [0, 256], sizes = [8, 128], strides = [1, 1]} : vector<8x512xf32> to vector<8x128xf32>
    %410 = math.tanh %409 : vector<8x128xf32>
    %411 = vector.extract_strided_slice %396 {offsets = [0, 384], sizes = [8, 128], strides = [1, 1]} : vector<8x512xf32> to vector<8x128xf32>
    %412 = arith.negf %411 : vector<8x128xf32>
    %413 = math.exp %412 : vector<8x128xf32>
    %cst_130 = arith.constant 1.000000e+00 : f32
    %414 = vector.broadcast %cst_130 : f32 to vector<8x128xf32>
    %415 = arith.addf %414, %413 : vector<8x128xf32>
    %416 = arith.divf %414, %415 : vector<8x128xf32>
    %417 = arith.mulf %408, %357 : vector<8x128xf32>
    %418 = arith.mulf %402, %410 : vector<8x128xf32>
    %419 = arith.addf %417, %418 : vector<8x128xf32>
    %420 = math.tanh %419 : vector<8x128xf32>
    %421 = arith.mulf %416, %420 : vector<8x128xf32>
    %c0_131 = arith.constant 0 : index
    %c0_132 = arith.constant 0 : index
    %422 = vector.load %arg5[%c0_131, %c0_132] : memref<128x512xf32, #tpu.memory_space<vmem>>, vector<128x512xf32>
    %cst_133 = arith.constant dense<0.000000e+00> : vector<8x512xf32>
    %423 = tpu.matmul %421, %422, %cst_133 {dimension_numbers = #tpu.dot_dimension_numbers<[1], [0], [0], [1], [0, 0, 1, 1], [], []>} : vector<8x128xf32>, vector<128x512xf32>, vector<8x512xf32> -> vector<8x512xf32>
    %c0_134 = arith.constant 0 : index
    %c0_135 = arith.constant 0 : index
    %424 = vector.load %arg6[%c0_134, %c0_135] : memref<128x512xf32, #tpu.memory_space<vmem>>, vector<128x512xf32>
    %cst_136 = arith.constant dense<0.000000e+00> : vector<8x512xf32>
    %425 = tpu.matmul %390, %424, %cst_136 {dimension_numbers = #tpu.dot_dimension_numbers<[1], [0], [0], [1], [0, 0, 1, 1], [], []>} : vector<8x128xf32>, vector<128x512xf32>, vector<8x512xf32> -> vector<8x512xf32>
    %426 = arith.addf %423, %425 : vector<8x512xf32>
    %427 = arith.addf %426, %14 : vector<8x512xf32>
    %428 = vector.extract_strided_slice %427 {offsets = [0, 0], sizes = [8, 128], strides = [1, 1]} : vector<8x512xf32> to vector<8x128xf32>
    %429 = arith.negf %428 : vector<8x128xf32>
    %430 = math.exp %429 : vector<8x128xf32>
    %cst_137 = arith.constant 1.000000e+00 : f32
    %431 = vector.broadcast %cst_137 : f32 to vector<8x128xf32>
    %432 = arith.addf %431, %430 : vector<8x128xf32>
    %433 = arith.divf %431, %432 : vector<8x128xf32>
    %434 = vector.extract_strided_slice %427 {offsets = [0, 128], sizes = [8, 128], strides = [1, 1]} : vector<8x512xf32> to vector<8x128xf32>
    %435 = arith.negf %434 : vector<8x128xf32>
    %436 = math.exp %435 : vector<8x128xf32>
    %cst_138 = arith.constant 1.000000e+00 : f32
    %437 = vector.broadcast %cst_138 : f32 to vector<8x128xf32>
    %438 = arith.addf %437, %436 : vector<8x128xf32>
    %439 = arith.divf %437, %438 : vector<8x128xf32>
    %440 = vector.extract_strided_slice %427 {offsets = [0, 256], sizes = [8, 128], strides = [1, 1]} : vector<8x512xf32> to vector<8x128xf32>
    %441 = math.tanh %440 : vector<8x128xf32>
    %442 = vector.extract_strided_slice %427 {offsets = [0, 384], sizes = [8, 128], strides = [1, 1]} : vector<8x512xf32> to vector<8x128xf32>
    %443 = arith.negf %442 : vector<8x128xf32>
    %444 = math.exp %443 : vector<8x128xf32>
    %cst_139 = arith.constant 1.000000e+00 : f32
    %445 = vector.broadcast %cst_139 : f32 to vector<8x128xf32>
    %446 = arith.addf %445, %444 : vector<8x128xf32>
    %447 = arith.divf %445, %446 : vector<8x128xf32>
    %448 = arith.mulf %439, %388 : vector<8x128xf32>
    %449 = arith.mulf %433, %441 : vector<8x128xf32>
    %450 = arith.addf %448, %449 : vector<8x128xf32>
    %451 = math.tanh %450 : vector<8x128xf32>
    %452 = arith.mulf %447, %451 : vector<8x128xf32>
    %c7_i32 = arith.constant 7 : i32
    %453 = arith.index_cast %c7_i32 : i32 to index
    %c0_140 = arith.constant 0 : index
    %c0_141 = arith.constant 0 : index
    %454 = vector.load %arg16[%453, %c0_140, %c0_141] : memref<8x8x512xf32, #tpu.memory_space<vmem>>, vector<1x8x512xf32>
    %455 = vector.shape_cast %454 : vector<1x8x512xf32> to vector<8x512xf32>
    %c0_142 = arith.constant 0 : index
    %c0_143 = arith.constant 0 : index
    %456 = vector.load %arg3[%c0_142, %c0_143] : memref<128x512xf32, #tpu.memory_space<vmem>>, vector<128x512xf32>
    %cst_144 = arith.constant dense<0.000000e+00> : vector<8x512xf32>
    %457 = tpu.matmul %421, %456, %cst_144 {dimension_numbers = #tpu.dot_dimension_numbers<[1], [0], [0], [1], [0, 0, 1, 1], [], []>} : vector<8x128xf32>, vector<128x512xf32>, vector<8x512xf32> -> vector<8x512xf32>
    %458 = arith.addf %455, %457 : vector<8x512xf32>
    %459 = vector.extract_strided_slice %458 {offsets = [0, 0], sizes = [8, 128], strides = [1, 1]} : vector<8x512xf32> to vector<8x128xf32>
    %460 = arith.negf %459 : vector<8x128xf32>
    %461 = math.exp %460 : vector<8x128xf32>
    %cst_145 = arith.constant 1.000000e+00 : f32
    %462 = vector.broadcast %cst_145 : f32 to vector<8x128xf32>
    %463 = arith.addf %462, %461 : vector<8x128xf32>
    %464 = arith.divf %462, %463 : vector<8x128xf32>
    %465 = vector.extract_strided_slice %458 {offsets = [0, 128], sizes = [8, 128], strides = [1, 1]} : vector<8x512xf32> to vector<8x128xf32>
    %466 = arith.negf %465 : vector<8x128xf32>
    %467 = math.exp %466 : vector<8x128xf32>
    %cst_146 = arith.constant 1.000000e+00 : f32
    %468 = vector.broadcast %cst_146 : f32 to vector<8x128xf32>
    %469 = arith.addf %468, %467 : vector<8x128xf32>
    %470 = arith.divf %468, %469 : vector<8x128xf32>
    %471 = vector.extract_strided_slice %458 {offsets = [0, 256], sizes = [8, 128], strides = [1, 1]} : vector<8x512xf32> to vector<8x128xf32>
    %472 = math.tanh %471 : vector<8x128xf32>
    %473 = vector.extract_strided_slice %458 {offsets = [0, 384], sizes = [8, 128], strides = [1, 1]} : vector<8x512xf32> to vector<8x128xf32>
    %474 = arith.negf %473 : vector<8x128xf32>
    %475 = math.exp %474 : vector<8x128xf32>
    %cst_147 = arith.constant 1.000000e+00 : f32
    %476 = vector.broadcast %cst_147 : f32 to vector<8x128xf32>
    %477 = arith.addf %476, %475 : vector<8x128xf32>
    %478 = arith.divf %476, %477 : vector<8x128xf32>
    %479 = arith.mulf %470, %419 : vector<8x128xf32>
    %480 = arith.mulf %464, %472 : vector<8x128xf32>
    %481 = arith.addf %479, %480 : vector<8x128xf32>
    %482 = math.tanh %481 : vector<8x128xf32>
    %483 = arith.mulf %478, %482 : vector<8x128xf32>
    %c0_148 = arith.constant 0 : index
    %c0_149 = arith.constant 0 : index
    %484 = vector.load %arg5[%c0_148, %c0_149] : memref<128x512xf32, #tpu.memory_space<vmem>>, vector<128x512xf32>
    %cst_150 = arith.constant dense<0.000000e+00> : vector<8x512xf32>
    %485 = tpu.matmul %483, %484, %cst_150 {dimension_numbers = #tpu.dot_dimension_numbers<[1], [0], [0], [1], [0, 0, 1, 1], [], []>} : vector<8x128xf32>, vector<128x512xf32>, vector<8x512xf32> -> vector<8x512xf32>
    %c0_151 = arith.constant 0 : index
    %c0_152 = arith.constant 0 : index
    %486 = vector.load %arg6[%c0_151, %c0_152] : memref<128x512xf32, #tpu.memory_space<vmem>>, vector<128x512xf32>
    %cst_153 = arith.constant dense<0.000000e+00> : vector<8x512xf32>
    %487 = tpu.matmul %452, %486, %cst_153 {dimension_numbers = #tpu.dot_dimension_numbers<[1], [0], [0], [1], [0, 0, 1, 1], [], []>} : vector<8x128xf32>, vector<128x512xf32>, vector<8x512xf32> -> vector<8x512xf32>
    %488 = arith.addf %485, %487 : vector<8x512xf32>
    %489 = arith.addf %488, %14 : vector<8x512xf32>
    %490 = vector.extract_strided_slice %489 {offsets = [0, 0], sizes = [8, 128], strides = [1, 1]} : vector<8x512xf32> to vector<8x128xf32>
    %491 = arith.negf %490 : vector<8x128xf32>
    %492 = math.exp %491 : vector<8x128xf32>
    %cst_154 = arith.constant 1.000000e+00 : f32
    %493 = vector.broadcast %cst_154 : f32 to vector<8x128xf32>
    %494 = arith.addf %493, %492 : vector<8x128xf32>
    %495 = arith.divf %493, %494 : vector<8x128xf32>
    %496 = vector.extract_strided_slice %489 {offsets = [0, 128], sizes = [8, 128], strides = [1, 1]} : vector<8x512xf32> to vector<8x128xf32>
    %497 = arith.negf %496 : vector<8x128xf32>
    %498 = math.exp %497 : vector<8x128xf32>
    %cst_155 = arith.constant 1.000000e+00 : f32
    %499 = vector.broadcast %cst_155 : f32 to vector<8x128xf32>
    %500 = arith.addf %499, %498 : vector<8x128xf32>
    %501 = arith.divf %499, %500 : vector<8x128xf32>
    %502 = vector.extract_strided_slice %489 {offsets = [0, 256], sizes = [8, 128], strides = [1, 1]} : vector<8x512xf32> to vector<8x128xf32>
    %503 = math.tanh %502 : vector<8x128xf32>
    %504 = vector.extract_strided_slice %489 {offsets = [0, 384], sizes = [8, 128], strides = [1, 1]} : vector<8x512xf32> to vector<8x128xf32>
    %505 = arith.negf %504 : vector<8x128xf32>
    %506 = math.exp %505 : vector<8x128xf32>
    %cst_156 = arith.constant 1.000000e+00 : f32
    %507 = vector.broadcast %cst_156 : f32 to vector<8x128xf32>
    %508 = arith.addf %507, %506 : vector<8x128xf32>
    %509 = arith.divf %507, %508 : vector<8x128xf32>
    %510 = arith.mulf %501, %450 : vector<8x128xf32>
    %511 = arith.mulf %495, %503 : vector<8x128xf32>
    %512 = arith.addf %510, %511 : vector<8x128xf32>
    %513 = math.tanh %512 : vector<8x128xf32>
    %514 = arith.mulf %509, %513 : vector<8x128xf32>
    %c8_i32 = arith.constant 8 : i32
    %c0_157 = arith.constant 0 : index
    %c0_158 = arith.constant 0 : index
    %515 = vector.load %arg12[%c0_157, %c0_158] : memref<8x128xf32, #tpu.memory_space<vmem>>, vector<8x128xf32>
    tpu.vector_store %arg12[%c0_157, %c0_158], %483 {strides = array<i32>} : memref<8x128xf32, #tpu.memory_space<vmem>>, vector<8x128xf32>,
    %c0_159 = arith.constant 0 : index
    %c0_160 = arith.constant 0 : index
    %516 = vector.load %arg13[%c0_159, %c0_160] : memref<8x128xf32, #tpu.memory_space<vmem>>, vector<8x128xf32>
    tpu.vector_store %arg13[%c0_159, %c0_160], %481 {strides = array<i32>} : memref<8x128xf32, #tpu.memory_space<vmem>>, vector<8x128xf32>,
    %c0_161 = arith.constant 0 : index
    %c0_162 = arith.constant 0 : index
    %517 = vector.load %arg14[%c0_161, %c0_162] : memref<8x128xf32, #tpu.memory_space<vmem>>, vector<8x128xf32>
    tpu.vector_store %arg14[%c0_161, %c0_162], %514 {strides = array<i32>} : memref<8x128xf32, #tpu.memory_space<vmem>>, vector<8x128xf32>,
    %c0_163 = arith.constant 0 : index
    %c0_164 = arith.constant 0 : index
    %518 = vector.load %arg15[%c0_163, %c0_164] : memref<8x128xf32, #tpu.memory_space<vmem>>, vector<8x128xf32>
    tpu.vector_store %arg15[%c0_163, %c0_164], %512 {strides = array<i32>} : memref<8x128xf32, #tpu.memory_space<vmem>>, vector<8x128xf32>,
    return
  }
  func.func @transform_0(%arg0: i32) -> (i32, i32, i32) {
    %c0_i32 = arith.constant 0 : i32
    %c0_i32_0 = arith.constant 0 : i32
    %c0_i32_1 = arith.constant 0 : i32
    return %arg0, %c0_i32, %c0_i32_0 : i32, i32, i32
  }
  func.func @transform_1(%arg0: i32) -> (i32, i32) {
    %c0_i32 = arith.constant 0 : i32
    %c0_i32_0 = arith.constant 0 : i32
    %c0_i32_1 = arith.constant 0 : i32
    return %c0_i32, %c0_i32_0 : i32, i32
  }
  func.func @transform_2(%arg0: i32) -> (i32, i32) {
    %c0_i32 = arith.constant 0 : i32
    %c0_i32_0 = arith.constant 0 : i32
    %c0_i32_1 = arith.constant 0 : i32
    return %c0_i32, %c0_i32_0 : i32, i32
  }
  func.func @transform_3(%arg0: i32) -> (i32, i32) {
    %c0_i32 = arith.constant 0 : i32
    %c0_i32_0 = arith.constant 0 : i32
    %c0_i32_1 = arith.constant 0 : i32
    return %c0_i32, %c0_i32_0 : i32, i32
  }
  func.func @transform_4(%arg0: i32) -> (i32, i32) {
    %c0_i32 = arith.constant 0 : i32
    %c0_i32_0 = arith.constant 0 : i32
    %c0_i32_1 = arith.constant 0 : i32
    return %c0_i32, %c0_i32_0 : i32, i32
  }
  func.func @transform_5(%arg0: i32) -> (i32, i32) {
    %c0_i32 = arith.constant 0 : i32
    %c0_i32_0 = arith.constant 0 : i32
    %c0_i32_1 = arith.constant 0 : i32
    return %c0_i32, %c0_i32_0 : i32, i32
  }
  func.func @transform_6(%arg0: i32) -> (i32, i32) {
    %c0_i32 = arith.constant 0 : i32
    %c0_i32_0 = arith.constant 0 : i32
    %c0_i32_1 = arith.constant 0 : i32
    return %c0_i32, %c0_i32_0 : i32, i32
  }
  func.func @transform_7(%arg0: i32) -> (i32, i32) {
    %c0_i32 = arith.constant 0 : i32
    %c0_i32_0 = arith.constant 0 : i32
    %c0_i32_1 = arith.constant 0 : i32
    return %c0_i32, %c0_i32_0 : i32, i32
  }
  func.func @transform_8(%arg0: i32) -> (i32, i32) {
    %c0_i32 = arith.constant 0 : i32
    %c0_i32_0 = arith.constant 0 : i32
    %c0_i32_1 = arith.constant 0 : i32
    return %c0_i32, %c0_i32_0 : i32, i32
  }
  func.func @transform_9(%arg0: i32) -> (i32, i32) {
    %c0_i32 = arith.constant 0 : i32
    %c0_i32_0 = arith.constant 0 : i32
    %c0_i32_1 = arith.constant 0 : i32
    return %c0_i32, %c0_i32_0 : i32, i32
  }
  func.func @transform_10(%arg0: i32) -> (i32, i32) {
    %c0_i32 = arith.constant 0 : i32
    %c0_i32_0 = arith.constant 0 : i32
    %c0_i32_1 = arith.constant 0 : i32
    return %c0_i32, %c0_i32_0 : i32, i32
  }
  func.func @transform_11(%arg0: i32) -> (i32, i32) {
    %c0_i32 = arith.constant 0 : i32
    %c0_i32_0 = arith.constant 0 : i32
    %c0_i32_1 = arith.constant 0 : i32
    return %c0_i32, %c0_i32_0 : i32, i32
  }
  func.func @transform_12(%arg0: i32) -> (i32, i32) {
    %c0_i32 = arith.constant 0 : i32
    %c0_i32_0 = arith.constant 0 : i32
    %c0_i32_1 = arith.constant 0 : i32
    return %c0_i32, %c0_i32_0 : i32, i32
  }
  func.func @transform_13(%arg0: i32) -> (i32, i32) {
    %c0_i32 = arith.constant 0 : i32
    %c0_i32_0 = arith.constant 0 : i32
    %c0_i32_1 = arith.constant 0 : i32
    return %c0_i32, %c0_i32_0 : i32, i32
  }
  func.func @transform_14(%arg0: i32) -> (i32, i32) {
    %c0_i32 = arith.constant 0 : i32
    %c0_i32_0 = arith.constant 0 : i32
    %c0_i32_1 = arith.constant 0 : i32
    return %c0_i32, %c0_i32_0 : i32, i32
  }
}

</mosaic_0001>

<llo_original>
// kernel: rnn_model_forward.3
$region0: #{rnn_model_forward.3}
  #allocation0 [shape = 'u32[]', space=smem, size = 0x4, offset = 0x4, fixed_abs, tag = 'smem constant byte address 0x4 - core index']
  #allocation1 [shape = 'u32[72,128]{1,0:T(1,128)}', space=vmem, size = 0x9000, scoped, tag = 'internal scratch']
  %s0 = inlined_call_operand.vmem [shape: f32[8,128], index: 0, kind: input, shape index: {}]
  %s1 = inlined_call_operand.vmem [shape: f32[128,128], index: 1, kind: input, shape index: {}]
  %s2 = inlined_call_operand.vmem [shape: f32[1,128], index: 2, kind: input, shape index: {}]
  %s3 = inlined_call_operand.vmem [shape: f32[8,128], index: 3, kind: output, shape index: {}]
  %s4 = sld [smem:[#allocation0]]
  $region22: #{rnn_model_forward.3} parent=0
    _
  %s6 = ssub.s32 1, %s4
  %s7 = scalar_select 0, %s6, %s4
  // Predicated region
  $region2: #{rnn_model_forward.3} parent=0 // pred_check
    _
  $region3: #{rnn_model_forward.3} parent=0 // pred_check_branch
    %9 = sbr.rel (0) target = $region5
  $region4: #{rnn_model_forward.3} parent=0 // pred_region
    _
  $region5: #{rnn_model_forward.3} parent=0 // pred_fallthru
    _
  // Predicated region
  $region6: #{rnn_model_forward.3} parent=0 // pred_check
    _
  $region7: #{rnn_model_forward.3} parent=0 // pred_check_branch
    %11 = sbr.rel (0) target = $region9
  $region8: #{rnn_model_forward.3} parent=0 // pred_region
    _
  $region9: #{rnn_model_forward.3} parent=0 // pred_fallthru
    _
  // Predicated region
  $region10: #{rnn_model_forward.3} parent=0 // pred_check
    _
  $region11: #{rnn_model_forward.3} parent=0 // pred_check_branch
    %13 = sbr.rel (0) target = $region13
  $region12: #{rnn_model_forward.3} parent=0 // pred_region
    _
  $region13: #{rnn_model_forward.3} parent=0 // pred_fallthru
    _
  %v14 = vld [vmem:[%s0] sm:$0xff]
  %v15 = vld [vmem:[%s1] sm:$0xff]
  %v16 = vld [vmem:[%s1 + $0x8] sm:$0xff]
  %v17 = vld [vmem:[%s1 + $0x10] sm:$0xff]
  %v18 = vld [vmem:[%s1 + $0x18] sm:$0xff]
  %v19 = vld [vmem:[%s1 + $0x20] sm:$0xff]
  %v20 = vld [vmem:[%s1 + $0x28] sm:$0xff]
  %v21 = vld [vmem:[%s1 + $0x30] sm:$0xff]
  %v22 = vld [vmem:[%s1 + $0x38] sm:$0xff]
  %v23 = vld [vmem:[%s1 + $0x40] sm:$0xff]
  %v24 = vld [vmem:[%s1 + $0x48] sm:$0xff]
  %v25 = vld [vmem:[%s1 + $0x50] sm:$0xff]
  %v26 = vld [vmem:[%s1 + $0x58] sm:$0xff]
  %v27 = vld [vmem:[%s1 + $0x60] sm:$0xff]
  %v28 = vld [vmem:[%s1 + $0x68] sm:$0xff]
  %v29 = vld [vmem:[%s1 + $0x70] sm:$0xff]
  %v30 = vld [vmem:[%s1 + $0x78] sm:$0xff]
  %v31 = vld [vmem:[%s2] sm:$0x1]
  %v33 = vperm.slane %v31, 0
  %35 = vmatpush.msra.mxu0 %v30
  %36 = vmatpush.msra.mxu0 %v29
  %37 = vmatpush.msra.mxu0 %v28
  %38 = vmatpush.msra.mxu0 %v27
  %39 = vmatpush.msra.mxu0 %v26
  %40 = vmatpush.msra.mxu0 %v25
  %41 = vmatpush.msra.mxu0 %v24
  %42 = vmatpush.msra.mxu0 %v23
  %43 = vmatpush.msra.mxu0 %v22
  %44 = vmatpush.msra.mxu0 %v21
  %45 = vmatpush.msra.mxu0 %v20
  %46 = vmatpush.msra.mxu0 %v19
  %47 = vmatpush.msra.mxu0 %v18
  %48 = vmatpush.msra.mxu0 %v17
  %49 = vmatpush.msra.mxu0 %v16
  %50 = vmatpush.msra.mxu0 %v15
  %51 = vmatmul.f32.gmra.mxu0 %v14
  %v52 = vpop.f32.mrf.mxu0
  %v53 = vadd.f32 %v33, %v52
  %54 = vdwg.mxu0
  %55 = vst [vmem:[%s3] sm:$0xff] %v53
  // Predicated region
  $region14: #{rnn_model_forward.3} parent=0 // pred_check
    _
  $region15: #{rnn_model_forward.3} parent=0 // pred_check_branch
    %57 = sbr.rel (0) target = $region17
  $region16: #{rnn_model_forward.3} parent=0 // pred_region
    _
  $region17: #{rnn_model_forward.3} parent=0 // pred_fallthru
    _
  // Predicated region
  $region18: #{rnn_model_forward.3} parent=0 // pred_check
    _
  $region19: #{rnn_model_forward.3} parent=0 // pred_check_branch
    %59 = sbr.rel (0) target = $region21
  $region20: #{rnn_model_forward.3} parent=0 // pred_region
    _
  $region21: #{rnn_model_forward.3} parent=0 // pred_fallthru
    _

// kernel: rnn_model_forward.2
$region0: #{rnn_model_forward.2}
  #allocation0 [shape = 'u32[]', space=smem, size = 0x4, offset = 0x4, fixed_abs, tag = 'smem constant byte address 0x4 - core index']
  #allocation1 [shape = 'u32[72,128]{1,0:T(1,128)}', space=vmem, size = 0x9000, scoped, tag = 'internal scratch']
  #allocation2 [shape = 'f32[8,8,512]{2,1,0:T(8,128)}', space=vmem, size = 0x20000, scoped, tag = 'scratch operand']
  %s0 = inlined_call_operand.vmem [shape: f32[8,8,128], index: 0, kind: input, shape index: {}]
  %s1 = inlined_call_operand.vmem [shape: f32[128,512], index: 1, kind: input, shape index: {}]
  %s2 = inlined_call_operand.vmem [shape: f32[128,512], index: 2, kind: input, shape index: {}]
  %s3 = inlined_call_operand.vmem [shape: f32[1,512], index: 3, kind: input, shape index: {}]
  %s4 = inlined_call_operand.vmem [shape: f32[128,512], index: 4, kind: input, shape index: {}]
  %s5 = inlined_call_operand.vmem [shape: f32[128,512], index: 5, kind: input, shape index: {}]
  %s6 = inlined_call_operand.vmem [shape: f32[1,512], index: 6, kind: input, shape index: {}]
  %s7 = inlined_call_operand.vmem [shape: f32[8,128], index: 7, kind: input, shape index: {}]
  %s8 = inlined_call_operand.vmem [shape: f32[8,128], index: 8, kind: input, shape index: {}]
  %s9 = inlined_call_operand.vmem [shape: f32[8,128], index: 9, kind: input, shape index: {}]
  %s10 = inlined_call_operand.vmem [shape: f32[8,128], index: 10, kind: input, shape index: {}]
  %s11 = inlined_call_operand.vmem [shape: f32[8,128], index: 11, kind: output, shape index: {0}]
  %s12 = inlined_call_operand.vmem [shape: f32[8,128], index: 12, kind: output, shape index: {1}]
  %s13 = inlined_call_operand.vmem [shape: f32[8,128], index: 13, kind: output, shape index: {2}]
  %s14 = inlined_call_operand.vmem [shape: f32[8,128], index: 14, kind: output, shape index: {3}]
  %15 = xla_tuple %s11, %s12, %s13, %s14
  %s16 = sld [smem:[#allocation0]]
  $region82: #{rnn_model_forward.2} parent=0
    _
  %s18 = ssub.s32 1, %s16
  %s19 = scalar_select 0, %s18, %s16
  // Predicated region
  $region2: #{rnn_model_forward.2} parent=0 // pred_check
    _
  $region3: #{rnn_model_forward.2} parent=0 // pred_check_branch
    %21 = sbr.rel (0) target = $region5
  $region4: #{rnn_model_forward.2} parent=0 // pred_region
    _
  $region5: #{rnn_model_forward.2} parent=0 // pred_fallthru
    _
  // Predicated region
  $region6: #{rnn_model_forward.2} parent=0 // pred_check
    _
  $region7: #{rnn_model_forward.2} parent=0 // pred_check_branch
    %23 = sbr.rel (0) target = $region9
  $region8: #{rnn_model_forward.2} parent=0 // pred_region
    _
  $region9: #{rnn_model_forward.2} parent=0 // pred_fallthru
    _
  // Predicated region
  $region10: #{rnn_model_forward.2} parent=0 // pred_check
    _
  $region11: #{rnn_model_forward.2} parent=0 // pred_check_branch
    %25 = sbr.rel (0) target = $region13
  $region12: #{rnn_model_forward.2} parent=0 // pred_region
    _
  $region13: #{rnn_model_forward.2} parent=0 // pred_fallthru
    _
  // Predicated region
  $region14: #{rnn_model_forward.2} parent=0 // pred_check
    _
  $region15: #{rnn_model_forward.2} parent=0 // pred_check_branch
    %27 = sbr.rel (0) target = $region17
  $region16: #{rnn_model_forward.2} parent=0 // pred_region
    _
  $region17: #{rnn_model_forward.2} parent=0 // pred_fallthru
    _
  // Predicated region
  $region18: #{rnn_model_forward.2} parent=0 // pred_check
    _
  $region19: #{rnn_model_forward.2} parent=0 // pred_check_branch
    %29 = sbr.rel (0) target = $region21
  $region20: #{rnn_model_forward.2} parent=0 // pred_region
    _
  $region21: #{rnn_model_forward.2} parent=0 // pred_fallthru
    _
  // Predicated region
  $region22: #{rnn_model_forward.2} parent=0 // pred_check
    _
  $region23: #{rnn_model_forward.2} parent=0 // pred_check_branch
    %31 = sbr.rel (0) target = $region25
  $region24: #{rnn_model_forward.2} parent=0 // pred_region
    _
  $region25: #{rnn_model_forward.2} parent=0 // pred_fallthru
    _
  // Predicated region
  $region26: #{rnn_model_forward.2} parent=0 // pred_check
    _
  $region27: #{rnn_model_forward.2} parent=0 // pred_check_branch
    %33 = sbr.rel (0) target = $region29
  $region28: #{rnn_model_forward.2} parent=0 // pred_region
    _
  $region29: #{rnn_model_forward.2} parent=0 // pred_fallthru
    _
  // Predicated region
  $region30: #{rnn_model_forward.2} parent=0 // pred_check
    _
  $region31: #{rnn_model_forward.2} parent=0 // pred_check_branch
    %35 = sbr.rel (0) target = $region33
  $region32: #{rnn_model_forward.2} parent=0 // pred_region
    _
  $region33: #{rnn_model_forward.2} parent=0 // pred_fallthru
    _
  // Predicated region
  $region34: #{rnn_model_forward.2} parent=0 // pred_check
    _
  $region35: #{rnn_model_forward.2} parent=0 // pred_check_branch
    %37 = sbr.rel (0) target = $region37
  $region36: #{rnn_model_forward.2} parent=0 // pred_region
    _
  $region37: #{rnn_model_forward.2} parent=0 // pred_fallthru
    _
  // Predicated region
  $region38: #{rnn_model_forward.2} parent=0 // pred_check
    _
  $region39: #{rnn_model_forward.2} parent=0 // pred_check_branch
    %39 = sbr.rel (0) target = $region41
  $region40: #{rnn_model_forward.2} parent=0 // pred_region
    _
  $region41: #{rnn_model_forward.2} parent=0 // pred_fallthru
    _
  // Predicated region
  $region42: #{rnn_model_forward.2} parent=0 // pred_check
    _
  $region43: #{rnn_model_forward.2} parent=0 // pred_check_branch
    %41 = sbr.rel (0) target = $region45
  $region44: #{rnn_model_forward.2} parent=0 // pred_region
    _
  $region45: #{rnn_model_forward.2} parent=0 // pred_fallthru
    _
  %p42 = scmp.eq.s32.totalorder 0, 0
  // Predicated region
  $region46: #{rnn_model_forward.2} parent=0 // pred_check
    %p43 = pneg %p42
  $region47: #{rnn_model_forward.2} parent=0 // pred_check_branch
    %45 = sbr.rel (%p43) target = $region49
  $region48: #{rnn_model_forward.2} parent=0 // pred_region
    %v46 = vld [vmem:[%s7] sm:$0xff]
    %47 = vst [vmem:[%s11] sm:$0xff] %v46
    %v48 = vld [vmem:[%s8] sm:$0xff]
    %49 = vst [vmem:[%s12] sm:$0xff] %v48
    %v50 = vld [vmem:[%s9] sm:$0xff]
    %51 = vst [vmem:[%s13] sm:$0xff] %v50
    %v52 = vld [vmem:[%s10] sm:$0xff]
    %53 = vst [vmem:[%s14] sm:$0xff] %v52
  $region49: #{rnn_model_forward.2} parent=0 // pred_fallthru
    _
  %v54 = vld [vmem:[%s0] sm:$0xff]
  %v55 = vld [vmem:[%s0 + $0x8] sm:$0xff]
  %v56 = vld [vmem:[%s0 + $0x10] sm:$0xff]
  %v57 = vld [vmem:[%s0 + $0x18] sm:$0xff]
  %v58 = vld [vmem:[%s0 + $0x20] sm:$0xff]
  %v59 = vld [vmem:[%s0 + $0x28] sm:$0xff]
  %v60 = vld [vmem:[%s0 + $0x30] sm:$0xff]
  %v61 = vld [vmem:[%s0 + $0x38] sm:$0xff]
  %v62 = vld [vmem:[%s1] sm:$0xff]
  %v63 = vld [vmem:[%s1 + $0x8] sm:$0xff]
  %v64 = vld [vmem:[%s1 + $0x10] sm:$0xff]
  %v65 = vld [vmem:[%s1 + $0x18] sm:$0xff]
  %v66 = vld [vmem:[%s1 + $0x20] sm:$0xff]
  %v67 = vld [vmem:[%s1 + $0x28] sm:$0xff]
  %v68 = vld [vmem:[%s1 + $0x30] sm:$0xff]
  %v69 = vld [vmem:[%s1 + $0x38] sm:$0xff]
  %v70 = vld [vmem:[%s1 + $0x40] sm:$0xff]
  %v71 = vld [vmem:[%s1 + $0x48] sm:$0xff]
  %v72 = vld [vmem:[%s1 + $0x50] sm:$0xff]
  %v73 = vld [vmem:[%s1 + $0x58] sm:$0xff]
  %v74 = vld [vmem:[%s1 + $0x60] sm:$0xff]
  %v75 = vld [vmem:[%s1 + $0x68] sm:$0xff]
  %v76 = vld [vmem:[%s1 + $0x70] sm:$0xff]
  %v77 = vld [vmem:[%s1 + $0x78] sm:$0xff]
  %v78 = vld [vmem:[%s1 + $0x80] sm:$0xff]
  %v79 = vld [vmem:[%s1 + $0x88] sm:$0xff]
  %v80 = vld [vmem:[%s1 + $0x90] sm:$0xff]
  %v81 = vld [vmem:[%s1 + $0x98] sm:$0xff]
  %v82 = vld [vmem:[%s1 + $0xa0] sm:$0xff]
  %v83 = vld [vmem:[%s1 + $0xa8] sm:$0xff]
  %v84 = vld [vmem:[%s1 + $0xb0] sm:$0xff]
  %v85 = vld [vmem:[%s1 + $0xb8] sm:$0xff]
  %v86 = vld [vmem:[%s1 + $0xc0] sm:$0xff]
  %v87 = vld [vmem:[%s1 + $0xc8] sm:$0xff]
  %v88 = vld [vmem:[%s1 + $0xd0] sm:$0xff]
  %v89 = vld [vmem:[%s1 + $0xd8] sm:$0xff]
  %v90 = vld [vmem:[%s1 + $0xe0] sm:$0xff]
  %v91 = vld [vmem:[%s1 + $0xe8] sm:$0xff]
  %v92 = vld [vmem:[%s1 + $0xf0] sm:$0xff]
  %v93 = vld [vmem:[%s1 + $0xf8] sm:$0xff]
  %v94 = vld [vmem:[%s1 + $0x100] sm:$0xff]
  %v95 = vld [vmem:[%s1 + $0x108] sm:$0xff]
  %v96 = vld [vmem:[%s1 + $0x110] sm:$0xff]
  %v97 = vld [vmem:[%s1 + $0x118] sm:$0xff]
  %v98 = vld [vmem:[%s1 + $0x120] sm:$0xff]
  %v99 = vld [vmem:[%s1 + $0x128] sm:$0xff]
  %v100 = vld [vmem:[%s1 + $0x130] sm:$0xff]
  %v101 = vld [vmem:[%s1 + $0x138] sm:$0xff]
  %v102 = vld [vmem:[%s1 + $0x140] sm:$0xff]
  %v103 = vld [vmem:[%s1 + $0x148] sm:$0xff]
  %v104 = vld [vmem:[%s1 + $0x150] sm:$0xff]
  %v105 = vld [vmem:[%s1 + $0x158] sm:$0xff]
  %v106 = vld [vmem:[%s1 + $0x160] sm:$0xff]
  %v107 = vld [vmem:[%s1 + $0x168] sm:$0xff]
  %v108 = vld [vmem:[%s1 + $0x170] sm:$0xff]
  %v109 = vld [vmem:[%s1 + $0x178] sm:$0xff]
  %v110 = vld [vmem:[%s1 + $0x180] sm:$0xff]
  %v111 = vld [vmem:[%s1 + $0x188] sm:$0xff]
  %v112 = vld [vmem:[%s1 + $0x190] sm:$0xff]
  %v113 = vld [vmem:[%s1 + $0x198] sm:$0xff]
  %v114 = vld [vmem:[%s1 + $0x1a0] sm:$0xff]
  %v115 = vld [vmem:[%s1 + $0x1a8] sm:$0xff]
  %v116 = vld [vmem:[%s1 + $0x1b0] sm:$0xff]
  %v117 = vld [vmem:[%s1 + $0x1b8] sm:$0xff]
  %v118 = vld [vmem:[%s1 + $0x1c0] sm:$0xff]
  %v119 = vld [vmem:[%s1 + $0x1c8] sm:$0xff]
  %v120 = vld [vmem:[%s1 + $0x1d0] sm:$0xff]
  %v121 = vld [vmem:[%s1 + $0x1d8] sm:$0xff]
  %v122 = vld [vmem:[%s1 + $0x1e0] sm:$0xff]
  %v123 = vld [vmem:[%s1 + $0x1e8] sm:$0xff]
  %v124 = vld [vmem:[%s1 + $0x1f0] sm:$0xff]
  %v125 = vld [vmem:[%s1 + $0x1f8] sm:$0xff]
  %v126 = vld [vmem:[%s3] sm:$0xf]
  %v128 = vperm.slane %v126, 0
  %v129 = vperm.slane %v126, 1
  %v130 = vperm.slane %v126, 2
  %v131 = vperm.slane %v126, 3
  %136 = vmatpush.msra.mxu0 %v122
  %137 = vmatpush.msra.mxu0 %v118
  %138 = vmatpush.msra.mxu0 %v114
  %139 = vmatpush.msra.mxu0 %v110
  %140 = vmatpush.msra.mxu0 %v106
  %141 = vmatpush.msra.mxu0 %v102
  %142 = vmatpush.msra.mxu0 %v98
  %143 = vmatpush.msra.mxu0 %v94
  %144 = vmatpush.msra.mxu0 %v90
  %145 = vmatpush.msra.mxu0 %v86
  %146 = vmatpush.msra.mxu0 %v82
  %147 = vmatpush.msra.mxu0 %v78
  %148 = vmatpush.msra.mxu0 %v74
  %149 = vmatpush.msra.mxu0 %v70
  %150 = vmatpush.msra.mxu0 %v66
  %151 = vmatpush.msra.mxu0 %v62
  %152 = vmatmul.f32.gmra.mxu0 %v54
  %v153 = vpop.f32.mrf.mxu0
  %v154 = vadd.f32 %v128, %v153
  %155 = vmatmul.f32.gmra.mxu0 %v55
  %v156 = vpop.f32.mrf.mxu0
  %v157 = vadd.f32 %v128, %v156
  %158 = vmatmul.f32.gmra.mxu0 %v56
  %v159 = vpop.f32.mrf.mxu0
  %v160 = vadd.f32 %v128, %v159
  %161 = vmatmul.f32.gmra.mxu0 %v57
  %v162 = vpop.f32.mrf.mxu0
  %v163 = vadd.f32 %v128, %v162
  %164 = vmatmul.f32.gmra.mxu0 %v58
  %v165 = vpop.f32.mrf.mxu0
  %v166 = vadd.f32 %v128, %v165
  %167 = vmatmul.f32.gmra.mxu0 %v59
  %v168 = vpop.f32.mrf.mxu0
  %v169 = vadd.f32 %v128, %v168
  %170 = vmatmul.f32.gmra.mxu0 %v60
  %v171 = vpop.f32.mrf.mxu0
  %v172 = vadd.f32 %v128, %v171
  %173 = vmatmul.f32.gmra.mxu0 %v61
  %v174 = vpop.f32.mrf.mxu0
  %v175 = vadd.f32 %v128, %v174
  %176 = vdwg.mxu0
  %177 = vmatpush.msra.mxu0 %v123
  %178 = vmatpush.msra.mxu0 %v119
  %179 = vmatpush.msra.mxu0 %v115
  %180 = vmatpush.msra.mxu0 %v111
  %181 = vmatpush.msra.mxu0 %v107
  %182 = vmatpush.msra.mxu0 %v103
  %183 = vmatpush.msra.mxu0 %v99
  %184 = vmatpush.msra.mxu0 %v95
  %185 = vmatpush.msra.mxu0 %v91
  %186 = vmatpush.msra.mxu0 %v87
  %187 = vmatpush.msra.mxu0 %v83
  %188 = vmatpush.msra.mxu0 %v79
  %189 = vmatpush.msra.mxu0 %v75
  %190 = vmatpush.msra.mxu0 %v71
  %191 = vmatpush.msra.mxu0 %v67
  %192 = vmatpush.msra.mxu0 %v63
  %193 = vmatmul.f32.gmra.mxu0 %v54
  %v194 = vpop.f32.mrf.mxu0
  %v195 = vadd.f32 %v129, %v194
  %196 = vmatmul.f32.gmra.mxu0 %v55
  %v197 = vpop.f32.mrf.mxu0
  %v198 = vadd.f32 %v129, %v197
  %199 = vmatmul.f32.gmra.mxu0 %v56
  %v200 = vpop.f32.mrf.mxu0
  %v201 = vadd.f32 %v129, %v200
  %202 = vmatmul.f32.gmra.mxu0 %v57
  %v203 = vpop.f32.mrf.mxu0
  %v204 = vadd.f32 %v129, %v203
  %205 = vmatmul.f32.gmra.mxu0 %v58
  %v206 = vpop.f32.mrf.mxu0
  %v207 = vadd.f32 %v129, %v206
  %208 = vmatmul.f32.gmra.mxu0 %v59
  %v209 = vpop.f32.mrf.mxu0
  %v210 = vadd.f32 %v129, %v209
  %211 = vmatmul.f32.gmra.mxu0 %v60
  %v212 = vpop.f32.mrf.mxu0
  %v213 = vadd.f32 %v129, %v212
  %214 = vmatmul.f32.gmra.mxu0 %v61
  %v215 = vpop.f32.mrf.mxu0
  %v216 = vadd.f32 %v129, %v215
  %217 = vdwg.mxu0
  %218 = vmatpush.msra.mxu0 %v124
  %219 = vmatpush.msra.mxu0 %v120
  %220 = vmatpush.msra.mxu0 %v116
  %221 = vmatpush.msra.mxu0 %v112
  %222 = vmatpush.msra.mxu0 %v108
  %223 = vmatpush.msra.mxu0 %v104
  %224 = vmatpush.msra.mxu0 %v100
  %225 = vmatpush.msra.mxu0 %v96
  %226 = vmatpush.msra.mxu0 %v92
  %227 = vmatpush.msra.mxu0 %v88
  %228 = vmatpush.msra.mxu0 %v84
  %229 = vmatpush.msra.mxu0 %v80
  %230 = vmatpush.msra.mxu0 %v76
  %231 = vmatpush.msra.mxu0 %v72
  %232 = vmatpush.msra.mxu0 %v68
  %233 = vmatpush.msra.mxu0 %v64
  %234 = vmatmul.f32.gmra.mxu0 %v54
  %v235 = vpop.f32.mrf.mxu0
  %v236 = vadd.f32 %v130, %v235
  %237 = vmatmul.f32.gmra.mxu0 %v55
  %v238 = vpop.f32.mrf.mxu0
  %v239 = vadd.f32 %v130, %v238
  %240 = vmatmul.f32.gmra.mxu0 %v56
  %v241 = vpop.f32.mrf.mxu0
  %v242 = vadd.f32 %v130, %v241
  %243 = vmatmul.f32.gmra.mxu0 %v57
  %v244 = vpop.f32.mrf.mxu0
  %v245 = vadd.f32 %v130, %v244
  %246 = vmatmul.f32.gmra.mxu0 %v58
  %v247 = vpop.f32.mrf.mxu0
  %v248 = vadd.f32 %v130, %v247
  %249 = vmatmul.f32.gmra.mxu0 %v59
  %v250 = vpop.f32.mrf.mxu0
  %v251 = vadd.f32 %v130, %v250
  %252 = vmatmul.f32.gmra.mxu0 %v60
  %v253 = vpop.f32.mrf.mxu0
  %v254 = vadd.f32 %v130, %v253
  %255 = vmatmul.f32.gmra.mxu0 %v61
  %v256 = vpop.f32.mrf.mxu0
  %v257 = vadd.f32 %v130, %v256
  %258 = vdwg.mxu0
  %259 = vmatpush.msra.mxu0 %v125
  %260 = vmatpush.msra.mxu0 %v121
  %261 = vmatpush.msra.mxu0 %v117
  %262 = vmatpush.msra.mxu0 %v113
  %263 = vmatpush.msra.mxu0 %v109
  %264 = vmatpush.msra.mxu0 %v105
  %265 = vmatpush.msra.mxu0 %v101
  %266 = vmatpush.msra.mxu0 %v97
  %267 = vmatpush.msra.mxu0 %v93
  %268 = vmatpush.msra.mxu0 %v89
  %269 = vmatpush.msra.mxu0 %v85
  %270 = vmatpush.msra.mxu0 %v81
  %271 = vmatpush.msra.mxu0 %v77
  %272 = vmatpush.msra.mxu0 %v73
  %273 = vmatpush.msra.mxu0 %v69
  %274 = vmatpush.msra.mxu0 %v65
  %275 = vmatmul.f32.gmra.mxu0 %v54
  %v276 = vpop.f32.mrf.mxu0
  %v277 = vadd.f32 %v131, %v276
  %278 = vmatmul.f32.gmra.mxu0 %v55
  %v279 = vpop.f32.mrf.mxu0
  %v280 = vadd.f32 %v131, %v279
  %281 = vmatmul.f32.gmra.mxu0 %v56
  %v282 = vpop.f32.mrf.mxu0
  %v283 = vadd.f32 %v131, %v282
  %284 = vmatmul.f32.gmra.mxu0 %v57
  %v285 = vpop.f32.mrf.mxu0
  %v286 = vadd.f32 %v131, %v285
  %287 = vmatmul.f32.gmra.mxu0 %v58
  %v288 = vpop.f32.mrf.mxu0
  %v289 = vadd.f32 %v131, %v288
  %290 = vmatmul.f32.gmra.mxu0 %v59
  %v291 = vpop.f32.mrf.mxu0
  %v292 = vadd.f32 %v131, %v291
  %293 = vmatmul.f32.gmra.mxu0 %v60
  %v294 = vpop.f32.mrf.mxu0
  %v295 = vadd.f32 %v131, %v294
  %296 = vmatmul.f32.gmra.mxu0 %v61
  %v297 = vpop.f32.mrf.mxu0
  %v298 = vadd.f32 %v131, %v297
  %299 = vdwg.mxu0
  %300 = vst [vmem:[#allocation2] sm:$0xff] %v154
  %301 = vst [vmem:[#allocation2 + $0x8] sm:$0xff] %v195
  %302 = vst [vmem:[#allocation2 + $0x10] sm:$0xff] %v236
  %303 = vst [vmem:[#allocation2 + $0x18] sm:$0xff] %v277
  %304 = vst [vmem:[#allocation2 + $0x20] sm:$0xff] %v157
  %305 = vst [vmem:[#allocation2 + $0x28] sm:$0xff] %v198
  %306 = vst [vmem:[#allocation2 + $0x30] sm:$0xff] %v239
  %307 = vst [vmem:[#allocation2 + $0x38] sm:$0xff] %v280
  %308 = vst [vmem:[#allocation2 + $0x40] sm:$0xff] %v160
  %309 = vst [vmem:[#allocation2 + $0x48] sm:$0xff] %v201
  %310 = vst [vmem:[#allocation2 + $0x50] sm:$0xff] %v242
  %311 = vst [vmem:[#allocation2 + $0x58] sm:$0xff] %v283
  %312 = vst [vmem:[#allocation2 + $0x60] sm:$0xff] %v163
  %313 = vst [vmem:[#allocation2 + $0x68] sm:$0xff] %v204
  %314 = vst [vmem:[#allocation2 + $0x70] sm:$0xff] %v245
  %315 = vst [vmem:[#allocation2 + $0x78] sm:$0xff] %v286
  %316 = vst [vmem:[#allocation2 + $0x80] sm:$0xff] %v166
  %317 = vst [vmem:[#allocation2 + $0x88] sm:$0xff] %v207
  %318 = vst [vmem:[#allocation2 + $0x90] sm:$0xff] %v248
  %319 = vst [vmem:[#allocation2 + $0x98] sm:$0xff] %v289
  %320 = vst [vmem:[#allocation2 + $0xa0] sm:$0xff] %v169
  %321 = vst [vmem:[#allocation2 + $0xa8] sm:$0xff] %v210
  %322 = vst [vmem:[#allocation2 + $0xb0] sm:$0xff] %v251
  %323 = vst [vmem:[#allocation2 + $0xb8] sm:$0xff] %v292
  %324 = vst [vmem:[#allocation2 + $0xc0] sm:$0xff] %v172
  %325 = vst [vmem:[#allocation2 + $0xc8] sm:$0xff] %v213
  %326 = vst [vmem:[#allocation2 + $0xd0] sm:$0xff] %v254
  %327 = vst [vmem:[#allocation2 + $0xd8] sm:$0xff] %v295
  %328 = vst [vmem:[#allocation2 + $0xe0] sm:$0xff] %v175
  %329 = vst [vmem:[#allocation2 + $0xe8] sm:$0xff] %v216
  %330 = vst [vmem:[#allocation2 + $0xf0] sm:$0xff] %v257
  %331 = vst [vmem:[#allocation2 + $0xf8] sm:$0xff] %v298
  %v332 = vld [vmem:[%s6] sm:$0xf]
  %v334 = vperm.slane %v332, 0
  %v335 = vperm.slane %v332, 1
  %v336 = vperm.slane %v332, 2
  %v337 = vperm.slane %v332, 3
  %v342 = vld [vmem:[%s11] sm:$0xff]
  %v343 = vld [vmem:[%s12] sm:$0xff]
  %v344 = vld [vmem:[%s13] sm:$0xff]
  %v345 = vld [vmem:[%s14] sm:$0xff]
  %v346 = vld [vmem:[#allocation2] sm:$0xff]
  %v347 = vld [vmem:[#allocation2 + $0x8] sm:$0xff]
  %v348 = vld [vmem:[#allocation2 + $0x10] sm:$0xff]
  %v349 = vld [vmem:[#allocation2 + $0x18] sm:$0xff]
  %v350 = vld [vmem:[%s2] sm:$0xff]
  %v351 = vld [vmem:[%s2 + $0x8] sm:$0xff]
  %v352 = vld [vmem:[%s2 + $0x10] sm:$0xff]
  %v353 = vld [vmem:[%s2 + $0x18] sm:$0xff]
  %v354 = vld [vmem:[%s2 + $0x20] sm:$0xff]
  %v355 = vld [vmem:[%s2 + $0x28] sm:$0xff]
  %v356 = vld [vmem:[%s2 + $0x30] sm:$0xff]
  %v357 = vld [vmem:[%s2 + $0x38] sm:$0xff]
  %v358 = vld [vmem:[%s2 + $0x40] sm:$0xff]
  %v359 = vld [vmem:[%s2 + $0x48] sm:$0xff]
  %v360 = vld [vmem:[%s2 + $0x50] sm:$0xff]
  %v361 = vld [vmem:[%s2 + $0x58] sm:$0xff]
  %v362 = vld [vmem:[%s2 + $0x60] sm:$0xff]
  %v363 = vld [vmem:[%s2 + $0x68] sm:$0xff]
  %v364 = vld [vmem:[%s2 + $0x70] sm:$0xff]
  %v365 = vld [vmem:[%s2 + $0x78] sm:$0xff]
  %v366 = vld [vmem:[%s2 + $0x80] sm:$0xff]
  %v367 = vld [vmem:[%s2 + $0x88] sm:$0xff]
  %v368 = vld [vmem:[%s2 + $0x90] sm:$0xff]
  %v369 = vld [vmem:[%s2 + $0x98] sm:$0xff]
  %v370 = vld [vmem:[%s2 + $0xa0] sm:$0xff]
  %v371 = vld [vmem:[%s2 + $0xa8] sm:$0xff]
  %v372 = vld [vmem:[%s2 + $0xb0] sm:$0xff]
  %v373 = vld [vmem:[%s2 + $0xb8] sm:$0xff]
  %v374 = vld [vmem:[%s2 + $0xc0] sm:$0xff]
  %v375 = vld [vmem:[%s2 + $0xc8] sm:$0xff]
  %v376 = vld [vmem:[%s2 + $0xd0] sm:$0xff]
  %v377 = vld [vmem:[%s2 + $0xd8] sm:$0xff]
  %v378 = vld [vmem:[%s2 + $0xe0] sm:$0xff]
  %v379 = vld [vmem:[%s2 + $0xe8] sm:$0xff]
  %v380 = vld [vmem:[%s2 + $0xf0] sm:$0xff]
  %v381 = vld [vmem:[%s2 + $0xf8] sm:$0xff]
  %v382 = vld [vmem:[%s2 + $0x100] sm:$0xff]
  %v383 = vld [vmem:[%s2 + $0x108] sm:$0xff]
  %v384 = vld [vmem:[%s2 + $0x110] sm:$0xff]
  %v385 = vld [vmem:[%s2 + $0x118] sm:$0xff]
  %v386 = vld [vmem:[%s2 + $0x120] sm:$0xff]
  %v387 = vld [vmem:[%s2 + $0x128] sm:$0xff]
  %v388 = vld [vmem:[%s2 + $0x130] sm:$0xff]
  %v389 = vld [vmem:[%s2 + $0x138] sm:$0xff]
  %v390 = vld [vmem:[%s2 + $0x140] sm:$0xff]
  %v391 = vld [vmem:[%s2 + $0x148] sm:$0xff]
  %v392 = vld [vmem:[%s2 + $0x150] sm:$0xff]
  %v393 = vld [vmem:[%s2 + $0x158] sm:$0xff]
  %v394 = vld [vmem:[%s2 + $0x160] sm:$0xff]
  %v395 = vld [vmem:[%s2 + $0x168] sm:$0xff]
  %v396 = vld [vmem:[%s2 + $0x170] sm:$0xff]
  %v397 = vld [vmem:[%s2 + $0x178] sm:$0xff]
  %v398 = vld [vmem:[%s2 + $0x180] sm:$0xff]
  %v399 = vld [vmem:[%s2 + $0x188] sm:$0xff]
  %v400 = vld [vmem:[%s2 + $0x190] sm:$0xff]
  %v401 = vld [vmem:[%s2 + $0x198] sm:$0xff]
  %v402 = vld [vmem:[%s2 + $0x1a0] sm:$0xff]
  %v403 = vld [vmem:[%s2 + $0x1a8] sm:$0xff]
  %v404 = vld [vmem:[%s2 + $0x1b0] sm:$0xff]
  %v405 = vld [vmem:[%s2 + $0x1b8] sm:$0xff]
  %v406 = vld [vmem:[%s2 + $0x1c0] sm:$0xff]
  %v407 = vld [vmem:[%s2 + $0x1c8] sm:$0xff]
  %v408 = vld [vmem:[%s2 + $0x1d0] sm:$0xff]
  %v409 = vld [vmem:[%s2 + $0x1d8] sm:$0xff]
  %v410 = vld [vmem:[%s2 + $0x1e0] sm:$0xff]
  %v411 = vld [vmem:[%s2 + $0x1e8] sm:$0xff]
  %v412 = vld [vmem:[%s2 + $0x1f0] sm:$0xff]
  %v413 = vld [vmem:[%s2 + $0x1f8] sm:$0xff]
  %414 = vmatpush.msra.mxu0 %v410
  %415 = vmatpush.msra.mxu0 %v406
  %416 = vmatpush.msra.mxu0 %v402
  %417 = vmatpush.msra.mxu0 %v398
  %418 = vmatpush.msra.mxu0 %v394
  %419 = vmatpush.msra.mxu0 %v390
  %420 = vmatpush.msra.mxu0 %v386
  %421 = vmatpush.msra.mxu0 %v382
  %422 = vmatpush.msra.mxu0 %v378
  %423 = vmatpush.msra.mxu0 %v374
  %424 = vmatpush.msra.mxu0 %v370
  %425 = vmatpush.msra.mxu0 %v366
  %426 = vmatpush.msra.mxu0 %v362
  %427 = vmatpush.msra.mxu0 %v358
  %428 = vmatpush.msra.mxu0 %v354
  %429 = vmatpush.msra.mxu0 %v350
  %430 = vmatmul.f32.gmra.mxu0 %v342
  %v431 = vpop.f32.mrf.mxu0
  %v432 = vadd.f32 0.0, %v431
  %433 = vdwg.mxu0
  %434 = vmatpush.msra.mxu0 %v411
  %435 = vmatpush.msra.mxu0 %v407
  %436 = vmatpush.msra.mxu0 %v403
  %437 = vmatpush.msra.mxu0 %v399
  %438 = vmatpush.msra.mxu0 %v395
  %439 = vmatpush.msra.mxu0 %v391
  %440 = vmatpush.msra.mxu0 %v387
  %441 = vmatpush.msra.mxu0 %v383
  %442 = vmatpush.msra.mxu0 %v379
  %443 = vmatpush.msra.mxu0 %v375
  %444 = vmatpush.msra.mxu0 %v371
  %445 = vmatpush.msra.mxu0 %v367
  %446 = vmatpush.msra.mxu0 %v363
  %447 = vmatpush.msra.mxu0 %v359
  %448 = vmatpush.msra.mxu0 %v355
  %449 = vmatpush.msra.mxu0 %v351
  %450 = vmatmul.f32.gmra.mxu0 %v342
  %v451 = vpop.f32.mrf.mxu0
  %v452 = vadd.f32 0.0, %v451
  %453 = vdwg.mxu0
  %454 = vmatpush.msra.mxu0 %v412
  %455 = vmatpush.msra.mxu0 %v408
  %456 = vmatpush.msra.mxu0 %v404
  %457 = vmatpush.msra.mxu0 %v400
  %458 = vmatpush.msra.mxu0 %v396
  %459 = vmatpush.msra.mxu0 %v392
  %460 = vmatpush.msra.mxu0 %v388
  %461 = vmatpush.msra.mxu0 %v384
  %462 = vmatpush.msra.mxu0 %v380
  %463 = vmatpush.msra.mxu0 %v376
  %464 = vmatpush.msra.mxu0 %v372
  %465 = vmatpush.msra.mxu0 %v368
  %466 = vmatpush.msra.mxu0 %v364
  %467 = vmatpush.msra.mxu0 %v360
  %468 = vmatpush.msra.mxu0 %v356
  %469 = vmatpush.msra.mxu0 %v352
  %470 = vmatmul.f32.gmra.mxu0 %v342
  %v471 = vpop.f32.mrf.mxu0
  %v472 = vadd.f32 0.0, %v471
  %473 = vdwg.mxu0
  %474 = vmatpush.msra.mxu0 %v413
  %475 = vmatpush.msra.mxu0 %v409
  %476 = vmatpush.msra.mxu0 %v405
  %477 = vmatpush.msra.mxu0 %v401
  %478 = vmatpush.msra.mxu0 %v397
  %479 = vmatpush.msra.mxu0 %v393
  %480 = vmatpush.msra.mxu0 %v389
  %481 = vmatpush.msra.mxu0 %v385
  %482 = vmatpush.msra.mxu0 %v381
  %483 = vmatpush.msra.mxu0 %v377
  %484 = vmatpush.msra.mxu0 %v373
  %485 = vmatpush.msra.mxu0 %v369
  %486 = vmatpush.msra.mxu0 %v365
  %487 = vmatpush.msra.mxu0 %v361
  %488 = vmatpush.msra.mxu0 %v357
  %489 = vmatpush.msra.mxu0 %v353
  %490 = vmatmul.f32.gmra.mxu0 %v342
  %v491 = vpop.f32.mrf.mxu0
  %v492 = vadd.f32 0.0, %v491
  %493 = vdwg.mxu0
  %v494 = vadd.f32 %v346, %v432
  %v495 = vadd.f32 %v347, %v452
  %v496 = vadd.f32 %v348, %v472
  %v497 = vadd.f32 %v349, %v492
  %v498 = vxor.u32 %v494, 2147483648
  %v499 = vmul.f32 %v498, 1.442695
  %v500 = vpow.pop %v499
  %v501 = vadd.f32 %v500, 1.0
  %v502 = vrcp.pop %v501
  %v503 = vmul.f32 %v501, %v502
  %v504 = vsub.f32 1.0, %v503
  %v505 = vmul.f32 %v502, %v504
  %v506 = vadd.f32 %v502, %v505
  %vm507 = vweird.f32 %v501
  %vm508 = vweird.f32 %v502
  %vm509 = vmor %vm507, %vm508
  %v510 = vsel %vm509, %v502, %v506
  %v511 = vand.u32 2147483647, %v501
  %vm512 = vcmp.eq.f32.partialorder %v511, 8.507059e+37
  %v513 = vand.u32 %v501, 2147483648
  %v514 = vor.u32 1.1754944e-38, %v513
  %v515 = vsel %vm512, %v514, %v510
  %v516 = vmul.f32 1.0, %v515
  %v517 = vxor.u32 %v495, 2147483648
  %v518 = vmul.f32 %v517, 1.442695
  %v519 = vpow.pop %v518
  %v520 = vadd.f32 %v519, 1.0
  %v521 = vrcp.pop %v520
  %v522 = vmul.f32 %v520, %v521
  %v523 = vsub.f32 1.0, %v522
  %v524 = vmul.f32 %v521, %v523
  %v525 = vadd.f32 %v521, %v524
  %vm526 = vweird.f32 %v520
  %vm527 = vweird.f32 %v521
  %vm528 = vmor %vm526, %vm527
  %v529 = vsel %vm528, %v521, %v525
  %v530 = vand.u32 2147483647, %v520
  %vm531 = vcmp.eq.f32.partialorder %v530, 8.507059e+37
  %v532 = vand.u32 %v520, 2147483648
  %v533 = vor.u32 1.1754944e-38, %v532
  %v534 = vsel %vm531, %v533, %v529
  %v535 = vmul.f32 1.0, %v534
  %v536 = vtanh.pop %v496
  %v537 = vxor.u32 %v497, 2147483648
  %v538 = vmul.f32 %v537, 1.442695
  %v539 = vpow.pop %v538
  %v540 = vadd.f32 %v539, 1.0
  %v541 = vrcp.pop %v540
  %v542 = vmul.f32 %v540, %v541
  %v543 = vsub.f32 1.0, %v542
  %v544 = vmul.f32 %v541, %v543
  %v545 = vadd.f32 %v541, %v544
  %vm546 = vweird.f32 %v540
  %vm547 = vweird.f32 %v541
  %vm548 = vmor %vm546, %vm547
  %v549 = vsel %vm548, %v541, %v545
  %v550 = vand.u32 2147483647, %v540
  %vm551 = vcmp.eq.f32.partialorder %v550, 8.507059e+37
  %v552 = vand.u32 %v540, 2147483648
  %v553 = vor.u32 1.1754944e-38, %v552
  %v554 = vsel %vm551, %v553, %v549
  %v555 = vmul.f32 1.0, %v554
  %v556 = vmul.f32 %v535, %v343
  %v557 = vmul.f32 %v516, %v536
  %v558 = vadd.f32 %v556, %v557
  %v559 = vtanh.pop %v558
  %v560 = vmul.f32 %v555, %v559
  %v561 = vld [vmem:[%s4] sm:$0xff]
  %v562 = vld [vmem:[%s4 + $0x8] sm:$0xff]
  %v563 = vld [vmem:[%s4 + $0x10] sm:$0xff]
  %v564 = vld [vmem:[%s4 + $0x18] sm:$0xff]
  %v565 = vld [vmem:[%s4 + $0x20] sm:$0xff]
  %v566 = vld [vmem:[%s4 + $0x28] sm:$0xff]
  %v567 = vld [vmem:[%s4 + $0x30] sm:$0xff]
  %v568 = vld [vmem:[%s4 + $0x38] sm:$0xff]
  %v569 = vld [vmem:[%s4 + $0x40] sm:$0xff]
  %v570 = vld [vmem:[%s4 + $0x48] sm:$0xff]
  %v571 = vld [vmem:[%s4 + $0x50] sm:$0xff]
  %v572 = vld [vmem:[%s4 + $0x58] sm:$0xff]
  %v573 = vld [vmem:[%s4 + $0x60] sm:$0xff]
  %v574 = vld [vmem:[%s4 + $0x68] sm:$0xff]
  %v575 = vld [vmem:[%s4 + $0x70] sm:$0xff]
  %v576 = vld [vmem:[%s4 + $0x78] sm:$0xff]
  %v577 = vld [vmem:[%s4 + $0x80] sm:$0xff]
  %v578 = vld [vmem:[%s4 + $0x88] sm:$0xff]
  %v579 = vld [vmem:[%s4 + $0x90] sm:$0xff]
  %v580 = vld [vmem:[%s4 + $0x98] sm:$0xff]
  %v581 = vld [vmem:[%s4 + $0xa0] sm:$0xff]
  %v582 = vld [vmem:[%s4 + $0xa8] sm:$0xff]
  %v583 = vld [vmem:[%s4 + $0xb0] sm:$0xff]
  %v584 = vld [vmem:[%s4 + $0xb8] sm:$0xff]
  %v585 = vld [vmem:[%s4 + $0xc0] sm:$0xff]
  %v586 = vld [vmem:[%s4 + $0xc8] sm:$0xff]
  %v587 = vld [vmem:[%s4 + $0xd0] sm:$0xff]
  %v588 = vld [vmem:[%s4 + $0xd8] sm:$0xff]
  %v589 = vld [vmem:[%s4 + $0xe0] sm:$0xff]
  %v590 = vld [vmem:[%s4 + $0xe8] sm:$0xff]
  %v591 = vld [vmem:[%s4 + $0xf0] sm:$0xff]
  %v592 = vld [vmem:[%s4 + $0xf8] sm:$0xff]
  %v593 = vld [vmem:[%s4 + $0x100] sm:$0xff]
  %v594 = vld [vmem:[%s4 + $0x108] sm:$0xff]
  %v595 = vld [vmem:[%s4 + $0x110] sm:$0xff]
  %v596 = vld [vmem:[%s4 + $0x118] sm:$0xff]
  %v597 = vld [vmem:[%s4 + $0x120] sm:$0xff]
  %v598 = vld [vmem:[%s4 + $0x128] sm:$0xff]
  %v599 = vld [vmem:[%s4 + $0x130] sm:$0xff]
  %v600 = vld [vmem:[%s4 + $0x138] sm:$0xff]
  %v601 = vld [vmem:[%s4 + $0x140] sm:$0xff]
  %v602 = vld [vmem:[%s4 + $0x148] sm:$0xff]
  %v603 = vld [vmem:[%s4 + $0x150] sm:$0xff]
  %v604 = vld [vmem:[%s4 + $0x158] sm:$0xff]
  %v605 = vld [vmem:[%s4 + $0x160] sm:$0xff]
  %v606 = vld [vmem:[%s4 + $0x168] sm:$0xff]
  %v607 = vld [vmem:[%s4 + $0x170] sm:$0xff]
  %v608 = vld [vmem:[%s4 + $0x178] sm:$0xff]
  %v609 = vld [vmem:[%s4 + $0x180] sm:$0xff]
  %v610 = vld [vmem:[%s4 + $0x188] sm:$0xff]
  %v611 = vld [vmem:[%s4 + $0x190] sm:$0xff]
  %v612 = vld [vmem:[%s4 + $0x198] sm:$0xff]
  %v613 = vld [vmem:[%s4 + $0x1a0] sm:$0xff]
  %v614 = vld [vmem:[%s4 + $0x1a8] sm:$0xff]
  %v615 = vld [vmem:[%s4 + $0x1b0] sm:$0xff]
  %v616 = vld [vmem:[%s4 + $0x1b8] sm:$0xff]
  %v617 = vld [vmem:[%s4 + $0x1c0] sm:$0xff]
  %v618 = vld [vmem:[%s4 + $0x1c8] sm:$0xff]
  %v619 = vld [vmem:[%s4 + $0x1d0] sm:$0xff]
  %v620 = vld [vmem:[%s4 + $0x1d8] sm:$0xff]
  %v621 = vld [vmem:[%s4 + $0x1e0] sm:$0xff]
  %v622 = vld [vmem:[%s4 + $0x1e8] sm:$0xff]
  %v623 = vld [vmem:[%s4 + $0x1f0] sm:$0xff]
  %v624 = vld [vmem:[%s4 + $0x1f8] sm:$0xff]
  %v625 = vld [vmem:[%s5] sm:$0xff]
  %v626 = vld [vmem:[%s5 + $0x8] sm:$0xff]
  %v627 = vld [vmem:[%s5 + $0x10] sm:$0xff]
  %v628 = vld [vmem:[%s5 + $0x18] sm:$0xff]
  %v629 = vld [vmem:[%s5 + $0x20] sm:$0xff]
  %v630 = vld [vmem:[%s5 + $0x28] sm:$0xff]
  %v631 = vld [vmem:[%s5 + $0x30] sm:$0xff]
  %v632 = vld [vmem:[%s5 + $0x38] sm:$0xff]
  %v633 = vld [vmem:[%s5 + $0x40] sm:$0xff]
  %v634 = vld [vmem:[%s5 + $0x48] sm:$0xff]
  %v635 = vld [vmem:[%s5 + $0x50] sm:$0xff]
  %v636 = vld [vmem:[%s5 + $0x58] sm:$0xff]
  %v637 = vld [vmem:[%s5 + $0x60] sm:$0xff]
  %v638 = vld [vmem:[%s5 + $0x68] sm:$0xff]
  %v639 = vld [vmem:[%s5 + $0x70] sm:$0xff]
  %v640 = vld [vmem:[%s5 + $0x78] sm:$0xff]
  %v641 = vld [vmem:[%s5 + $0x80] sm:$0xff]
  %v642 = vld [vmem:[%s5 + $0x88] sm:$0xff]
  %v643 = vld [vmem:[%s5 + $0x90] sm:$0xff]
  %v644 = vld [vmem:[%s5 + $0x98] sm:$0xff]
  %v645 = vld [vmem:[%s5 + $0xa0] sm:$0xff]
  %v646 = vld [vmem:[%s5 + $0xa8] sm:$0xff]
  %v647 = vld [vmem:[%s5 + $0xb0] sm:$0xff]
  %v648 = vld [vmem:[%s5 + $0xb8] sm:$0xff]
  %v649 = vld [vmem:[%s5 + $0xc0] sm:$0xff]
  %v650 = vld [vmem:[%s5 + $0xc8] sm:$0xff]
  %v651 = vld [vmem:[%s5 + $0xd0] sm:$0xff]
  %v652 = vld [vmem:[%s5 + $0xd8] sm:$0xff]
  %v653 = vld [vmem:[%s5 + $0xe0] sm:$0xff]
  %v654 = vld [vmem:[%s5 + $0xe8] sm:$0xff]
  %v655 = vld [vmem:[%s5 + $0xf0] sm:$0xff]
  %v656 = vld [vmem:[%s5 + $0xf8] sm:$0xff]
  %v657 = vld [vmem:[%s5 + $0x100] sm:$0xff]
  %v658 = vld [vmem:[%s5 + $0x108] sm:$0xff]
  %v659 = vld [vmem:[%s5 + $0x110] sm:$0xff]
  %v660 = vld [vmem:[%s5 + $0x118] sm:$0xff]
  %v661 = vld [vmem:[%s5 + $0x120] sm:$0xff]
  %v662 = vld [vmem:[%s5 + $0x128] sm:$0xff]
  %v663 = vld [vmem:[%s5 + $0x130] sm:$0xff]
  %v664 = vld [vmem:[%s5 + $0x138] sm:$0xff]
  %v665 = vld [vmem:[%s5 + $0x140] sm:$0xff]
  %v666 = vld [vmem:[%s5 + $0x148] sm:$0xff]
  %v667 = vld [vmem:[%s5 + $0x150] sm:$0xff]
  %v668 = vld [vmem:[%s5 + $0x158] sm:$0xff]
  %v669 = vld [vmem:[%s5 + $0x160] sm:$0xff]
  %v670 = vld [vmem:[%s5 + $0x168] sm:$0xff]
  %v671 = vld [vmem:[%s5 + $0x170] sm:$0xff]
  %v672 = vld [vmem:[%s5 + $0x178] sm:$0xff]
  %v673 = vld [vmem:[%s5 + $0x180] sm:$0xff]
  %v674 = vld [vmem:[%s5 + $0x188] sm:$0xff]
  %v675 = vld [vmem:[%s5 + $0x190] sm:$0xff]
  %v676 = vld [vmem:[%s5 + $0x198] sm:$0xff]
  %v677 = vld [vmem:[%s5 + $0x1a0] sm:$0xff]
  %v678 = vld [vmem:[%s5 + $0x1a8] sm:$0xff]
  %v679 = vld [vmem:[%s5 + $0x1b0] sm:$0xff]
  %v680 = vld [vmem:[%s5 + $0x1b8] sm:$0xff]
  %v681 = vld [vmem:[%s5 + $0x1c0] sm:$0xff]
  %v682 = vld [vmem:[%s5 + $0x1c8] sm:$0xff]
  %v683 = vld [vmem:[%s5 + $0x1d0] sm:$0xff]
  %v684 = vld [vmem:[%s5 + $0x1d8] sm:$0xff]
  %v685 = vld [vmem:[%s5 + $0x1e0] sm:$0xff]
  %v686 = vld [vmem:[%s5 + $0x1e8] sm:$0xff]
  %v687 = vld [vmem:[%s5 + $0x1f0] sm:$0xff]
  %v688 = vld [vmem:[%s5 + $0x1f8] sm:$0xff]
  %689 = vmatpush.msra.mxu0 %v685
  %690 = vmatpush.msra.mxu0 %v681
  %691 = vmatpush.msra.mxu0 %v677
  %692 = vmatpush.msra.mxu0 %v673
  %693 = vmatpush.msra.mxu0 %v669
  %694 = vmatpush.msra.mxu0 %v665
  %695 = vmatpush.msra.mxu0 %v661
  %696 = vmatpush.msra.mxu0 %v657
  %697 = vmatpush.msra.mxu0 %v653
  %698 = vmatpush.msra.mxu0 %v649
  %699 = vmatpush.msra.mxu0 %v645
  %700 = vmatpush.msra.mxu0 %v641
  %701 = vmatpush.msra.mxu0 %v637
  %702 = vmatpush.msra.mxu0 %v633
  %703 = vmatpush.msra.mxu0 %v629
  %704 = vmatpush.msra.mxu0 %v625
  %705 = vmatmul.f32.gmra.mxu0 %v344
  %v706 = vpop.f32.mrf.mxu0
  %v707 = vadd.f32 0.0, %v706
  %708 = vdwg.mxu0
  %709 = vmatpush.msra.mxu0 %v686
  %710 = vmatpush.msra.mxu0 %v682
  %711 = vmatpush.msra.mxu0 %v678
  %712 = vmatpush.msra.mxu0 %v674
  %713 = vmatpush.msra.mxu0 %v670
  %714 = vmatpush.msra.mxu0 %v666
  %715 = vmatpush.msra.mxu0 %v662
  %716 = vmatpush.msra.mxu0 %v658
  %717 = vmatpush.msra.mxu0 %v654
  %718 = vmatpush.msra.mxu0 %v650
  %719 = vmatpush.msra.mxu0 %v646
  %720 = vmatpush.msra.mxu0 %v642
  %721 = vmatpush.msra.mxu0 %v638
  %722 = vmatpush.msra.mxu0 %v634
  %723 = vmatpush.msra.mxu0 %v630
  %724 = vmatpush.msra.mxu0 %v626
  %725 = vmatmul.f32.gmra.mxu0 %v344
  %v726 = vpop.f32.mrf.mxu0
  %v727 = vadd.f32 0.0, %v726
  %728 = vdwg.mxu0
  %729 = vmatpush.msra.mxu0 %v687
  %730 = vmatpush.msra.mxu0 %v683
  %731 = vmatpush.msra.mxu0 %v679
  %732 = vmatpush.msra.mxu0 %v675
  %733 = vmatpush.msra.mxu0 %v671
  %734 = vmatpush.msra.mxu0 %v667
  %735 = vmatpush.msra.mxu0 %v663
  %736 = vmatpush.msra.mxu0 %v659
  %737 = vmatpush.msra.mxu0 %v655
  %738 = vmatpush.msra.mxu0 %v651
  %739 = vmatpush.msra.mxu0 %v647
  %740 = vmatpush.msra.mxu0 %v643
  %741 = vmatpush.msra.mxu0 %v639
  %742 = vmatpush.msra.mxu0 %v635
  %743 = vmatpush.msra.mxu0 %v631
  %744 = vmatpush.msra.mxu0 %v627
  %745 = vmatmul.f32.gmra.mxu0 %v344
  %v746 = vpop.f32.mrf.mxu0
  %v747 = vadd.f32 0.0, %v746
  %748 = vdwg.mxu0
  %749 = vmatpush.msra.mxu0 %v688
  %750 = vmatpush.msra.mxu0 %v684
  %751 = vmatpush.msra.mxu0 %v680
  %752 = vmatpush.msra.mxu0 %v676
  %753 = vmatpush.msra.mxu0 %v672
  %754 = vmatpush.msra.mxu0 %v668
  %755 = vmatpush.msra.mxu0 %v664
  %756 = vmatpush.msra.mxu0 %v660
  %757 = vmatpush.msra.mxu0 %v656
  %758 = vmatpush.msra.mxu0 %v652
  %759 = vmatpush.msra.mxu0 %v648
  %760 = vmatpush.msra.mxu0 %v644
  %761 = vmatpush.msra.mxu0 %v640
  %762 = vmatpush.msra.mxu0 %v636
  %763 = vmatpush.msra.mxu0 %v632
  %764 = vmatpush.msra.mxu0 %v628
  %765 = vmatmul.f32.gmra.mxu0 %v344
  %v766 = vpop.f32.mrf.mxu0
  %v767 = vadd.f32 0.0, %v766
  %768 = vdwg.mxu0
  %769 = vmatpush.msra.mxu0 %v621
  %770 = vmatpush.msra.mxu0 %v617
  %771 = vmatpush.msra.mxu0 %v613
  %772 = vmatpush.msra.mxu0 %v609
  %773 = vmatpush.msra.mxu0 %v605
  %774 = vmatpush.msra.mxu0 %v601
  %775 = vmatpush.msra.mxu0 %v597
  %776 = vmatpush.msra.mxu0 %v593
  %777 = vmatpush.msra.mxu0 %v589
  %778 = vmatpush.msra.mxu0 %v585
  %779 = vmatpush.msra.mxu0 %v581
  %780 = vmatpush.msra.mxu0 %v577
  %781 = vmatpush.msra.mxu0 %v573
  %782 = vmatpush.msra.mxu0 %v569
  %783 = vmatpush.msra.mxu0 %v565
  %784 = vmatpush.msra.mxu0 %v561
  %785 = vmatmul.f32.gmra.mxu0 %v560
  %v786 = vpop.f32.mrf.mxu0
  %v787 = vadd.f32 %v707, %v786
  %788 = vdwg.mxu0
  %789 = vmatpush.msra.mxu0 %v622
  %790 = vmatpush.msra.mxu0 %v618
  %791 = vmatpush.msra.mxu0 %v614
  %792 = vmatpush.msra.mxu0 %v610
  %793 = vmatpush.msra.mxu0 %v606
  %794 = vmatpush.msra.mxu0 %v602
  %795 = vmatpush.msra.mxu0 %v598
  %796 = vmatpush.msra.mxu0 %v594
  %797 = vmatpush.msra.mxu0 %v590
  %798 = vmatpush.msra.mxu0 %v586
  %799 = vmatpush.msra.mxu0 %v582
  %800 = vmatpush.msra.mxu0 %v578
  %801 = vmatpush.msra.mxu0 %v574
  %802 = vmatpush.msra.mxu0 %v570
  %803 = vmatpush.msra.mxu0 %v566
  %804 = vmatpush.msra.mxu0 %v562
  %805 = vmatmul.f32.gmra.mxu0 %v560
  %v806 = vpop.f32.mrf.mxu0
  %v807 = vadd.f32 %v727, %v806
  %808 = vdwg.mxu0
  %809 = vmatpush.msra.mxu0 %v623
  %810 = vmatpush.msra.mxu0 %v619
  %811 = vmatpush.msra.mxu0 %v615
  %812 = vmatpush.msra.mxu0 %v611
  %813 = vmatpush.msra.mxu0 %v607
  %814 = vmatpush.msra.mxu0 %v603
  %815 = vmatpush.msra.mxu0 %v599
  %816 = vmatpush.msra.mxu0 %v595
  %817 = vmatpush.msra.mxu0 %v591
  %818 = vmatpush.msra.mxu0 %v587
  %819 = vmatpush.msra.mxu0 %v583
  %820 = vmatpush.msra.mxu0 %v579
  %821 = vmatpush.msra.mxu0 %v575
  %822 = vmatpush.msra.mxu0 %v571
  %823 = vmatpush.msra.mxu0 %v567
  %824 = vmatpush.msra.mxu0 %v563
  %825 = vmatmul.f32.gmra.mxu0 %v560
  %v826 = vpop.f32.mrf.mxu0
  %v827 = vadd.f32 %v747, %v826
  %828 = vdwg.mxu0
  %829 = vmatpush.msra.mxu0 %v624
  %830 = vmatpush.msra.mxu0 %v620
  %831 = vmatpush.msra.mxu0 %v616
  %832 = vmatpush.msra.mxu0 %v612
  %833 = vmatpush.msra.mxu0 %v608
  %834 = vmatpush.msra.mxu0 %v604
  %835 = vmatpush.msra.mxu0 %v600
  %836 = vmatpush.msra.mxu0 %v596
  %837 = vmatpush.msra.mxu0 %v592
  %838 = vmatpush.msra.mxu0 %v588
  %839 = vmatpush.msra.mxu0 %v584
  %840 = vmatpush.msra.mxu0 %v580
  %841 = vmatpush.msra.mxu0 %v576
  %842 = vmatpush.msra.mxu0 %v572
  %843 = vmatpush.msra.mxu0 %v568
  %844 = vmatpush.msra.mxu0 %v564
  %845 = vmatmul.f32.gmra.mxu0 %v560
  %v846 = vpop.f32.mrf.mxu0
  %v847 = vadd.f32 %v767, %v846
  %848 = vdwg.mxu0
  %v849 = vadd.f32 %v787, %v334
  %v850 = vadd.f32 %v807, %v335
  %v851 = vadd.f32 %v827, %v336
  %v852 = vadd.f32 %v847, %v337
  %v853 = vxor.u32 %v849, 2147483648
  %v854 = vmul.f32 %v853, 1.442695
  %v855 = vpow.pop %v854
  %v856 = vadd.f32 %v855, 1.0
  %v857 = vrcp.pop %v856
  %v858 = vmul.f32 %v856, %v857
  %v859 = vsub.f32 1.0, %v858
  %v860 = vmul.f32 %v857, %v859
  %v861 = vadd.f32 %v857, %v860
  %vm862 = vweird.f32 %v856
  %vm863 = vweird.f32 %v857
  %vm864 = vmor %vm862, %vm863
  %v865 = vsel %vm864, %v857, %v861
  %v866 = vand.u32 2147483647, %v856
  %vm867 = vcmp.eq.f32.partialorder %v866, 8.507059e+37
  %v868 = vand.u32 %v856, 2147483648
  %v869 = vor.u32 1.1754944e-38, %v868
  %v870 = vsel %vm867, %v869, %v865
  %v871 = vmul.f32 1.0, %v870
  %v872 = vxor.u32 %v850, 2147483648
  %v873 = vmul.f32 %v872, 1.442695
  %v874 = vpow.pop %v873
  %v875 = vadd.f32 %v874, 1.0
  %v876 = vrcp.pop %v875
  %v877 = vmul.f32 %v875, %v876
  %v878 = vsub.f32 1.0, %v877
  %v879 = vmul.f32 %v876, %v878
  %v880 = vadd.f32 %v876, %v879
  %vm881 = vweird.f32 %v875
  %vm882 = vweird.f32 %v876
  %vm883 = vmor %vm881, %vm882
  %v884 = vsel %vm883, %v876, %v880
  %v885 = vand.u32 2147483647, %v875
  %vm886 = vcmp.eq.f32.partialorder %v885, 8.507059e+37
  %v887 = vand.u32 %v875, 2147483648
  %v888 = vor.u32 1.1754944e-38, %v887
  %v889 = vsel %vm886, %v888, %v884
  %v890 = vmul.f32 1.0, %v889
  %v891 = vtanh.pop %v851
  %v892 = vxor.u32 %v852, 2147483648
  %v893 = vmul.f32 %v892, 1.442695
  %v894 = vpow.pop %v893
  %v895 = vadd.f32 %v894, 1.0
  %v896 = vrcp.pop %v895
  %v897 = vmul.f32 %v895, %v896
  %v898 = vsub.f32 1.0, %v897
  %v899 = vmul.f32 %v896, %v898
  %v900 = vadd.f32 %v896, %v899
  %vm901 = vweird.f32 %v895
  %vm902 = vweird.f32 %v896
  %vm903 = vmor %vm901, %vm902
  %v904 = vsel %vm903, %v896, %v900
  %v905 = vand.u32 2147483647, %v895
  %vm906 = vcmp.eq.f32.partialorder %v905, 8.507059e+37
  %v907 = vand.u32 %v895, 2147483648
  %v908 = vor.u32 1.1754944e-38, %v907
  %v909 = vsel %vm906, %v908, %v904
  %v910 = vmul.f32 1.0, %v909
  %v911 = vmul.f32 %v890, %v345
  %v912 = vmul.f32 %v871, %v891
  %v913 = vadd.f32 %v911, %v912
  %v914 = vtanh.pop %v913
  %v915 = vmul.f32 %v910, %v914
  %s916 = scalar_lea.vmem [#allocation2], 32
  %v917 = vld [vmem:[%s916] sm:$0xff]
  %v918 = vld [vmem:[%s916 + $0x8] sm:$0xff]
  %v919 = vld [vmem:[%s916 + $0x10] sm:$0xff]
  %v920 = vld [vmem:[%s916 + $0x18] sm:$0xff]
  %921 = vmatpush.msra.mxu0 %v410
  %922 = vmatpush.msra.mxu0 %v406
  %923 = vmatpush.msra.mxu0 %v402
  %924 = vmatpush.msra.mxu0 %v398
  %925 = vmatpush.msra.mxu0 %v394
  %926 = vmatpush.msra.mxu0 %v390
  %927 = vmatpush.msra.mxu0 %v386
  %928 = vmatpush.msra.mxu0 %v382
  %929 = vmatpush.msra.mxu0 %v378
  %930 = vmatpush.msra.mxu0 %v374
  %931 = vmatpush.msra.mxu0 %v370
  %932 = vmatpush.msra.mxu0 %v366
  %933 = vmatpush.msra.mxu0 %v362
  %934 = vmatpush.msra.mxu0 %v358
  %935 = vmatpush.msra.mxu0 %v354
  %936 = vmatpush.msra.mxu0 %v350
  %937 = vmatmul.f32.gmra.mxu0 %v560
  %v938 = vpop.f32.mrf.mxu0
  %v939 = vadd.f32 0.0, %v938
  %940 = vdwg.mxu0
  %941 = vmatpush.msra.mxu0 %v411
  %942 = vmatpush.msra.mxu0 %v407
  %943 = vmatpush.msra.mxu0 %v403
  %944 = vmatpush.msra.mxu0 %v399
  %945 = vmatpush.msra.mxu0 %v395
  %946 = vmatpush.msra.mxu0 %v391
  %947 = vmatpush.msra.mxu0 %v387
  %948 = vmatpush.msra.mxu0 %v383
  %949 = vmatpush.msra.mxu0 %v379
  %950 = vmatpush.msra.mxu0 %v375
  %951 = vmatpush.msra.mxu0 %v371
  %952 = vmatpush.msra.mxu0 %v367
  %953 = vmatpush.msra.mxu0 %v363
  %954 = vmatpush.msra.mxu0 %v359
  %955 = vmatpush.msra.mxu0 %v355
  %956 = vmatpush.msra.mxu0 %v351
  %957 = vmatmul.f32.gmra.mxu0 %v560
  %v958 = vpop.f32.mrf.mxu0
  %v959 = vadd.f32 0.0, %v958
  %960 = vdwg.mxu0
  %961 = vmatpush.msra.mxu0 %v412
  %962 = vmatpush.msra.mxu0 %v408
  %963 = vmatpush.msra.mxu0 %v404
  %964 = vmatpush.msra.mxu0 %v400
  %965 = vmatpush.msra.mxu0 %v396
  %966 = vmatpush.msra.mxu0 %v392
  %967 = vmatpush.msra.mxu0 %v388
  %968 = vmatpush.msra.mxu0 %v384
  %969 = vmatpush.msra.mxu0 %v380
  %970 = vmatpush.msra.mxu0 %v376
  %971 = vmatpush.msra.mxu0 %v372
  %972 = vmatpush.msra.mxu0 %v368
  %973 = vmatpush.msra.mxu0 %v364
  %974 = vmatpush.msra.mxu0 %v360
  %975 = vmatpush.msra.mxu0 %v356
  %976 = vmatpush.msra.mxu0 %v352
  %977 = vmatmul.f32.gmra.mxu0 %v560
  %v978 = vpop.f32.mrf.mxu0
  %v979 = vadd.f32 0.0, %v978
  %980 = vdwg.mxu0
  %981 = vmatpush.msra.mxu0 %v413
  %982 = vmatpush.msra.mxu0 %v409
  %983 = vmatpush.msra.mxu0 %v405
  %984 = vmatpush.msra.mxu0 %v401
  %985 = vmatpush.msra.mxu0 %v397
  %986 = vmatpush.msra.mxu0 %v393
  %987 = vmatpush.msra.mxu0 %v389
  %988 = vmatpush.msra.mxu0 %v385
  %989 = vmatpush.msra.mxu0 %v381
  %990 = vmatpush.msra.mxu0 %v377
  %991 = vmatpush.msra.mxu0 %v373
  %992 = vmatpush.msra.mxu0 %v369
  %993 = vmatpush.msra.mxu0 %v365
  %994 = vmatpush.msra.mxu0 %v361
  %995 = vmatpush.msra.mxu0 %v357
  %996 = vmatpush.msra.mxu0 %v353
  %997 = vmatmul.f32.gmra.mxu0 %v560
  %v998 = vpop.f32.mrf.mxu0
  %v999 = vadd.f32 0.0, %v998
  %1000 = vdwg.mxu0
  %v1001 = vadd.f32 %v917, %v939
  %v1002 = vadd.f32 %v918, %v959
  %v1003 = vadd.f32 %v919, %v979
  %v1004 = vadd.f32 %v920, %v999
  %v1005 = vxor.u32 %v1001, 2147483648
  %v1006 = vmul.f32 %v1005, 1.442695
  %v1007 = vpow.pop %v1006
  %v1008 = vadd.f32 %v1007, 1.0
  %v1009 = vrcp.pop %v1008
  %v1010 = vmul.f32 %v1008, %v1009
  %v1011 = vsub.f32 1.0, %v1010
  %v1012 = vmul.f32 %v1009, %v1011
  %v1013 = vadd.f32 %v1009, %v1012
  %vm1014 = vweird.f32 %v1008
  %vm1015 = vweird.f32 %v1009
  %vm1016 = vmor %vm1014, %vm1015
  %v1017 = vsel %vm1016, %v1009, %v1013
  %v1018 = vand.u32 2147483647, %v1008
  %vm1019 = vcmp.eq.f32.partialorder %v1018, 8.507059e+37
  %v1020 = vand.u32 %v1008, 2147483648
  %v1021 = vor.u32 1.1754944e-38, %v1020
  %v1022 = vsel %vm1019, %v1021, %v1017
  %v1023 = vmul.f32 1.0, %v1022
  %v1024 = vxor.u32 %v1002, 2147483648
  %v1025 = vmul.f32 %v1024, 1.442695
  %v1026 = vpow.pop %v1025
  %v1027 = vadd.f32 %v1026, 1.0
  %v1028 = vrcp.pop %v1027
  %v1029 = vmul.f32 %v1027, %v1028
  %v1030 = vsub.f32 1.0, %v1029
  %v1031 = vmul.f32 %v1028, %v1030
  %v1032 = vadd.f32 %v1028, %v1031
  %vm1033 = vweird.f32 %v1027
  %vm1034 = vweird.f32 %v1028
  %vm1035 = vmor %vm1033, %vm1034
  %v1036 = vsel %vm1035, %v1028, %v1032
  %v1037 = vand.u32 2147483647, %v1027
  %vm1038 = vcmp.eq.f32.partialorder %v1037, 8.507059e+37
  %v1039 = vand.u32 %v1027, 2147483648
  %v1040 = vor.u32 1.1754944e-38, %v1039
  %v1041 = vsel %vm1038, %v1040, %v1036
  %v1042 = vmul.f32 1.0, %v1041
  %v1043 = vtanh.pop %v1003
  %v1044 = vxor.u32 %v1004, 2147483648
  %v1045 = vmul.f32 %v1044, 1.442695
  %v1046 = vpow.pop %v1045
  %v1047 = vadd.f32 %v1046, 1.0
  %v1048 = vrcp.pop %v1047
  %v1049 = vmul.f32 %v1047, %v1048
  %v1050 = vsub.f32 1.0, %v1049
  %v1051 = vmul.f32 %v1048, %v1050
  %v1052 = vadd.f32 %v1048, %v1051
  %vm1053 = vweird.f32 %v1047
  %vm1054 = vweird.f32 %v1048
  %vm1055 = vmor %vm1053, %vm1054
  %v1056 = vsel %vm1055, %v1048, %v1052
  %v1057 = vand.u32 2147483647, %v1047
  %vm1058 = vcmp.eq.f32.partialorder %v1057, 8.507059e+37
  %v1059 = vand.u32 %v1047, 2147483648
  %v1060 = vor.u32 1.1754944e-38, %v1059
  %v1061 = vsel %vm1058, %v1060, %v1056
  %v1062 = vmul.f32 1.0, %v1061
  %v1063 = vmul.f32 %v1042, %v558
  %v1064 = vmul.f32 %v1023, %v1043
  %v1065 = vadd.f32 %v1063, %v1064
  %v1066 = vtanh.pop %v1065
  %v1067 = vmul.f32 %v1062, %v1066
  %1068 = vmatpush.msra.mxu0 %v685
  %1069 = vmatpush.msra.mxu0 %v681
  %1070 = vmatpush.msra.mxu0 %v677
  %1071 = vmatpush.msra.mxu0 %v673
  %1072 = vmatpush.msra.mxu0 %v669
  %1073 = vmatpush.msra.mxu0 %v665
  %1074 = vmatpush.msra.mxu0 %v661
  %1075 = vmatpush.msra.mxu0 %v657
  %1076 = vmatpush.msra.mxu0 %v653
  %1077 = vmatpush.msra.mxu0 %v649
  %1078 = vmatpush.msra.mxu0 %v645
  %1079 = vmatpush.msra.mxu0 %v641
  %1080 = vmatpush.msra.mxu0 %v637
  %1081 = vmatpush.msra.mxu0 %v633
  %1082 = vmatpush.msra.mxu0 %v629
  %1083 = vmatpush.msra.mxu0 %v625
  %1084 = vmatmul.f32.gmra.mxu0 %v915
  %v1085 = vpop.f32.mrf.mxu0
  %v1086 = vadd.f32 0.0, %v1085
  %1087 = vdwg.mxu0
  %1088 = vmatpush.msra.mxu0 %v686
  %1089 = vmatpush.msra.mxu0 %v682
  %1090 = vmatpush.msra.mxu0 %v678
  %1091 = vmatpush.msra.mxu0 %v674
  %1092 = vmatpush.msra.mxu0 %v670
  %1093 = vmatpush.msra.mxu0 %v666
  %1094 = vmatpush.msra.mxu0 %v662
  %1095 = vmatpush.msra.mxu0 %v658
  %1096 = vmatpush.msra.mxu0 %v654
  %1097 = vmatpush.msra.mxu0 %v650
  %1098 = vmatpush.msra.mxu0 %v646
  %1099 = vmatpush.msra.mxu0 %v642
  %1100 = vmatpush.msra.mxu0 %v638
  %1101 = vmatpush.msra.mxu0 %v634
  %1102 = vmatpush.msra.mxu0 %v630
  %1103 = vmatpush.msra.mxu0 %v626
  %1104 = vmatmul.f32.gmra.mxu0 %v915
  %v1105 = vpop.f32.mrf.mxu0
  %v1106 = vadd.f32 0.0, %v1105
  %1107 = vdwg.mxu0
  %1108 = vmatpush.msra.mxu0 %v687
  %1109 = vmatpush.msra.mxu0 %v683
  %1110 = vmatpush.msra.mxu0 %v679
  %1111 = vmatpush.msra.mxu0 %v675
  %1112 = vmatpush.msra.mxu0 %v671
  %1113 = vmatpush.msra.mxu0 %v667
  %1114 = vmatpush.msra.mxu0 %v663
  %1115 = vmatpush.msra.mxu0 %v659
  %1116 = vmatpush.msra.mxu0 %v655
  %1117 = vmatpush.msra.mxu0 %v651
  %1118 = vmatpush.msra.mxu0 %v647
  %1119 = vmatpush.msra.mxu0 %v643
  %1120 = vmatpush.msra.mxu0 %v639
  %1121 = vmatpush.msra.mxu0 %v635
  %1122 = vmatpush.msra.mxu0 %v631
  %1123 = vmatpush.msra.mxu0 %v627
  %1124 = vmatmul.f32.gmra.mxu0 %v915
  %v1125 = vpop.f32.mrf.mxu0
  %v1126 = vadd.f32 0.0, %v1125
  %1127 = vdwg.mxu0
  %1128 = vmatpush.msra.mxu0 %v688
  %1129 = vmatpush.msra.mxu0 %v684
  %1130 = vmatpush.msra.mxu0 %v680
  %1131 = vmatpush.msra.mxu0 %v676
  %1132 = vmatpush.msra.mxu0 %v672
  %1133 = vmatpush.msra.mxu0 %v668
  %1134 = vmatpush.msra.mxu0 %v664
  %1135 = vmatpush.msra.mxu0 %v660
  %1136 = vmatpush.msra.mxu0 %v656
  %1137 = vmatpush.msra.mxu0 %v652
  %1138 = vmatpush.msra.mxu0 %v648
  %1139 = vmatpush.msra.mxu0 %v644
  %1140 = vmatpush.msra.mxu0 %v640
  %1141 = vmatpush.msra.mxu0 %v636
  %1142 = vmatpush.msra.mxu0 %v632
  %1143 = vmatpush.msra.mxu0 %v628
  %1144 = vmatmul.f32.gmra.mxu0 %v915
  %v1145 = vpop.f32.mrf.mxu0
  %v1146 = vadd.f32 0.0, %v1145
  %1147 = vdwg.mxu0
  %1148 = vmatpush.msra.mxu0 %v621
  %1149 = vmatpush.msra.mxu0 %v617
  %1150 = vmatpush.msra.mxu0 %v613
  %1151 = vmatpush.msra.mxu0 %v609
  %1152 = vmatpush.msra.mxu0 %v605
  %1153 = vmatpush.msra.mxu0 %v601
  %1154 = vmatpush.msra.mxu0 %v597
  %1155 = vmatpush.msra.mxu0 %v593
  %1156 = vmatpush.msra.mxu0 %v589
  %1157 = vmatpush.msra.mxu0 %v585
  %1158 = vmatpush.msra.mxu0 %v581
  %1159 = vmatpush.msra.mxu0 %v577
  %1160 = vmatpush.msra.mxu0 %v573
  %1161 = vmatpush.msra.mxu0 %v569
  %1162 = vmatpush.msra.mxu0 %v565
  %1163 = vmatpush.msra.mxu0 %v561
  %1164 = vmatmul.f32.gmra.mxu0 %v1067
  %v1165 = vpop.f32.mrf.mxu0
  %v1166 = vadd.f32 %v1086, %v1165
  %1167 = vdwg.mxu0
  %1168 = vmatpush.msra.mxu0 %v622
  %1169 = vmatpush.msra.mxu0 %v618
  %1170 = vmatpush.msra.mxu0 %v614
  %1171 = vmatpush.msra.mxu0 %v610
  %1172 = vmatpush.msra.mxu0 %v606
  %1173 = vmatpush.msra.mxu0 %v602
  %1174 = vmatpush.msra.mxu0 %v598
  %1175 = vmatpush.msra.mxu0 %v594
  %1176 = vmatpush.msra.mxu0 %v590
  %1177 = vmatpush.msra.mxu0 %v586
  %1178 = vmatpush.msra.mxu0 %v582
  %1179 = vmatpush.msra.mxu0 %v578
  %1180 = vmatpush.msra.mxu0 %v574
  %1181 = vmatpush.msra.mxu0 %v570
  %1182 = vmatpush.msra.mxu0 %v566
  %1183 = vmatpush.msra.mxu0 %v562
  %1184 = vmatmul.f32.gmra.mxu0 %v1067
  %v1185 = vpop.f32.mrf.mxu0
  %v1186 = vadd.f32 %v1106, %v1185
  %1187 = vdwg.mxu0
  %1188 = vmatpush.msra.mxu0 %v623
  %1189 = vmatpush.msra.mxu0 %v619
  %1190 = vmatpush.msra.mxu0 %v615
  %1191 = vmatpush.msra.mxu0 %v611
  %1192 = vmatpush.msra.mxu0 %v607
  %1193 = vmatpush.msra.mxu0 %v603
  %1194 = vmatpush.msra.mxu0 %v599
  %1195 = vmatpush.msra.mxu0 %v595
  %1196 = vmatpush.msra.mxu0 %v591
  %1197 = vmatpush.msra.mxu0 %v587
  %1198 = vmatpush.msra.mxu0 %v583
  %1199 = vmatpush.msra.mxu0 %v579
  %1200 = vmatpush.msra.mxu0 %v575
  %1201 = vmatpush.msra.mxu0 %v571
  %1202 = vmatpush.msra.mxu0 %v567
  %1203 = vmatpush.msra.mxu0 %v563
  %1204 = vmatmul.f32.gmra.mxu0 %v1067
  %v1205 = vpop.f32.mrf.mxu0
  %v1206 = vadd.f32 %v1126, %v1205
  %1207 = vdwg.mxu0
  %1208 = vmatpush.msra.mxu0 %v624
  %1209 = vmatpush.msra.mxu0 %v620
  %1210 = vmatpush.msra.mxu0 %v616
  %1211 = vmatpush.msra.mxu0 %v612
  %1212 = vmatpush.msra.mxu0 %v608
  %1213 = vmatpush.msra.mxu0 %v604
  %1214 = vmatpush.msra.mxu0 %v600
  %1215 = vmatpush.msra.mxu0 %v596
  %1216 = vmatpush.msra.mxu0 %v592
  %1217 = vmatpush.msra.mxu0 %v588
  %1218 = vmatpush.msra.mxu0 %v584
  %1219 = vmatpush.msra.mxu0 %v580
  %1220 = vmatpush.msra.mxu0 %v576
  %1221 = vmatpush.msra.mxu0 %v572
  %1222 = vmatpush.msra.mxu0 %v568
  %1223 = vmatpush.msra.mxu0 %v564
  %1224 = vmatmul.f32.gmra.mxu0 %v1067
  %v1225 = vpop.f32.mrf.mxu0
  %v1226 = vadd.f32 %v1146, %v1225
  %1227 = vdwg.mxu0
  %v1228 = vadd.f32 %v1166, %v334
  %v1229 = vadd.f32 %v1186, %v335
  %v1230 = vadd.f32 %v1206, %v336
  %v1231 = vadd.f32 %v1226, %v337
  %v1232 = vxor.u32 %v1228, 2147483648
  %v1233 = vmul.f32 %v1232, 1.442695
  %v1234 = vpow.pop %v1233
  %v1235 = vadd.f32 %v1234, 1.0
  %v1236 = vrcp.pop %v1235
  %v1237 = vmul.f32 %v1235, %v1236
  %v1238 = vsub.f32 1.0, %v1237
  %v1239 = vmul.f32 %v1236, %v1238
  %v1240 = vadd.f32 %v1236, %v1239
  %vm1241 = vweird.f32 %v1235
  %vm1242 = vweird.f32 %v1236
  %vm1243 = vmor %vm1241, %vm1242
  %v1244 = vsel %vm1243, %v1236, %v1240
  %v1245 = vand.u32 2147483647, %v1235
  %vm1246 = vcmp.eq.f32.partialorder %v1245, 8.507059e+37
  %v1247 = vand.u32 %v1235, 2147483648
  %v1248 = vor.u32 1.1754944e-38, %v1247
  %v1249 = vsel %vm1246, %v1248, %v1244
  %v1250 = vmul.f32 1.0, %v1249
  %v1251 = vxor.u32 %v1229, 2147483648
  %v1252 = vmul.f32 %v1251, 1.442695
  %v1253 = vpow.pop %v1252
  %v1254 = vadd.f32 %v1253, 1.0
  %v1255 = vrcp.pop %v1254
  %v1256 = vmul.f32 %v1254, %v1255
  %v1257 = vsub.f32 1.0, %v1256
  %v1258 = vmul.f32 %v1255, %v1257
  %v1259 = vadd.f32 %v1255, %v1258
  %vm1260 = vweird.f32 %v1254
  %vm1261 = vweird.f32 %v1255
  %vm1262 = vmor %vm1260, %vm1261
  %v1263 = vsel %vm1262, %v1255, %v1259
  %v1264 = vand.u32 2147483647, %v1254
  %vm1265 = vcmp.eq.f32.partialorder %v1264, 8.507059e+37
  %v1266 = vand.u32 %v1254, 2147483648
  %v1267 = vor.u32 1.1754944e-38, %v1266
  %v1268 = vsel %vm1265, %v1267, %v1263
  %v1269 = vmul.f32 1.0, %v1268
  %v1270 = vtanh.pop %v1230
  %v1271 = vxor.u32 %v1231, 2147483648
  %v1272 = vmul.f32 %v1271, 1.442695
  %v1273 = vpow.pop %v1272
  %v1274 = vadd.f32 %v1273, 1.0
  %v1275 = vrcp.pop %v1274
  %v1276 = vmul.f32 %v1274, %v1275
  %v1277 = vsub.f32 1.0, %v1276
  %v1278 = vmul.f32 %v1275, %v1277
  %v1279 = vadd.f32 %v1275, %v1278
  %vm1280 = vweird.f32 %v1274
  %vm1281 = vweird.f32 %v1275
  %vm1282 = vmor %vm1280, %vm1281
  %v1283 = vsel %vm1282, %v1275, %v1279
  %v1284 = vand.u32 2147483647, %v1274
  %vm1285 = vcmp.eq.f32.partialorder %v1284, 8.507059e+37
  %v1286 = vand.u32 %v1274, 2147483648
  %v1287 = vor.u32 1.1754944e-38, %v1286
  %v1288 = vsel %vm1285, %v1287, %v1283
  %v1289 = vmul.f32 1.0, %v1288
  %v1290 = vmul.f32 %v1269, %v913
  %v1291 = vmul.f32 %v1250, %v1270
  %v1292 = vadd.f32 %v1290, %v1291
  %v1293 = vtanh.pop %v1292
  %v1294 = vmul.f32 %v1289, %v1293
  %s1295 = scalar_lea.vmem [#allocation2], 64
  %v1296 = vld [vmem:[%s1295] sm:$0xff]
  %v1297 = vld [vmem:[%s1295 + $0x8] sm:$0xff]
  %v1298 = vld [vmem:[%s1295 + $0x10] sm:$0xff]
  %v1299 = vld [vmem:[%s1295 + $0x18] sm:$0xff]
  %1300 = vmatpush.msra.mxu0 %v410
  %1301 = vmatpush.msra.mxu0 %v406
  %1302 = vmatpush.msra.mxu0 %v402
  %1303 = vmatpush.msra.mxu0 %v398
  %1304 = vmatpush.msra.mxu0 %v394
  %1305 = vmatpush.msra.mxu0 %v390
  %1306 = vmatpush.msra.mxu0 %v386
  %1307 = vmatpush.msra.mxu0 %v382
  %1308 = vmatpush.msra.mxu0 %v378
  %1309 = vmatpush.msra.mxu0 %v374
  %1310 = vmatpush.msra.mxu0 %v370
  %1311 = vmatpush.msra.mxu0 %v366
  %1312 = vmatpush.msra.mxu0 %v362
  %1313 = vmatpush.msra.mxu0 %v358
  %1314 = vmatpush.msra.mxu0 %v354
  %1315 = vmatpush.msra.mxu0 %v350
  %1316 = vmatmul.f32.gmra.mxu0 %v1067
  %v1317 = vpop.f32.mrf.mxu0
  %v1318 = vadd.f32 0.0, %v1317
  %1319 = vdwg.mxu0
  %1320 = vmatpush.msra.mxu0 %v411
  %1321 = vmatpush.msra.mxu0 %v407
  %1322 = vmatpush.msra.mxu0 %v403
  %1323 = vmatpush.msra.mxu0 %v399
  %1324 = vmatpush.msra.mxu0 %v395
  %1325 = vmatpush.msra.mxu0 %v391
  %1326 = vmatpush.msra.mxu0 %v387
  %1327 = vmatpush.msra.mxu0 %v383
  %1328 = vmatpush.msra.mxu0 %v379
  %1329 = vmatpush.msra.mxu0 %v375
  %1330 = vmatpush.msra.mxu0 %v371
  %1331 = vmatpush.msra.mxu0 %v367
  %1332 = vmatpush.msra.mxu0 %v363
  %1333 = vmatpush.msra.mxu0 %v359
  %1334 = vmatpush.msra.mxu0 %v355
  %1335 = vmatpush.msra.mxu0 %v351
  %1336 = vmatmul.f32.gmra.mxu0 %v1067
  %v1337 = vpop.f32.mrf.mxu0
  %v1338 = vadd.f32 0.0, %v1337
  %1339 = vdwg.mxu0
  %1340 = vmatpush.msra.mxu0 %v412
  %1341 = vmatpush.msra.mxu0 %v408
  %1342 = vmatpush.msra.mxu0 %v404
  %1343 = vmatpush.msra.mxu0 %v400
  %1344 = vmatpush.msra.mxu0 %v396
  %1345 = vmatpush.msra.mxu0 %v392
  %1346 = vmatpush.msra.mxu0 %v388
  %1347 = vmatpush.msra.mxu0 %v384
  %1348 = vmatpush.msra.mxu0 %v380
  %1349 = vmatpush.msra.mxu0 %v376
  %1350 = vmatpush.msra.mxu0 %v372
  %1351 = vmatpush.msra.mxu0 %v368
  %1352 = vmatpush.msra.mxu0 %v364
  %1353 = vmatpush.msra.mxu0 %v360
  %1354 = vmatpush.msra.mxu0 %v356
  %1355 = vmatpush.msra.mxu0 %v352
  %1356 = vmatmul.f32.gmra.mxu0 %v1067
  %v1357 = vpop.f32.mrf.mxu0
  %v1358 = vadd.f32 0.0, %v1357
  %1359 = vdwg.mxu0
  %1360 = vmatpush.msra.mxu0 %v413
  %1361 = vmatpush.msra.mxu0 %v409
  %1362 = vmatpush.msra.mxu0 %v405
  %1363 = vmatpush.msra.mxu0 %v401
  %1364 = vmatpush.msra.mxu0 %v397
  %1365 = vmatpush.msra.mxu0 %v393
  %1366 = vmatpush.msra.mxu0 %v389
  %1367 = vmatpush.msra.mxu0 %v385
  %1368 = vmatpush.msra.mxu0 %v381
  %1369 = vmatpush.msra.mxu0 %v377
  %1370 = vmatpush.msra.mxu0 %v373
  %1371 = vmatpush.msra.mxu0 %v369
  %1372 = vmatpush.msra.mxu0 %v365
  %1373 = vmatpush.msra.mxu0 %v361
  %1374 = vmatpush.msra.mxu0 %v357
  %1375 = vmatpush.msra.mxu0 %v353
  %1376 = vmatmul.f32.gmra.mxu0 %v1067
  %v1377 = vpop.f32.mrf.mxu0
  %v1378 = vadd.f32 0.0, %v1377
  %1379 = vdwg.mxu0
  %v1380 = vadd.f32 %v1296, %v1318
  %v1381 = vadd.f32 %v1297, %v1338
  %v1382 = vadd.f32 %v1298, %v1358
  %v1383 = vadd.f32 %v1299, %v1378
  %v1384 = vxor.u32 %v1380, 2147483648
  %v1385 = vmul.f32 %v1384, 1.442695
  %v1386 = vpow.pop %v1385
  %v1387 = vadd.f32 %v1386, 1.0
  %v1388 = vrcp.pop %v1387
  %v1389 = vmul.f32 %v1387, %v1388
  %v1390 = vsub.f32 1.0, %v1389
  %v1391 = vmul.f32 %v1388, %v1390
  %v1392 = vadd.f32 %v1388, %v1391
  %vm1393 = vweird.f32 %v1387
  %vm1394 = vweird.f32 %v1388
  %vm1395 = vmor %vm1393, %vm1394
  %v1396 = vsel %vm1395, %v1388, %v1392
  %v1397 = vand.u32 2147483647, %v1387
  %vm1398 = vcmp.eq.f32.partialorder %v1397, 8.507059e+37
  %v1399 = vand.u32 %v1387, 2147483648
  %v1400 = vor.u32 1.1754944e-38, %v1399
  %v1401 = vsel %vm1398, %v1400, %v1396
  %v1402 = vmul.f32 1.0, %v1401
  %v1403 = vxor.u32 %v1381, 2147483648
  %v1404 = vmul.f32 %v1403, 1.442695
  %v1405 = vpow.pop %v1404
  %v1406 = vadd.f32 %v1405, 1.0
  %v1407 = vrcp.pop %v1406
  %v1408 = vmul.f32 %v1406, %v1407
  %v1409 = vsub.f32 1.0, %v1408
  %v1410 = vmul.f32 %v1407, %v1409
  %v1411 = vadd.f32 %v1407, %v1410
  %vm1412 = vweird.f32 %v1406
  %vm1413 = vweird.f32 %v1407
  %vm1414 = vmor %vm1412, %vm1413
  %v1415 = vsel %vm1414, %v1407, %v1411
  %v1416 = vand.u32 2147483647, %v1406
  %vm1417 = vcmp.eq.f32.partialorder %v1416, 8.507059e+37
  %v1418 = vand.u32 %v1406, 2147483648
  %v1419 = vor.u32 1.1754944e-38, %v1418
  %v1420 = vsel %vm1417, %v1419, %v1415
  %v1421 = vmul.f32 1.0, %v1420
  %v1422 = vtanh.pop %v1382
  %v1423 = vxor.u32 %v1383, 2147483648
  %v1424 = vmul.f32 %v1423, 1.442695
  %v1425 = vpow.pop %v1424
  %v1426 = vadd.f32 %v1425, 1.0
  %v1427 = vrcp.pop %v1426
  %v1428 = vmul.f32 %v1426, %v1427
  %v1429 = vsub.f32 1.0, %v1428
  %v1430 = vmul.f32 %v1427, %v1429
  %v1431 = vadd.f32 %v1427, %v1430
  %vm1432 = vweird.f32 %v1426
  %vm1433 = vweird.f32 %v1427
  %vm1434 = vmor %vm1432, %vm1433
  %v1435 = vsel %vm1434, %v1427, %v1431
  %v1436 = vand.u32 2147483647, %v1426
  %vm1437 = vcmp.eq.f32.partialorder %v1436, 8.507059e+37
  %v1438 = vand.u32 %v1426, 2147483648
  %v1439 = vor.u32 1.1754944e-38, %v1438
  %v1440 = vsel %vm1437, %v1439, %v1435
  %v1441 = vmul.f32 1.0, %v1440
  %v1442 = vmul.f32 %v1421, %v1065
  %v1443 = vmul.f32 %v1402, %v1422
  %v1444 = vadd.f32 %v1442, %v1443
  %v1445 = vtanh.pop %v1444
  %v1446 = vmul.f32 %v1441, %v1445
  %1447 = vmatpush.msra.mxu0 %v685
  %1448 = vmatpush.msra.mxu0 %v681
  %1449 = vmatpush.msra.mxu0 %v677
  %1450 = vmatpush.msra.mxu0 %v673
  %1451 = vmatpush.msra.mxu0 %v669
  %1452 = vmatpush.msra.mxu0 %v665
  %1453 = vmatpush.msra.mxu0 %v661
  %1454 = vmatpush.msra.mxu0 %v657
  %1455 = vmatpush.msra.mxu0 %v653
  %1456 = vmatpush.msra.mxu0 %v649
  %1457 = vmatpush.msra.mxu0 %v645
  %1458 = vmatpush.msra.mxu0 %v641
  %1459 = vmatpush.msra.mxu0 %v637
  %1460 = vmatpush.msra.mxu0 %v633
  %1461 = vmatpush.msra.mxu0 %v629
  %1462 = vmatpush.msra.mxu0 %v625
  %1463 = vmatmul.f32.gmra.mxu0 %v1294
  %v1464 = vpop.f32.mrf.mxu0
  %v1465 = vadd.f32 0.0, %v1464
  %1466 = vdwg.mxu0
  %1467 = vmatpush.msra.mxu0 %v686
  %1468 = vmatpush.msra.mxu0 %v682
  %1469 = vmatpush.msra.mxu0 %v678
  %1470 = vmatpush.msra.mxu0 %v674
  %1471 = vmatpush.msra.mxu0 %v670
  %1472 = vmatpush.msra.mxu0 %v666
  %1473 = vmatpush.msra.mxu0 %v662
  %1474 = vmatpush.msra.mxu0 %v658
  %1475 = vmatpush.msra.mxu0 %v654
  %1476 = vmatpush.msra.mxu0 %v650
  %1477 = vmatpush.msra.mxu0 %v646
  %1478 = vmatpush.msra.mxu0 %v642
  %1479 = vmatpush.msra.mxu0 %v638
  %1480 = vmatpush.msra.mxu0 %v634
  %1481 = vmatpush.msra.mxu0 %v630
  %1482 = vmatpush.msra.mxu0 %v626
  %1483 = vmatmul.f32.gmra.mxu0 %v1294
  %v1484 = vpop.f32.mrf.mxu0
  %v1485 = vadd.f32 0.0, %v1484
  %1486 = vdwg.mxu0
  %1487 = vmatpush.msra.mxu0 %v687
  %1488 = vmatpush.msra.mxu0 %v683
  %1489 = vmatpush.msra.mxu0 %v679
  %1490 = vmatpush.msra.mxu0 %v675
  %1491 = vmatpush.msra.mxu0 %v671
  %1492 = vmatpush.msra.mxu0 %v667
  %1493 = vmatpush.msra.mxu0 %v663
  %1494 = vmatpush.msra.mxu0 %v659
  %1495 = vmatpush.msra.mxu0 %v655
  %1496 = vmatpush.msra.mxu0 %v651
  %1497 = vmatpush.msra.mxu0 %v647
  %1498 = vmatpush.msra.mxu0 %v643
  %1499 = vmatpush.msra.mxu0 %v639
  %1500 = vmatpush.msra.mxu0 %v635
  %1501 = vmatpush.msra.mxu0 %v631
  %1502 = vmatpush.msra.mxu0 %v627
  %1503 = vmatmul.f32.gmra.mxu0 %v1294
  %v1504 = vpop.f32.mrf.mxu0
  %v1505 = vadd.f32 0.0, %v1504
  %1506 = vdwg.mxu0
  %1507 = vmatpush.msra.mxu0 %v688
  %1508 = vmatpush.msra.mxu0 %v684
  %1509 = vmatpush.msra.mxu0 %v680
  %1510 = vmatpush.msra.mxu0 %v676
  %1511 = vmatpush.msra.mxu0 %v672
  %1512 = vmatpush.msra.mxu0 %v668
  %1513 = vmatpush.msra.mxu0 %v664
  %1514 = vmatpush.msra.mxu0 %v660
  %1515 = vmatpush.msra.mxu0 %v656
  %1516 = vmatpush.msra.mxu0 %v652
  %1517 = vmatpush.msra.mxu0 %v648
  %1518 = vmatpush.msra.mxu0 %v644
  %1519 = vmatpush.msra.mxu0 %v640
  %1520 = vmatpush.msra.mxu0 %v636
  %1521 = vmatpush.msra.mxu0 %v632
  %1522 = vmatpush.msra.mxu0 %v628
  %1523 = vmatmul.f32.gmra.mxu0 %v1294
  %v1524 = vpop.f32.mrf.mxu0
  %v1525 = vadd.f32 0.0, %v1524
  %1526 = vdwg.mxu0
  %1527 = vmatpush.msra.mxu0 %v621
  %1528 = vmatpush.msra.mxu0 %v617
  %1529 = vmatpush.msra.mxu0 %v613
  %1530 = vmatpush.msra.mxu0 %v609
  %1531 = vmatpush.msra.mxu0 %v605
  %1532 = vmatpush.msra.mxu0 %v601
  %1533 = vmatpush.msra.mxu0 %v597
  %1534 = vmatpush.msra.mxu0 %v593
  %1535 = vmatpush.msra.mxu0 %v589
  %1536 = vmatpush.msra.mxu0 %v585
  %1537 = vmatpush.msra.mxu0 %v581
  %1538 = vmatpush.msra.mxu0 %v577
  %1539 = vmatpush.msra.mxu0 %v573
  %1540 = vmatpush.msra.mxu0 %v569
  %1541 = vmatpush.msra.mxu0 %v565
  %1542 = vmatpush.msra.mxu0 %v561
  %1543 = vmatmul.f32.gmra.mxu0 %v1446
  %v1544 = vpop.f32.mrf.mxu0
  %v1545 = vadd.f32 %v1465, %v1544
  %1546 = vdwg.mxu0
  %1547 = vmatpush.msra.mxu0 %v622
  %1548 = vmatpush.msra.mxu0 %v618
  %1549 = vmatpush.msra.mxu0 %v614
  %1550 = vmatpush.msra.mxu0 %v610
  %1551 = vmatpush.msra.mxu0 %v606
  %1552 = vmatpush.msra.mxu0 %v602
  %1553 = vmatpush.msra.mxu0 %v598
  %1554 = vmatpush.msra.mxu0 %v594
  %1555 = vmatpush.msra.mxu0 %v590
  %1556 = vmatpush.msra.mxu0 %v586
  %1557 = vmatpush.msra.mxu0 %v582
  %1558 = vmatpush.msra.mxu0 %v578
  %1559 = vmatpush.msra.mxu0 %v574
  %1560 = vmatpush.msra.mxu0 %v570
  %1561 = vmatpush.msra.mxu0 %v566
  %1562 = vmatpush.msra.mxu0 %v562
  %1563 = vmatmul.f32.gmra.mxu0 %v1446
  %v1564 = vpop.f32.mrf.mxu0
  %v1565 = vadd.f32 %v1485, %v1564
  %1566 = vdwg.mxu0
  %1567 = vmatpush.msra.mxu0 %v623
  %1568 = vmatpush.msra.mxu0 %v619
  %1569 = vmatpush.msra.mxu0 %v615
  %1570 = vmatpush.msra.mxu0 %v611
  %1571 = vmatpush.msra.mxu0 %v607
  %1572 = vmatpush.msra.mxu0 %v603
  %1573 = vmatpush.msra.mxu0 %v599
  %1574 = vmatpush.msra.mxu0 %v595
  %1575 = vmatpush.msra.mxu0 %v591
  %1576 = vmatpush.msra.mxu0 %v587
  %1577 = vmatpush.msra.mxu0 %v583
  %1578 = vmatpush.msra.mxu0 %v579
  %1579 = vmatpush.msra.mxu0 %v575
  %1580 = vmatpush.msra.mxu0 %v571
  %1581 = vmatpush.msra.mxu0 %v567
  %1582 = vmatpush.msra.mxu0 %v563
  %1583 = vmatmul.f32.gmra.mxu0 %v1446
  %v1584 = vpop.f32.mrf.mxu0
  %v1585 = vadd.f32 %v1505, %v1584
  %1586 = vdwg.mxu0
  %1587 = vmatpush.msra.mxu0 %v624
  %1588 = vmatpush.msra.mxu0 %v620
  %1589 = vmatpush.msra.mxu0 %v616
  %1590 = vmatpush.msra.mxu0 %v612
  %1591 = vmatpush.msra.mxu0 %v608
  %1592 = vmatpush.msra.mxu0 %v604
  %1593 = vmatpush.msra.mxu0 %v600
  %1594 = vmatpush.msra.mxu0 %v596
  %1595 = vmatpush.msra.mxu0 %v592
  %1596 = vmatpush.msra.mxu0 %v588
  %1597 = vmatpush.msra.mxu0 %v584
  %1598 = vmatpush.msra.mxu0 %v580
  %1599 = vmatpush.msra.mxu0 %v576
  %1600 = vmatpush.msra.mxu0 %v572
  %1601 = vmatpush.msra.mxu0 %v568
  %1602 = vmatpush.msra.mxu0 %v564
  %1603 = vmatmul.f32.gmra.mxu0 %v1446
  %v1604 = vpop.f32.mrf.mxu0
  %v1605 = vadd.f32 %v1525, %v1604
  %1606 = vdwg.mxu0
  %v1607 = vadd.f32 %v1545, %v334
  %v1608 = vadd.f32 %v1565, %v335
  %v1609 = vadd.f32 %v1585, %v336
  %v1610 = vadd.f32 %v1605, %v337
  %v1611 = vxor.u32 %v1607, 2147483648
  %v1612 = vmul.f32 %v1611, 1.442695
  %v1613 = vpow.pop %v1612
  %v1614 = vadd.f32 %v1613, 1.0
  %v1615 = vrcp.pop %v1614
  %v1616 = vmul.f32 %v1614, %v1615
  %v1617 = vsub.f32 1.0, %v1616
  %v1618 = vmul.f32 %v1615, %v1617
  %v1619 = vadd.f32 %v1615, %v1618
  %vm1620 = vweird.f32 %v1614
  %vm1621 = vweird.f32 %v1615
  %vm1622 = vmor %vm1620, %vm1621
  %v1623 = vsel %vm1622, %v1615, %v1619
  %v1624 = vand.u32 2147483647, %v1614
  %vm1625 = vcmp.eq.f32.partialorder %v1624, 8.507059e+37
  %v1626 = vand.u32 %v1614, 2147483648
  %v1627 = vor.u32 1.1754944e-38, %v1626
  %v1628 = vsel %vm1625, %v1627, %v1623
  %v1629 = vmul.f32 1.0, %v1628
  %v1630 = vxor.u32 %v1608, 2147483648
  %v1631 = vmul.f32 %v1630, 1.442695
  %v1632 = vpow.pop %v1631
  %v1633 = vadd.f32 %v1632, 1.0
  %v1634 = vrcp.pop %v1633
  %v1635 = vmul.f32 %v1633, %v1634
  %v1636 = vsub.f32 1.0, %v1635
  %v1637 = vmul.f32 %v1634, %v1636
  %v1638 = vadd.f32 %v1634, %v1637
  %vm1639 = vweird.f32 %v1633
  %vm1640 = vweird.f32 %v1634
  %vm1641 = vmor %vm1639, %vm1640
  %v1642 = vsel %vm1641, %v1634, %v1638
  %v1643 = vand.u32 2147483647, %v1633
  %vm1644 = vcmp.eq.f32.partialorder %v1643, 8.507059e+37
  %v1645 = vand.u32 %v1633, 2147483648
  %v1646 = vor.u32 1.1754944e-38, %v1645
  %v1647 = vsel %vm1644, %v1646, %v1642
  %v1648 = vmul.f32 1.0, %v1647
  %v1649 = vtanh.pop %v1609
  %v1650 = vxor.u32 %v1610, 2147483648
  %v1651 = vmul.f32 %v1650, 1.442695
  %v1652 = vpow.pop %v1651
  %v1653 = vadd.f32 %v1652, 1.0
  %v1654 = vrcp.pop %v1653
  %v1655 = vmul.f32 %v1653, %v1654
  %v1656 = vsub.f32 1.0, %v1655
  %v1657 = vmul.f32 %v1654, %v1656
  %v1658 = vadd.f32 %v1654, %v1657
  %vm1659 = vweird.f32 %v1653
  %vm1660 = vweird.f32 %v1654
  %vm1661 = vmor %vm1659, %vm1660
  %v1662 = vsel %vm1661, %v1654, %v1658
  %v1663 = vand.u32 2147483647, %v1653
  %vm1664 = vcmp.eq.f32.partialorder %v1663, 8.507059e+37
  %v1665 = vand.u32 %v1653, 2147483648
  %v1666 = vor.u32 1.1754944e-38, %v1665
  %v1667 = vsel %vm1664, %v1666, %v1662
  %v1668 = vmul.f32 1.0, %v1667
  %v1669 = vmul.f32 %v1648, %v1292
  %v1670 = vmul.f32 %v1629, %v1649
  %v1671 = vadd.f32 %v1669, %v1670
  %v1672 = vtanh.pop %v1671
  %v1673 = vmul.f32 %v1668, %v1672
  %s1674 = scalar_lea.vmem [#allocation2], 96
  %v1675 = vld [vmem:[%s1674] sm:$0xff]
  %v1676 = vld [vmem:[%s1674 + $0x8] sm:$0xff]
  %v1677 = vld [vmem:[%s1674 + $0x10] sm:$0xff]
  %v1678 = vld [vmem:[%s1674 + $0x18] sm:$0xff]
  %1679 = vmatpush.msra.mxu0 %v410
  %1680 = vmatpush.msra.mxu0 %v406
  %1681 = vmatpush.msra.mxu0 %v402
  %1682 = vmatpush.msra.mxu0 %v398
  %1683 = vmatpush.msra.mxu0 %v394
  %1684 = vmatpush.msra.mxu0 %v390
  %1685 = vmatpush.msra.mxu0 %v386
  %1686 = vmatpush.msra.mxu0 %v382
  %1687 = vmatpush.msra.mxu0 %v378
  %1688 = vmatpush.msra.mxu0 %v374
  %1689 = vmatpush.msra.mxu0 %v370
  %1690 = vmatpush.msra.mxu0 %v366
  %1691 = vmatpush.msra.mxu0 %v362
  %1692 = vmatpush.msra.mxu0 %v358
  %1693 = vmatpush.msra.mxu0 %v354
  %1694 = vmatpush.msra.mxu0 %v350
  %1695 = vmatmul.f32.gmra.mxu0 %v1446
  %v1696 = vpop.f32.mrf.mxu0
  %v1697 = vadd.f32 0.0, %v1696
  %1698 = vdwg.mxu0
  %1699 = vmatpush.msra.mxu0 %v411
  %1700 = vmatpush.msra.mxu0 %v407
  %1701 = vmatpush.msra.mxu0 %v403
  %1702 = vmatpush.msra.mxu0 %v399
  %1703 = vmatpush.msra.mxu0 %v395
  %1704 = vmatpush.msra.mxu0 %v391
  %1705 = vmatpush.msra.mxu0 %v387
  %1706 = vmatpush.msra.mxu0 %v383
  %1707 = vmatpush.msra.mxu0 %v379
  %1708 = vmatpush.msra.mxu0 %v375
  %1709 = vmatpush.msra.mxu0 %v371
  %1710 = vmatpush.msra.mxu0 %v367
  %1711 = vmatpush.msra.mxu0 %v363
  %1712 = vmatpush.msra.mxu0 %v359
  %1713 = vmatpush.msra.mxu0 %v355
  %1714 = vmatpush.msra.mxu0 %v351
  %1715 = vmatmul.f32.gmra.mxu0 %v1446
  %v1716 = vpop.f32.mrf.mxu0
  %v1717 = vadd.f32 0.0, %v1716
  %1718 = vdwg.mxu0
  %1719 = vmatpush.msra.mxu0 %v412
  %1720 = vmatpush.msra.mxu0 %v408
  %1721 = vmatpush.msra.mxu0 %v404
  %1722 = vmatpush.msra.mxu0 %v400
  %1723 = vmatpush.msra.mxu0 %v396
  %1724 = vmatpush.msra.mxu0 %v392
  %1725 = vmatpush.msra.mxu0 %v388
  %1726 = vmatpush.msra.mxu0 %v384
  %1727 = vmatpush.msra.mxu0 %v380
  %1728 = vmatpush.msra.mxu0 %v376
  %1729 = vmatpush.msra.mxu0 %v372
  %1730 = vmatpush.msra.mxu0 %v368
  %1731 = vmatpush.msra.mxu0 %v364
  %1732 = vmatpush.msra.mxu0 %v360
  %1733 = vmatpush.msra.mxu0 %v356
  %1734 = vmatpush.msra.mxu0 %v352
  %1735 = vmatmul.f32.gmra.mxu0 %v1446
  %v1736 = vpop.f32.mrf.mxu0
  %v1737 = vadd.f32 0.0, %v1736
  %1738 = vdwg.mxu0
  %1739 = vmatpush.msra.mxu0 %v413
  %1740 = vmatpush.msra.mxu0 %v409
  %1741 = vmatpush.msra.mxu0 %v405
  %1742 = vmatpush.msra.mxu0 %v401
  %1743 = vmatpush.msra.mxu0 %v397
  %1744 = vmatpush.msra.mxu0 %v393
  %1745 = vmatpush.msra.mxu0 %v389
  %1746 = vmatpush.msra.mxu0 %v385
  %1747 = vmatpush.msra.mxu0 %v381
  %1748 = vmatpush.msra.mxu0 %v377
  %1749 = vmatpush.msra.mxu0 %v373
  %1750 = vmatpush.msra.mxu0 %v369
  %1751 = vmatpush.msra.mxu0 %v365
  %1752 = vmatpush.msra.mxu0 %v361
  %1753 = vmatpush.msra.mxu0 %v357
  %1754 = vmatpush.msra.mxu0 %v353
  %1755 = vmatmul.f32.gmra.mxu0 %v1446
  %v1756 = vpop.f32.mrf.mxu0
  %v1757 = vadd.f32 0.0, %v1756
  %1758 = vdwg.mxu0
  %v1759 = vadd.f32 %v1675, %v1697
  %v1760 = vadd.f32 %v1676, %v1717
  %v1761 = vadd.f32 %v1677, %v1737
  %v1762 = vadd.f32 %v1678, %v1757
  %v1763 = vxor.u32 %v1759, 2147483648
  %v1764 = vmul.f32 %v1763, 1.442695
  %v1765 = vpow.pop %v1764
  %v1766 = vadd.f32 %v1765, 1.0
  %v1767 = vrcp.pop %v1766
  %v1768 = vmul.f32 %v1766, %v1767
  %v1769 = vsub.f32 1.0, %v1768
  %v1770 = vmul.f32 %v1767, %v1769
  %v1771 = vadd.f32 %v1767, %v1770
  %vm1772 = vweird.f32 %v1766
  %vm1773 = vweird.f32 %v1767
  %vm1774 = vmor %vm1772, %vm1773
  %v1775 = vsel %vm1774, %v1767, %v1771
  %v1776 = vand.u32 2147483647, %v1766
  %vm1777 = vcmp.eq.f32.partialorder %v1776, 8.507059e+37
  %v1778 = vand.u32 %v1766, 2147483648
  %v1779 = vor.u32 1.1754944e-38, %v1778
  %v1780 = vsel %vm1777, %v1779, %v1775
  %v1781 = vmul.f32 1.0, %v1780
  %v1782 = vxor.u32 %v1760, 2147483648
  %v1783 = vmul.f32 %v1782, 1.442695
  %v1784 = vpow.pop %v1783
  %v1785 = vadd.f32 %v1784, 1.0
  %v1786 = vrcp.pop %v1785
  %v1787 = vmul.f32 %v1785, %v1786
  %v1788 = vsub.f32 1.0, %v1787
  %v1789 = vmul.f32 %v1786, %v1788
  %v1790 = vadd.f32 %v1786, %v1789
  %vm1791 = vweird.f32 %v1785
  %vm1792 = vweird.f32 %v1786
  %vm1793 = vmor %vm1791, %vm1792
  %v1794 = vsel %vm1793, %v1786, %v1790
  %v1795 = vand.u32 2147483647, %v1785
  %vm1796 = vcmp.eq.f32.partialorder %v1795, 8.507059e+37
  %v1797 = vand.u32 %v1785, 2147483648
  %v1798 = vor.u32 1.1754944e-38, %v1797
  %v1799 = vsel %vm1796, %v1798, %v1794
  %v1800 = vmul.f32 1.0, %v1799
  %v1801 = vtanh.pop %v1761
  %v1802 = vxor.u32 %v1762, 2147483648
  %v1803 = vmul.f32 %v1802, 1.442695
  %v1804 = vpow.pop %v1803
  %v1805 = vadd.f32 %v1804, 1.0
  %v1806 = vrcp.pop %v1805
  %v1807 = vmul.f32 %v1805, %v1806
  %v1808 = vsub.f32 1.0, %v1807
  %v1809 = vmul.f32 %v1806, %v1808
  %v1810 = vadd.f32 %v1806, %v1809
  %vm1811 = vweird.f32 %v1805
  %vm1812 = vweird.f32 %v1806
  %vm1813 = vmor %vm1811, %vm1812
  %v1814 = vsel %vm1813, %v1806, %v1810
  %v1815 = vand.u32 2147483647, %v1805
  %vm1816 = vcmp.eq.f32.partialorder %v1815, 8.507059e+37
  %v1817 = vand.u32 %v1805, 2147483648
  %v1818 = vor.u32 1.1754944e-38, %v1817
  %v1819 = vsel %vm1816, %v1818, %v1814
  %v1820 = vmul.f32 1.0, %v1819
  %v1821 = vmul.f32 %v1800, %v1444
  %v1822 = vmul.f32 %v1781, %v1801
  %v1823 = vadd.f32 %v1821, %v1822
  %v1824 = vtanh.pop %v1823
  %v1825 = vmul.f32 %v1820, %v1824
  %1826 = vmatpush.msra.mxu0 %v685
  %1827 = vmatpush.msra.mxu0 %v681
  %1828 = vmatpush.msra.mxu0 %v677
  %1829 = vmatpush.msra.mxu0 %v673
  %1830 = vmatpush.msra.mxu0 %v669
  %1831 = vmatpush.msra.mxu0 %v665
  %1832 = vmatpush.msra.mxu0 %v661
  %1833 = vmatpush.msra.mxu0 %v657
  %1834 = vmatpush.msra.mxu0 %v653
  %1835 = vmatpush.msra.mxu0 %v649
  %1836 = vmatpush.msra.mxu0 %v645
  %1837 = vmatpush.msra.mxu0 %v641
  %1838 = vmatpush.msra.mxu0 %v637
  %1839 = vmatpush.msra.mxu0 %v633
  %1840 = vmatpush.msra.mxu0 %v629
  %1841 = vmatpush.msra.mxu0 %v625
  %1842 = vmatmul.f32.gmra.mxu0 %v1673
  %v1843 = vpop.f32.mrf.mxu0
  %v1844 = vadd.f32 0.0, %v1843
  %1845 = vdwg.mxu0
  %1846 = vmatpush.msra.mxu0 %v686
  %1847 = vmatpush.msra.mxu0 %v682
  %1848 = vmatpush.msra.mxu0 %v678
  %1849 = vmatpush.msra.mxu0 %v674
  %1850 = vmatpush.msra.mxu0 %v670
  %1851 = vmatpush.msra.mxu0 %v666
  %1852 = vmatpush.msra.mxu0 %v662
  %1853 = vmatpush.msra.mxu0 %v658
  %1854 = vmatpush.msra.mxu0 %v654
  %1855 = vmatpush.msra.mxu0 %v650
  %1856 = vmatpush.msra.mxu0 %v646
  %1857 = vmatpush.msra.mxu0 %v642
  %1858 = vmatpush.msra.mxu0 %v638
  %1859 = vmatpush.msra.mxu0 %v634
  %1860 = vmatpush.msra.mxu0 %v630
  %1861 = vmatpush.msra.mxu0 %v626
  %1862 = vmatmul.f32.gmra.mxu0 %v1673
  %v1863 = vpop.f32.mrf.mxu0
  %v1864 = vadd.f32 0.0, %v1863
  %1865 = vdwg.mxu0
  %1866 = vmatpush.msra.mxu0 %v687
  %1867 = vmatpush.msra.mxu0 %v683
  %1868 = vmatpush.msra.mxu0 %v679
  %1869 = vmatpush.msra.mxu0 %v675
  %1870 = vmatpush.msra.mxu0 %v671
  %1871 = vmatpush.msra.mxu0 %v667
  %1872 = vmatpush.msra.mxu0 %v663
  %1873 = vmatpush.msra.mxu0 %v659
  %1874 = vmatpush.msra.mxu0 %v655
  %1875 = vmatpush.msra.mxu0 %v651
  %1876 = vmatpush.msra.mxu0 %v647
  %1877 = vmatpush.msra.mxu0 %v643
  %1878 = vmatpush.msra.mxu0 %v639
  %1879 = vmatpush.msra.mxu0 %v635
  %1880 = vmatpush.msra.mxu0 %v631
  %1881 = vmatpush.msra.mxu0 %v627
  %1882 = vmatmul.f32.gmra.mxu0 %v1673
  %v1883 = vpop.f32.mrf.mxu0
  %v1884 = vadd.f32 0.0, %v1883
  %1885 = vdwg.mxu0
  %1886 = vmatpush.msra.mxu0 %v688
  %1887 = vmatpush.msra.mxu0 %v684
  %1888 = vmatpush.msra.mxu0 %v680
  %1889 = vmatpush.msra.mxu0 %v676
  %1890 = vmatpush.msra.mxu0 %v672
  %1891 = vmatpush.msra.mxu0 %v668
  %1892 = vmatpush.msra.mxu0 %v664
  %1893 = vmatpush.msra.mxu0 %v660
  %1894 = vmatpush.msra.mxu0 %v656
  %1895 = vmatpush.msra.mxu0 %v652
  %1896 = vmatpush.msra.mxu0 %v648
  %1897 = vmatpush.msra.mxu0 %v644
  %1898 = vmatpush.msra.mxu0 %v640
  %1899 = vmatpush.msra.mxu0 %v636
  %1900 = vmatpush.msra.mxu0 %v632
  %1901 = vmatpush.msra.mxu0 %v628
  %1902 = vmatmul.f32.gmra.mxu0 %v1673
  %v1903 = vpop.f32.mrf.mxu0
  %v1904 = vadd.f32 0.0, %v1903
  %1905 = vdwg.mxu0
  %1906 = vmatpush.msra.mxu0 %v621
  %1907 = vmatpush.msra.mxu0 %v617
  %1908 = vmatpush.msra.mxu0 %v613
  %1909 = vmatpush.msra.mxu0 %v609
  %1910 = vmatpush.msra.mxu0 %v605
  %1911 = vmatpush.msra.mxu0 %v601
  %1912 = vmatpush.msra.mxu0 %v597
  %1913 = vmatpush.msra.mxu0 %v593
  %1914 = vmatpush.msra.mxu0 %v589
  %1915 = vmatpush.msra.mxu0 %v585
  %1916 = vmatpush.msra.mxu0 %v581
  %1917 = vmatpush.msra.mxu0 %v577
  %1918 = vmatpush.msra.mxu0 %v573
  %1919 = vmatpush.msra.mxu0 %v569
  %1920 = vmatpush.msra.mxu0 %v565
  %1921 = vmatpush.msra.mxu0 %v561
  %1922 = vmatmul.f32.gmra.mxu0 %v1825
  %v1923 = vpop.f32.mrf.mxu0
  %v1924 = vadd.f32 %v1844, %v1923
  %1925 = vdwg.mxu0
  %1926 = vmatpush.msra.mxu0 %v622
  %1927 = vmatpush.msra.mxu0 %v618
  %1928 = vmatpush.msra.mxu0 %v614
  %1929 = vmatpush.msra.mxu0 %v610
  %1930 = vmatpush.msra.mxu0 %v606
  %1931 = vmatpush.msra.mxu0 %v602
  %1932 = vmatpush.msra.mxu0 %v598
  %1933 = vmatpush.msra.mxu0 %v594
  %1934 = vmatpush.msra.mxu0 %v590
  %1935 = vmatpush.msra.mxu0 %v586
  %1936 = vmatpush.msra.mxu0 %v582
  %1937 = vmatpush.msra.mxu0 %v578
  %1938 = vmatpush.msra.mxu0 %v574
  %1939 = vmatpush.msra.mxu0 %v570
  %1940 = vmatpush.msra.mxu0 %v566
  %1941 = vmatpush.msra.mxu0 %v562
  %1942 = vmatmul.f32.gmra.mxu0 %v1825
  %v1943 = vpop.f32.mrf.mxu0
  %v1944 = vadd.f32 %v1864, %v1943
  %1945 = vdwg.mxu0
  %1946 = vmatpush.msra.mxu0 %v623
  %1947 = vmatpush.msra.mxu0 %v619
  %1948 = vmatpush.msra.mxu0 %v615
  %1949 = vmatpush.msra.mxu0 %v611
  %1950 = vmatpush.msra.mxu0 %v607
  %1951 = vmatpush.msra.mxu0 %v603
  %1952 = vmatpush.msra.mxu0 %v599
  %1953 = vmatpush.msra.mxu0 %v595
  %1954 = vmatpush.msra.mxu0 %v591
  %1955 = vmatpush.msra.mxu0 %v587
  %1956 = vmatpush.msra.mxu0 %v583
  %1957 = vmatpush.msra.mxu0 %v579
  %1958 = vmatpush.msra.mxu0 %v575
  %1959 = vmatpush.msra.mxu0 %v571
  %1960 = vmatpush.msra.mxu0 %v567
  %1961 = vmatpush.msra.mxu0 %v563
  %1962 = vmatmul.f32.gmra.mxu0 %v1825
  %v1963 = vpop.f32.mrf.mxu0
  %v1964 = vadd.f32 %v1884, %v1963
  %1965 = vdwg.mxu0
  %1966 = vmatpush.msra.mxu0 %v624
  %1967 = vmatpush.msra.mxu0 %v620
  %1968 = vmatpush.msra.mxu0 %v616
  %1969 = vmatpush.msra.mxu0 %v612
  %1970 = vmatpush.msra.mxu0 %v608
  %1971 = vmatpush.msra.mxu0 %v604
  %1972 = vmatpush.msra.mxu0 %v600
  %1973 = vmatpush.msra.mxu0 %v596
  %1974 = vmatpush.msra.mxu0 %v592
  %1975 = vmatpush.msra.mxu0 %v588
  %1976 = vmatpush.msra.mxu0 %v584
  %1977 = vmatpush.msra.mxu0 %v580
  %1978 = vmatpush.msra.mxu0 %v576
  %1979 = vmatpush.msra.mxu0 %v572
  %1980 = vmatpush.msra.mxu0 %v568
  %1981 = vmatpush.msra.mxu0 %v564
  %1982 = vmatmul.f32.gmra.mxu0 %v1825
  %v1983 = vpop.f32.mrf.mxu0
  %v1984 = vadd.f32 %v1904, %v1983
  %1985 = vdwg.mxu0
  %v1986 = vadd.f32 %v1924, %v334
  %v1987 = vadd.f32 %v1944, %v335
  %v1988 = vadd.f32 %v1964, %v336
  %v1989 = vadd.f32 %v1984, %v337
  %v1990 = vxor.u32 %v1986, 2147483648
  %v1991 = vmul.f32 %v1990, 1.442695
  %v1992 = vpow.pop %v1991
  %v1993 = vadd.f32 %v1992, 1.0
  %v1994 = vrcp.pop %v1993
  %v1995 = vmul.f32 %v1993, %v1994
  %v1996 = vsub.f32 1.0, %v1995
  %v1997 = vmul.f32 %v1994, %v1996
  %v1998 = vadd.f32 %v1994, %v1997
  %vm1999 = vweird.f32 %v1993
  %vm2000 = vweird.f32 %v1994
  %vm2001 = vmor %vm1999, %vm2000
  %v2002 = vsel %vm2001, %v1994, %v1998
  %v2003 = vand.u32 2147483647, %v1993
  %vm2004 = vcmp.eq.f32.partialorder %v2003, 8.507059e+37
  %v2005 = vand.u32 %v1993, 2147483648
  %v2006 = vor.u32 1.1754944e-38, %v2005
  %v2007 = vsel %vm2004, %v2006, %v2002
  %v2008 = vmul.f32 1.0, %v2007
  %v2009 = vxor.u32 %v1987, 2147483648
  %v2010 = vmul.f32 %v2009, 1.442695
  %v2011 = vpow.pop %v2010
  %v2012 = vadd.f32 %v2011, 1.0
  %v2013 = vrcp.pop %v2012
  %v2014 = vmul.f32 %v2012, %v2013
  %v2015 = vsub.f32 1.0, %v2014
  %v2016 = vmul.f32 %v2013, %v2015
  %v2017 = vadd.f32 %v2013, %v2016
  %vm2018 = vweird.f32 %v2012
  %vm2019 = vweird.f32 %v2013
  %vm2020 = vmor %vm2018, %vm2019
  %v2021 = vsel %vm2020, %v2013, %v2017
  %v2022 = vand.u32 2147483647, %v2012
  %vm2023 = vcmp.eq.f32.partialorder %v2022, 8.507059e+37
  %v2024 = vand.u32 %v2012, 2147483648
  %v2025 = vor.u32 1.1754944e-38, %v2024
  %v2026 = vsel %vm2023, %v2025, %v2021
  %v2027 = vmul.f32 1.0, %v2026
  %v2028 = vtanh.pop %v1988
  %v2029 = vxor.u32 %v1989, 2147483648
  %v2030 = vmul.f32 %v2029, 1.442695
  %v2031 = vpow.pop %v2030
  %v2032 = vadd.f32 %v2031, 1.0
  %v2033 = vrcp.pop %v2032
  %v2034 = vmul.f32 %v2032, %v2033
  %v2035 = vsub.f32 1.0, %v2034
  %v2036 = vmul.f32 %v2033, %v2035
  %v2037 = vadd.f32 %v2033, %v2036
  %vm2038 = vweird.f32 %v2032
  %vm2039 = vweird.f32 %v2033
  %vm2040 = vmor %vm2038, %vm2039
  %v2041 = vsel %vm2040, %v2033, %v2037
  %v2042 = vand.u32 2147483647, %v2032
  %vm2043 = vcmp.eq.f32.partialorder %v2042, 8.507059e+37
  %v2044 = vand.u32 %v2032, 2147483648
  %v2045 = vor.u32 1.1754944e-38, %v2044
  %v2046 = vsel %vm2043, %v2045, %v2041
  %v2047 = vmul.f32 1.0, %v2046
  %v2048 = vmul.f32 %v2027, %v1671
  %v2049 = vmul.f32 %v2008, %v2028
  %v2050 = vadd.f32 %v2048, %v2049
  %v2051 = vtanh.pop %v2050
  %v2052 = vmul.f32 %v2047, %v2051
  %s2053 = scalar_lea.vmem [#allocation2], 128
  %v2054 = vld [vmem:[%s2053] sm:$0xff]
  %v2055 = vld [vmem:[%s2053 + $0x8] sm:$0xff]
  %v2056 = vld [vmem:[%s2053 + $0x10] sm:$0xff]
  %v2057 = vld [vmem:[%s2053 + $0x18] sm:$0xff]
  %2058 = vmatpush.msra.mxu0 %v410
  %2059 = vmatpush.msra.mxu0 %v406
  %2060 = vmatpush.msra.mxu0 %v402
  %2061 = vmatpush.msra.mxu0 %v398
  %2062 = vmatpush.msra.mxu0 %v394
  %2063 = vmatpush.msra.mxu0 %v390
  %2064 = vmatpush.msra.mxu0 %v386
  %2065 = vmatpush.msra.mxu0 %v382
  %2066 = vmatpush.msra.mxu0 %v378
  %2067 = vmatpush.msra.mxu0 %v374
  %2068 = vmatpush.msra.mxu0 %v370
  %2069 = vmatpush.msra.mxu0 %v366
  %2070 = vmatpush.msra.mxu0 %v362
  %2071 = vmatpush.msra.mxu0 %v358
  %2072 = vmatpush.msra.mxu0 %v354
  %2073 = vmatpush.msra.mxu0 %v350
  %2074 = vmatmul.f32.gmra.mxu0 %v1825
  %v2075 = vpop.f32.mrf.mxu0
  %v2076 = vadd.f32 0.0, %v2075
  %2077 = vdwg.mxu0
  %2078 = vmatpush.msra.mxu0 %v411
  %2079 = vmatpush.msra.mxu0 %v407
  %2080 = vmatpush.msra.mxu0 %v403
  %2081 = vmatpush.msra.mxu0 %v399
  %2082 = vmatpush.msra.mxu0 %v395
  %2083 = vmatpush.msra.mxu0 %v391
  %2084 = vmatpush.msra.mxu0 %v387
  %2085 = vmatpush.msra.mxu0 %v383
  %2086 = vmatpush.msra.mxu0 %v379
  %2087 = vmatpush.msra.mxu0 %v375
  %2088 = vmatpush.msra.mxu0 %v371
  %2089 = vmatpush.msra.mxu0 %v367
  %2090 = vmatpush.msra.mxu0 %v363
  %2091 = vmatpush.msra.mxu0 %v359
  %2092 = vmatpush.msra.mxu0 %v355
  %2093 = vmatpush.msra.mxu0 %v351
  %2094 = vmatmul.f32.gmra.mxu0 %v1825
  %v2095 = vpop.f32.mrf.mxu0
  %v2096 = vadd.f32 0.0, %v2095
  %2097 = vdwg.mxu0
  %2098 = vmatpush.msra.mxu0 %v412
  %2099 = vmatpush.msra.mxu0 %v408
  %2100 = vmatpush.msra.mxu0 %v404
  %2101 = vmatpush.msra.mxu0 %v400
  %2102 = vmatpush.msra.mxu0 %v396
  %2103 = vmatpush.msra.mxu0 %v392
  %2104 = vmatpush.msra.mxu0 %v388
  %2105 = vmatpush.msra.mxu0 %v384
  %2106 = vmatpush.msra.mxu0 %v380
  %2107 = vmatpush.msra.mxu0 %v376
  %2108 = vmatpush.msra.mxu0 %v372
  %2109 = vmatpush.msra.mxu0 %v368
  %2110 = vmatpush.msra.mxu0 %v364
  %2111 = vmatpush.msra.mxu0 %v360
  %2112 = vmatpush.msra.mxu0 %v356
  %2113 = vmatpush.msra.mxu0 %v352
  %2114 = vmatmul.f32.gmra.mxu0 %v1825
  %v2115 = vpop.f32.mrf.mxu0
  %v2116 = vadd.f32 0.0, %v2115
  %2117 = vdwg.mxu0
  %2118 = vmatpush.msra.mxu0 %v413
  %2119 = vmatpush.msra.mxu0 %v409
  %2120 = vmatpush.msra.mxu0 %v405
  %2121 = vmatpush.msra.mxu0 %v401
  %2122 = vmatpush.msra.mxu0 %v397
  %2123 = vmatpush.msra.mxu0 %v393
  %2124 = vmatpush.msra.mxu0 %v389
  %2125 = vmatpush.msra.mxu0 %v385
  %2126 = vmatpush.msra.mxu0 %v381
  %2127 = vmatpush.msra.mxu0 %v377
  %2128 = vmatpush.msra.mxu0 %v373
  %2129 = vmatpush.msra.mxu0 %v369
  %2130 = vmatpush.msra.mxu0 %v365
  %2131 = vmatpush.msra.mxu0 %v361
  %2132 = vmatpush.msra.mxu0 %v357
  %2133 = vmatpush.msra.mxu0 %v353
  %2134 = vmatmul.f32.gmra.mxu0 %v1825
  %v2135 = vpop.f32.mrf.mxu0
  %v2136 = vadd.f32 0.0, %v2135
  %2137 = vdwg.mxu0
  %v2138 = vadd.f32 %v2054, %v2076
  %v2139 = vadd.f32 %v2055, %v2096
  %v2140 = vadd.f32 %v2056, %v2116
  %v2141 = vadd.f32 %v2057, %v2136
  %v2142 = vxor.u32 %v2138, 2147483648
  %v2143 = vmul.f32 %v2142, 1.442695
  %v2144 = vpow.pop %v2143
  %v2145 = vadd.f32 %v2144, 1.0
  %v2146 = vrcp.pop %v2145
  %v2147 = vmul.f32 %v2145, %v2146
  %v2148 = vsub.f32 1.0, %v2147
  %v2149 = vmul.f32 %v2146, %v2148
  %v2150 = vadd.f32 %v2146, %v2149
  %vm2151 = vweird.f32 %v2145
  %vm2152 = vweird.f32 %v2146
  %vm2153 = vmor %vm2151, %vm2152
  %v2154 = vsel %vm2153, %v2146, %v2150
  %v2155 = vand.u32 2147483647, %v2145
  %vm2156 = vcmp.eq.f32.partialorder %v2155, 8.507059e+37
  %v2157 = vand.u32 %v2145, 2147483648
  %v2158 = vor.u32 1.1754944e-38, %v2157
  %v2159 = vsel %vm2156, %v2158, %v2154
  %v2160 = vmul.f32 1.0, %v2159
  %v2161 = vxor.u32 %v2139, 2147483648
  %v2162 = vmul.f32 %v2161, 1.442695
  %v2163 = vpow.pop %v2162
  %v2164 = vadd.f32 %v2163, 1.0
  %v2165 = vrcp.pop %v2164
  %v2166 = vmul.f32 %v2164, %v2165
  %v2167 = vsub.f32 1.0, %v2166
  %v2168 = vmul.f32 %v2165, %v2167
  %v2169 = vadd.f32 %v2165, %v2168
  %vm2170 = vweird.f32 %v2164
  %vm2171 = vweird.f32 %v2165
  %vm2172 = vmor %vm2170, %vm2171
  %v2173 = vsel %vm2172, %v2165, %v2169
  %v2174 = vand.u32 2147483647, %v2164
  %vm2175 = vcmp.eq.f32.partialorder %v2174, 8.507059e+37
  %v2176 = vand.u32 %v2164, 2147483648
  %v2177 = vor.u32 1.1754944e-38, %v2176
  %v2178 = vsel %vm2175, %v2177, %v2173
  %v2179 = vmul.f32 1.0, %v2178
  %v2180 = vtanh.pop %v2140
  %v2181 = vxor.u32 %v2141, 2147483648
  %v2182 = vmul.f32 %v2181, 1.442695
  %v2183 = vpow.pop %v2182
  %v2184 = vadd.f32 %v2183, 1.0
  %v2185 = vrcp.pop %v2184
  %v2186 = vmul.f32 %v2184, %v2185
  %v2187 = vsub.f32 1.0, %v2186
  %v2188 = vmul.f32 %v2185, %v2187
  %v2189 = vadd.f32 %v2185, %v2188
  %vm2190 = vweird.f32 %v2184
  %vm2191 = vweird.f32 %v2185
  %vm2192 = vmor %vm2190, %vm2191
  %v2193 = vsel %vm2192, %v2185, %v2189
  %v2194 = vand.u32 2147483647, %v2184
  %vm2195 = vcmp.eq.f32.partialorder %v2194, 8.507059e+37
  %v2196 = vand.u32 %v2184, 2147483648
  %v2197 = vor.u32 1.1754944e-38, %v2196
  %v2198 = vsel %vm2195, %v2197, %v2193
  %v2199 = vmul.f32 1.0, %v2198
  %v2200 = vmul.f32 %v2179, %v1823
  %v2201 = vmul.f32 %v2160, %v2180
  %v2202 = vadd.f32 %v2200, %v2201
  %v2203 = vtanh.pop %v2202
  %v2204 = vmul.f32 %v2199, %v2203
  %2205 = vmatpush.msra.mxu0 %v685
  %2206 = vmatpush.msra.mxu0 %v681
  %2207 = vmatpush.msra.mxu0 %v677
  %2208 = vmatpush.msra.mxu0 %v673
  %2209 = vmatpush.msra.mxu0 %v669
  %2210 = vmatpush.msra.mxu0 %v665
  %2211 = vmatpush.msra.mxu0 %v661
  %2212 = vmatpush.msra.mxu0 %v657
  %2213 = vmatpush.msra.mxu0 %v653
  %2214 = vmatpush.msra.mxu0 %v649
  %2215 = vmatpush.msra.mxu0 %v645
  %2216 = vmatpush.msra.mxu0 %v641
  %2217 = vmatpush.msra.mxu0 %v637
  %2218 = vmatpush.msra.mxu0 %v633
  %2219 = vmatpush.msra.mxu0 %v629
  %2220 = vmatpush.msra.mxu0 %v625
  %2221 = vmatmul.f32.gmra.mxu0 %v2052
  %v2222 = vpop.f32.mrf.mxu0
  %v2223 = vadd.f32 0.0, %v2222
  %2224 = vdwg.mxu0
  %2225 = vmatpush.msra.mxu0 %v686
  %2226 = vmatpush.msra.mxu0 %v682
  %2227 = vmatpush.msra.mxu0 %v678
  %2228 = vmatpush.msra.mxu0 %v674
  %2229 = vmatpush.msra.mxu0 %v670
  %2230 = vmatpush.msra.mxu0 %v666
  %2231 = vmatpush.msra.mxu0 %v662
  %2232 = vmatpush.msra.mxu0 %v658
  %2233 = vmatpush.msra.mxu0 %v654
  %2234 = vmatpush.msra.mxu0 %v650
  %2235 = vmatpush.msra.mxu0 %v646
  %2236 = vmatpush.msra.mxu0 %v642
  %2237 = vmatpush.msra.mxu0 %v638
  %2238 = vmatpush.msra.mxu0 %v634
  %2239 = vmatpush.msra.mxu0 %v630
  %2240 = vmatpush.msra.mxu0 %v626
  %2241 = vmatmul.f32.gmra.mxu0 %v2052
  %v2242 = vpop.f32.mrf.mxu0
  %v2243 = vadd.f32 0.0, %v2242
  %2244 = vdwg.mxu0
  %2245 = vmatpush.msra.mxu0 %v687
  %2246 = vmatpush.msra.mxu0 %v683
  %2247 = vmatpush.msra.mxu0 %v679
  %2248 = vmatpush.msra.mxu0 %v675
  %2249 = vmatpush.msra.mxu0 %v671
  %2250 = vmatpush.msra.mxu0 %v667
  %2251 = vmatpush.msra.mxu0 %v663
  %2252 = vmatpush.msra.mxu0 %v659
  %2253 = vmatpush.msra.mxu0 %v655
  %2254 = vmatpush.msra.mxu0 %v651
  %2255 = vmatpush.msra.mxu0 %v647
  %2256 = vmatpush.msra.mxu0 %v643
  %2257 = vmatpush.msra.mxu0 %v639
  %2258 = vmatpush.msra.mxu0 %v635
  %2259 = vmatpush.msra.mxu0 %v631
  %2260 = vmatpush.msra.mxu0 %v627
  %2261 = vmatmul.f32.gmra.mxu0 %v2052
  %v2262 = vpop.f32.mrf.mxu0
  %v2263 = vadd.f32 0.0, %v2262
  %2264 = vdwg.mxu0
  %2265 = vmatpush.msra.mxu0 %v688
  %2266 = vmatpush.msra.mxu0 %v684
  %2267 = vmatpush.msra.mxu0 %v680
  %2268 = vmatpush.msra.mxu0 %v676
  %2269 = vmatpush.msra.mxu0 %v672
  %2270 = vmatpush.msra.mxu0 %v668
  %2271 = vmatpush.msra.mxu0 %v664
  %2272 = vmatpush.msra.mxu0 %v660
  %2273 = vmatpush.msra.mxu0 %v656
  %2274 = vmatpush.msra.mxu0 %v652
  %2275 = vmatpush.msra.mxu0 %v648
  %2276 = vmatpush.msra.mxu0 %v644
  %2277 = vmatpush.msra.mxu0 %v640
  %2278 = vmatpush.msra.mxu0 %v636
  %2279 = vmatpush.msra.mxu0 %v632
  %2280 = vmatpush.msra.mxu0 %v628
  %2281 = vmatmul.f32.gmra.mxu0 %v2052
  %v2282 = vpop.f32.mrf.mxu0
  %v2283 = vadd.f32 0.0, %v2282
  %2284 = vdwg.mxu0
  %2285 = vmatpush.msra.mxu0 %v621
  %2286 = vmatpush.msra.mxu0 %v617
  %2287 = vmatpush.msra.mxu0 %v613
  %2288 = vmatpush.msra.mxu0 %v609
  %2289 = vmatpush.msra.mxu0 %v605
  %2290 = vmatpush.msra.mxu0 %v601
  %2291 = vmatpush.msra.mxu0 %v597
  %2292 = vmatpush.msra.mxu0 %v593
  %2293 = vmatpush.msra.mxu0 %v589
  %2294 = vmatpush.msra.mxu0 %v585
  %2295 = vmatpush.msra.mxu0 %v581
  %2296 = vmatpush.msra.mxu0 %v577
  %2297 = vmatpush.msra.mxu0 %v573
  %2298 = vmatpush.msra.mxu0 %v569
  %2299 = vmatpush.msra.mxu0 %v565
  %2300 = vmatpush.msra.mxu0 %v561
  %2301 = vmatmul.f32.gmra.mxu0 %v2204
  %v2302 = vpop.f32.mrf.mxu0
  %v2303 = vadd.f32 %v2223, %v2302
  %2304 = vdwg.mxu0
  %2305 = vmatpush.msra.mxu0 %v622
  %2306 = vmatpush.msra.mxu0 %v618
  %2307 = vmatpush.msra.mxu0 %v614
  %2308 = vmatpush.msra.mxu0 %v610
  %2309 = vmatpush.msra.mxu0 %v606
  %2310 = vmatpush.msra.mxu0 %v602
  %2311 = vmatpush.msra.mxu0 %v598
  %2312 = vmatpush.msra.mxu0 %v594
  %2313 = vmatpush.msra.mxu0 %v590
  %2314 = vmatpush.msra.mxu0 %v586
  %2315 = vmatpush.msra.mxu0 %v582
  %2316 = vmatpush.msra.mxu0 %v578
  %2317 = vmatpush.msra.mxu0 %v574
  %2318 = vmatpush.msra.mxu0 %v570
  %2319 = vmatpush.msra.mxu0 %v566
  %2320 = vmatpush.msra.mxu0 %v562
  %2321 = vmatmul.f32.gmra.mxu0 %v2204
  %v2322 = vpop.f32.mrf.mxu0
  %v2323 = vadd.f32 %v2243, %v2322
  %2324 = vdwg.mxu0
  %2325 = vmatpush.msra.mxu0 %v623
  %2326 = vmatpush.msra.mxu0 %v619
  %2327 = vmatpush.msra.mxu0 %v615
  %2328 = vmatpush.msra.mxu0 %v611
  %2329 = vmatpush.msra.mxu0 %v607
  %2330 = vmatpush.msra.mxu0 %v603
  %2331 = vmatpush.msra.mxu0 %v599
  %2332 = vmatpush.msra.mxu0 %v595
  %2333 = vmatpush.msra.mxu0 %v591
  %2334 = vmatpush.msra.mxu0 %v587
  %2335 = vmatpush.msra.mxu0 %v583
  %2336 = vmatpush.msra.mxu0 %v579
  %2337 = vmatpush.msra.mxu0 %v575
  %2338 = vmatpush.msra.mxu0 %v571
  %2339 = vmatpush.msra.mxu0 %v567
  %2340 = vmatpush.msra.mxu0 %v563
  %2341 = vmatmul.f32.gmra.mxu0 %v2204
  %v2342 = vpop.f32.mrf.mxu0
  %v2343 = vadd.f32 %v2263, %v2342
  %2344 = vdwg.mxu0
  %2345 = vmatpush.msra.mxu0 %v624
  %2346 = vmatpush.msra.mxu0 %v620
  %2347 = vmatpush.msra.mxu0 %v616
  %2348 = vmatpush.msra.mxu0 %v612
  %2349 = vmatpush.msra.mxu0 %v608
  %2350 = vmatpush.msra.mxu0 %v604
  %2351 = vmatpush.msra.mxu0 %v600
  %2352 = vmatpush.msra.mxu0 %v596
  %2353 = vmatpush.msra.mxu0 %v592
  %2354 = vmatpush.msra.mxu0 %v588
  %2355 = vmatpush.msra.mxu0 %v584
  %2356 = vmatpush.msra.mxu0 %v580
  %2357 = vmatpush.msra.mxu0 %v576
  %2358 = vmatpush.msra.mxu0 %v572
  %2359 = vmatpush.msra.mxu0 %v568
  %2360 = vmatpush.msra.mxu0 %v564
  %2361 = vmatmul.f32.gmra.mxu0 %v2204
  %v2362 = vpop.f32.mrf.mxu0
  %v2363 = vadd.f32 %v2283, %v2362
  %2364 = vdwg.mxu0
  %v2365 = vadd.f32 %v2303, %v334
  %v2366 = vadd.f32 %v2323, %v335
  %v2367 = vadd.f32 %v2343, %v336
  %v2368 = vadd.f32 %v2363, %v337
  %v2369 = vxor.u32 %v2365, 2147483648
  %v2370 = vmul.f32 %v2369, 1.442695
  %v2371 = vpow.pop %v2370
  %v2372 = vadd.f32 %v2371, 1.0
  %v2373 = vrcp.pop %v2372
  %v2374 = vmul.f32 %v2372, %v2373
  %v2375 = vsub.f32 1.0, %v2374
  %v2376 = vmul.f32 %v2373, %v2375
  %v2377 = vadd.f32 %v2373, %v2376
  %vm2378 = vweird.f32 %v2372
  %vm2379 = vweird.f32 %v2373
  %vm2380 = vmor %vm2378, %vm2379
  %v2381 = vsel %vm2380, %v2373, %v2377
  %v2382 = vand.u32 2147483647, %v2372
  %vm2383 = vcmp.eq.f32.partialorder %v2382, 8.507059e+37
  %v2384 = vand.u32 %v2372, 2147483648
  %v2385 = vor.u32 1.1754944e-38, %v2384
  %v2386 = vsel %vm2383, %v2385, %v2381
  %v2387 = vmul.f32 1.0, %v2386
  %v2388 = vxor.u32 %v2366, 2147483648
  %v2389 = vmul.f32 %v2388, 1.442695
  %v2390 = vpow.pop %v2389
  %v2391 = vadd.f32 %v2390, 1.0
  %v2392 = vrcp.pop %v2391
  %v2393 = vmul.f32 %v2391, %v2392
  %v2394 = vsub.f32 1.0, %v2393
  %v2395 = vmul.f32 %v2392, %v2394
  %v2396 = vadd.f32 %v2392, %v2395
  %vm2397 = vweird.f32 %v2391
  %vm2398 = vweird.f32 %v2392
  %vm2399 = vmor %vm2397, %vm2398
  %v2400 = vsel %vm2399, %v2392, %v2396
  %v2401 = vand.u32 2147483647, %v2391
  %vm2402 = vcmp.eq.f32.partialorder %v2401, 8.507059e+37
  %v2403 = vand.u32 %v2391, 2147483648
  %v2404 = vor.u32 1.1754944e-38, %v2403
  %v2405 = vsel %vm2402, %v2404, %v2400
  %v2406 = vmul.f32 1.0, %v2405
  %v2407 = vtanh.pop %v2367
  %v2408 = vxor.u32 %v2368, 2147483648
  %v2409 = vmul.f32 %v2408, 1.442695
  %v2410 = vpow.pop %v2409
  %v2411 = vadd.f32 %v2410, 1.0
  %v2412 = vrcp.pop %v2411
  %v2413 = vmul.f32 %v2411, %v2412
  %v2414 = vsub.f32 1.0, %v2413
  %v2415 = vmul.f32 %v2412, %v2414
  %v2416 = vadd.f32 %v2412, %v2415
  %vm2417 = vweird.f32 %v2411
  %vm2418 = vweird.f32 %v2412
  %vm2419 = vmor %vm2417, %vm2418
  %v2420 = vsel %vm2419, %v2412, %v2416
  %v2421 = vand.u32 2147483647, %v2411
  %vm2422 = vcmp.eq.f32.partialorder %v2421, 8.507059e+37
  %v2423 = vand.u32 %v2411, 2147483648
  %v2424 = vor.u32 1.1754944e-38, %v2423
  %v2425 = vsel %vm2422, %v2424, %v2420
  %v2426 = vmul.f32 1.0, %v2425
  %v2427 = vmul.f32 %v2406, %v2050
  %v2428 = vmul.f32 %v2387, %v2407
  %v2429 = vadd.f32 %v2427, %v2428
  %v2430 = vtanh.pop %v2429
  %v2431 = vmul.f32 %v2426, %v2430
  %s2432 = scalar_lea.vmem [#allocation2], 160
  %v2433 = vld [vmem:[%s2432] sm:$0xff]
  %v2434 = vld [vmem:[%s2432 + $0x8] sm:$0xff]
  %v2435 = vld [vmem:[%s2432 + $0x10] sm:$0xff]
  %v2436 = vld [vmem:[%s2432 + $0x18] sm:$0xff]
  %2437 = vmatpush.msra.mxu0 %v410
  %2438 = vmatpush.msra.mxu0 %v406
  %2439 = vmatpush.msra.mxu0 %v402
  %2440 = vmatpush.msra.mxu0 %v398
  %2441 = vmatpush.msra.mxu0 %v394
  %2442 = vmatpush.msra.mxu0 %v390
  %2443 = vmatpush.msra.mxu0 %v386
  %2444 = vmatpush.msra.mxu0 %v382
  %2445 = vmatpush.msra.mxu0 %v378
  %2446 = vmatpush.msra.mxu0 %v374
  %2447 = vmatpush.msra.mxu0 %v370
  %2448 = vmatpush.msra.mxu0 %v366
  %2449 = vmatpush.msra.mxu0 %v362
  %2450 = vmatpush.msra.mxu0 %v358
  %2451 = vmatpush.msra.mxu0 %v354
  %2452 = vmatpush.msra.mxu0 %v350
  %2453 = vmatmul.f32.gmra.mxu0 %v2204
  %v2454 = vpop.f32.mrf.mxu0
  %v2455 = vadd.f32 0.0, %v2454
  %2456 = vdwg.mxu0
  %2457 = vmatpush.msra.mxu0 %v411
  %2458 = vmatpush.msra.mxu0 %v407
  %2459 = vmatpush.msra.mxu0 %v403
  %2460 = vmatpush.msra.mxu0 %v399
  %2461 = vmatpush.msra.mxu0 %v395
  %2462 = vmatpush.msra.mxu0 %v391
  %2463 = vmatpush.msra.mxu0 %v387
  %2464 = vmatpush.msra.mxu0 %v383
  %2465 = vmatpush.msra.mxu0 %v379
  %2466 = vmatpush.msra.mxu0 %v375
  %2467 = vmatpush.msra.mxu0 %v371
  %2468 = vmatpush.msra.mxu0 %v367
  %2469 = vmatpush.msra.mxu0 %v363
  %2470 = vmatpush.msra.mxu0 %v359
  %2471 = vmatpush.msra.mxu0 %v355
  %2472 = vmatpush.msra.mxu0 %v351
  %2473 = vmatmul.f32.gmra.mxu0 %v2204
  %v2474 = vpop.f32.mrf.mxu0
  %v2475 = vadd.f32 0.0, %v2474
  %2476 = vdwg.mxu0
  %2477 = vmatpush.msra.mxu0 %v412
  %2478 = vmatpush.msra.mxu0 %v408
  %2479 = vmatpush.msra.mxu0 %v404
  %2480 = vmatpush.msra.mxu0 %v400
  %2481 = vmatpush.msra.mxu0 %v396
  %2482 = vmatpush.msra.mxu0 %v392
  %2483 = vmatpush.msra.mxu0 %v388
  %2484 = vmatpush.msra.mxu0 %v384
  %2485 = vmatpush.msra.mxu0 %v380
  %2486 = vmatpush.msra.mxu0 %v376
  %2487 = vmatpush.msra.mxu0 %v372
  %2488 = vmatpush.msra.mxu0 %v368
  %2489 = vmatpush.msra.mxu0 %v364
  %2490 = vmatpush.msra.mxu0 %v360
  %2491 = vmatpush.msra.mxu0 %v356
  %2492 = vmatpush.msra.mxu0 %v352
  %2493 = vmatmul.f32.gmra.mxu0 %v2204
  %v2494 = vpop.f32.mrf.mxu0
  %v2495 = vadd.f32 0.0, %v2494
  %2496 = vdwg.mxu0
  %2497 = vmatpush.msra.mxu0 %v413
  %2498 = vmatpush.msra.mxu0 %v409
  %2499 = vmatpush.msra.mxu0 %v405
  %2500 = vmatpush.msra.mxu0 %v401
  %2501 = vmatpush.msra.mxu0 %v397
  %2502 = vmatpush.msra.mxu0 %v393
  %2503 = vmatpush.msra.mxu0 %v389
  %2504 = vmatpush.msra.mxu0 %v385
  %2505 = vmatpush.msra.mxu0 %v381
  %2506 = vmatpush.msra.mxu0 %v377
  %2507 = vmatpush.msra.mxu0 %v373
  %2508 = vmatpush.msra.mxu0 %v369
  %2509 = vmatpush.msra.mxu0 %v365
  %2510 = vmatpush.msra.mxu0 %v361
  %2511 = vmatpush.msra.mxu0 %v357
  %2512 = vmatpush.msra.mxu0 %v353
  %2513 = vmatmul.f32.gmra.mxu0 %v2204
  %v2514 = vpop.f32.mrf.mxu0
  %v2515 = vadd.f32 0.0, %v2514
  %2516 = vdwg.mxu0
  %v2517 = vadd.f32 %v2433, %v2455
  %v2518 = vadd.f32 %v2434, %v2475
  %v2519 = vadd.f32 %v2435, %v2495
  %v2520 = vadd.f32 %v2436, %v2515
  %v2521 = vxor.u32 %v2517, 2147483648
  %v2522 = vmul.f32 %v2521, 1.442695
  %v2523 = vpow.pop %v2522
  %v2524 = vadd.f32 %v2523, 1.0
  %v2525 = vrcp.pop %v2524
  %v2526 = vmul.f32 %v2524, %v2525
  %v2527 = vsub.f32 1.0, %v2526
  %v2528 = vmul.f32 %v2525, %v2527
  %v2529 = vadd.f32 %v2525, %v2528
  %vm2530 = vweird.f32 %v2524
  %vm2531 = vweird.f32 %v2525
  %vm2532 = vmor %vm2530, %vm2531
  %v2533 = vsel %vm2532, %v2525, %v2529
  %v2534 = vand.u32 2147483647, %v2524
  %vm2535 = vcmp.eq.f32.partialorder %v2534, 8.507059e+37
  %v2536 = vand.u32 %v2524, 2147483648
  %v2537 = vor.u32 1.1754944e-38, %v2536
  %v2538 = vsel %vm2535, %v2537, %v2533
  %v2539 = vmul.f32 1.0, %v2538
  %v2540 = vxor.u32 %v2518, 2147483648
  %v2541 = vmul.f32 %v2540, 1.442695
  %v2542 = vpow.pop %v2541
  %v2543 = vadd.f32 %v2542, 1.0
  %v2544 = vrcp.pop %v2543
  %v2545 = vmul.f32 %v2543, %v2544
  %v2546 = vsub.f32 1.0, %v2545
  %v2547 = vmul.f32 %v2544, %v2546
  %v2548 = vadd.f32 %v2544, %v2547
  %vm2549 = vweird.f32 %v2543
  %vm2550 = vweird.f32 %v2544
  %vm2551 = vmor %vm2549, %vm2550
  %v2552 = vsel %vm2551, %v2544, %v2548
  %v2553 = vand.u32 2147483647, %v2543
  %vm2554 = vcmp.eq.f32.partialorder %v2553, 8.507059e+37
  %v2555 = vand.u32 %v2543, 2147483648
  %v2556 = vor.u32 1.1754944e-38, %v2555
  %v2557 = vsel %vm2554, %v2556, %v2552
  %v2558 = vmul.f32 1.0, %v2557
  %v2559 = vtanh.pop %v2519
  %v2560 = vxor.u32 %v2520, 2147483648
  %v2561 = vmul.f32 %v2560, 1.442695
  %v2562 = vpow.pop %v2561
  %v2563 = vadd.f32 %v2562, 1.0
  %v2564 = vrcp.pop %v2563
  %v2565 = vmul.f32 %v2563, %v2564
  %v2566 = vsub.f32 1.0, %v2565
  %v2567 = vmul.f32 %v2564, %v2566
  %v2568 = vadd.f32 %v2564, %v2567
  %vm2569 = vweird.f32 %v2563
  %vm2570 = vweird.f32 %v2564
  %vm2571 = vmor %vm2569, %vm2570
  %v2572 = vsel %vm2571, %v2564, %v2568
  %v2573 = vand.u32 2147483647, %v2563
  %vm2574 = vcmp.eq.f32.partialorder %v2573, 8.507059e+37
  %v2575 = vand.u32 %v2563, 2147483648
  %v2576 = vor.u32 1.1754944e-38, %v2575
  %v2577 = vsel %vm2574, %v2576, %v2572
  %v2578 = vmul.f32 1.0, %v2577
  %v2579 = vmul.f32 %v2558, %v2202
  %v2580 = vmul.f32 %v2539, %v2559
  %v2581 = vadd.f32 %v2579, %v2580
  %v2582 = vtanh.pop %v2581
  %v2583 = vmul.f32 %v2578, %v2582
  %2584 = vmatpush.msra.mxu0 %v685
  %2585 = vmatpush.msra.mxu0 %v681
  %2586 = vmatpush.msra.mxu0 %v677
  %2587 = vmatpush.msra.mxu0 %v673
  %2588 = vmatpush.msra.mxu0 %v669
  %2589 = vmatpush.msra.mxu0 %v665
  %2590 = vmatpush.msra.mxu0 %v661
  %2591 = vmatpush.msra.mxu0 %v657
  %2592 = vmatpush.msra.mxu0 %v653
  %2593 = vmatpush.msra.mxu0 %v649
  %2594 = vmatpush.msra.mxu0 %v645
  %2595 = vmatpush.msra.mxu0 %v641
  %2596 = vmatpush.msra.mxu0 %v637
  %2597 = vmatpush.msra.mxu0 %v633
  %2598 = vmatpush.msra.mxu0 %v629
  %2599 = vmatpush.msra.mxu0 %v625
  %2600 = vmatmul.f32.gmra.mxu0 %v2431
  %v2601 = vpop.f32.mrf.mxu0
  %v2602 = vadd.f32 0.0, %v2601
  %2603 = vdwg.mxu0
  %2604 = vmatpush.msra.mxu0 %v686
  %2605 = vmatpush.msra.mxu0 %v682
  %2606 = vmatpush.msra.mxu0 %v678
  %2607 = vmatpush.msra.mxu0 %v674
  %2608 = vmatpush.msra.mxu0 %v670
  %2609 = vmatpush.msra.mxu0 %v666
  %2610 = vmatpush.msra.mxu0 %v662
  %2611 = vmatpush.msra.mxu0 %v658
  %2612 = vmatpush.msra.mxu0 %v654
  %2613 = vmatpush.msra.mxu0 %v650
  %2614 = vmatpush.msra.mxu0 %v646
  %2615 = vmatpush.msra.mxu0 %v642
  %2616 = vmatpush.msra.mxu0 %v638
  %2617 = vmatpush.msra.mxu0 %v634
  %2618 = vmatpush.msra.mxu0 %v630
  %2619 = vmatpush.msra.mxu0 %v626
  %2620 = vmatmul.f32.gmra.mxu0 %v2431
  %v2621 = vpop.f32.mrf.mxu0
  %v2622 = vadd.f32 0.0, %v2621
  %2623 = vdwg.mxu0
  %2624 = vmatpush.msra.mxu0 %v687
  %2625 = vmatpush.msra.mxu0 %v683
  %2626 = vmatpush.msra.mxu0 %v679
  %2627 = vmatpush.msra.mxu0 %v675
  %2628 = vmatpush.msra.mxu0 %v671
  %2629 = vmatpush.msra.mxu0 %v667
  %2630 = vmatpush.msra.mxu0 %v663
  %2631 = vmatpush.msra.mxu0 %v659
  %2632 = vmatpush.msra.mxu0 %v655
  %2633 = vmatpush.msra.mxu0 %v651
  %2634 = vmatpush.msra.mxu0 %v647
  %2635 = vmatpush.msra.mxu0 %v643
  %2636 = vmatpush.msra.mxu0 %v639
  %2637 = vmatpush.msra.mxu0 %v635
  %2638 = vmatpush.msra.mxu0 %v631
  %2639 = vmatpush.msra.mxu0 %v627
  %2640 = vmatmul.f32.gmra.mxu0 %v2431
  %v2641 = vpop.f32.mrf.mxu0
  %v2642 = vadd.f32 0.0, %v2641
  %2643 = vdwg.mxu0
  %2644 = vmatpush.msra.mxu0 %v688
  %2645 = vmatpush.msra.mxu0 %v684
  %2646 = vmatpush.msra.mxu0 %v680
  %2647 = vmatpush.msra.mxu0 %v676
  %2648 = vmatpush.msra.mxu0 %v672
  %2649 = vmatpush.msra.mxu0 %v668
  %2650 = vmatpush.msra.mxu0 %v664
  %2651 = vmatpush.msra.mxu0 %v660
  %2652 = vmatpush.msra.mxu0 %v656
  %2653 = vmatpush.msra.mxu0 %v652
  %2654 = vmatpush.msra.mxu0 %v648
  %2655 = vmatpush.msra.mxu0 %v644
  %2656 = vmatpush.msra.mxu0 %v640
  %2657 = vmatpush.msra.mxu0 %v636
  %2658 = vmatpush.msra.mxu0 %v632
  %2659 = vmatpush.msra.mxu0 %v628
  %2660 = vmatmul.f32.gmra.mxu0 %v2431
  %v2661 = vpop.f32.mrf.mxu0
  %v2662 = vadd.f32 0.0, %v2661
  %2663 = vdwg.mxu0
  %2664 = vmatpush.msra.mxu0 %v621
  %2665 = vmatpush.msra.mxu0 %v617
  %2666 = vmatpush.msra.mxu0 %v613
  %2667 = vmatpush.msra.mxu0 %v609
  %2668 = vmatpush.msra.mxu0 %v605
  %2669 = vmatpush.msra.mxu0 %v601
  %2670 = vmatpush.msra.mxu0 %v597
  %2671 = vmatpush.msra.mxu0 %v593
  %2672 = vmatpush.msra.mxu0 %v589
  %2673 = vmatpush.msra.mxu0 %v585
  %2674 = vmatpush.msra.mxu0 %v581
  %2675 = vmatpush.msra.mxu0 %v577
  %2676 = vmatpush.msra.mxu0 %v573
  %2677 = vmatpush.msra.mxu0 %v569
  %2678 = vmatpush.msra.mxu0 %v565
  %2679 = vmatpush.msra.mxu0 %v561
  %2680 = vmatmul.f32.gmra.mxu0 %v2583
  %v2681 = vpop.f32.mrf.mxu0
  %v2682 = vadd.f32 %v2602, %v2681
  %2683 = vdwg.mxu0
  %2684 = vmatpush.msra.mxu0 %v622
  %2685 = vmatpush.msra.mxu0 %v618
  %2686 = vmatpush.msra.mxu0 %v614
  %2687 = vmatpush.msra.mxu0 %v610
  %2688 = vmatpush.msra.mxu0 %v606
  %2689 = vmatpush.msra.mxu0 %v602
  %2690 = vmatpush.msra.mxu0 %v598
  %2691 = vmatpush.msra.mxu0 %v594
  %2692 = vmatpush.msra.mxu0 %v590
  %2693 = vmatpush.msra.mxu0 %v586
  %2694 = vmatpush.msra.mxu0 %v582
  %2695 = vmatpush.msra.mxu0 %v578
  %2696 = vmatpush.msra.mxu0 %v574
  %2697 = vmatpush.msra.mxu0 %v570
  %2698 = vmatpush.msra.mxu0 %v566
  %2699 = vmatpush.msra.mxu0 %v562
  %2700 = vmatmul.f32.gmra.mxu0 %v2583
  %v2701 = vpop.f32.mrf.mxu0
  %v2702 = vadd.f32 %v2622, %v2701
  %2703 = vdwg.mxu0
  %2704 = vmatpush.msra.mxu0 %v623
  %2705 = vmatpush.msra.mxu0 %v619
  %2706 = vmatpush.msra.mxu0 %v615
  %2707 = vmatpush.msra.mxu0 %v611
  %2708 = vmatpush.msra.mxu0 %v607
  %2709 = vmatpush.msra.mxu0 %v603
  %2710 = vmatpush.msra.mxu0 %v599
  %2711 = vmatpush.msra.mxu0 %v595
  %2712 = vmatpush.msra.mxu0 %v591
  %2713 = vmatpush.msra.mxu0 %v587
  %2714 = vmatpush.msra.mxu0 %v583
  %2715 = vmatpush.msra.mxu0 %v579
  %2716 = vmatpush.msra.mxu0 %v575
  %2717 = vmatpush.msra.mxu0 %v571
  %2718 = vmatpush.msra.mxu0 %v567
  %2719 = vmatpush.msra.mxu0 %v563
  %2720 = vmatmul.f32.gmra.mxu0 %v2583
  %v2721 = vpop.f32.mrf.mxu0
  %v2722 = vadd.f32 %v2642, %v2721
  %2723 = vdwg.mxu0
  %2724 = vmatpush.msra.mxu0 %v624
  %2725 = vmatpush.msra.mxu0 %v620
  %2726 = vmatpush.msra.mxu0 %v616
  %2727 = vmatpush.msra.mxu0 %v612
  %2728 = vmatpush.msra.mxu0 %v608
  %2729 = vmatpush.msra.mxu0 %v604
  %2730 = vmatpush.msra.mxu0 %v600
  %2731 = vmatpush.msra.mxu0 %v596
  %2732 = vmatpush.msra.mxu0 %v592
  %2733 = vmatpush.msra.mxu0 %v588
  %2734 = vmatpush.msra.mxu0 %v584
  %2735 = vmatpush.msra.mxu0 %v580
  %2736 = vmatpush.msra.mxu0 %v576
  %2737 = vmatpush.msra.mxu0 %v572
  %2738 = vmatpush.msra.mxu0 %v568
  %2739 = vmatpush.msra.mxu0 %v564
  %2740 = vmatmul.f32.gmra.mxu0 %v2583
  %v2741 = vpop.f32.mrf.mxu0
  %v2742 = vadd.f32 %v2662, %v2741
  %2743 = vdwg.mxu0
  %v2744 = vadd.f32 %v2682, %v334
  %v2745 = vadd.f32 %v2702, %v335
  %v2746 = vadd.f32 %v2722, %v336
  %v2747 = vadd.f32 %v2742, %v337
  %v2748 = vxor.u32 %v2744, 2147483648
  %v2749 = vmul.f32 %v2748, 1.442695
  %v2750 = vpow.pop %v2749
  %v2751 = vadd.f32 %v2750, 1.0
  %v2752 = vrcp.pop %v2751
  %v2753 = vmul.f32 %v2751, %v2752
  %v2754 = vsub.f32 1.0, %v2753
  %v2755 = vmul.f32 %v2752, %v2754
  %v2756 = vadd.f32 %v2752, %v2755
  %vm2757 = vweird.f32 %v2751
  %vm2758 = vweird.f32 %v2752
  %vm2759 = vmor %vm2757, %vm2758
  %v2760 = vsel %vm2759, %v2752, %v2756
  %v2761 = vand.u32 2147483647, %v2751
  %vm2762 = vcmp.eq.f32.partialorder %v2761, 8.507059e+37
  %v2763 = vand.u32 %v2751, 2147483648
  %v2764 = vor.u32 1.1754944e-38, %v2763
  %v2765 = vsel %vm2762, %v2764, %v2760
  %v2766 = vmul.f32 1.0, %v2765
  %v2767 = vxor.u32 %v2745, 2147483648
  %v2768 = vmul.f32 %v2767, 1.442695
  %v2769 = vpow.pop %v2768
  %v2770 = vadd.f32 %v2769, 1.0
  %v2771 = vrcp.pop %v2770
  %v2772 = vmul.f32 %v2770, %v2771
  %v2773 = vsub.f32 1.0, %v2772
  %v2774 = vmul.f32 %v2771, %v2773
  %v2775 = vadd.f32 %v2771, %v2774
  %vm2776 = vweird.f32 %v2770
  %vm2777 = vweird.f32 %v2771
  %vm2778 = vmor %vm2776, %vm2777
  %v2779 = vsel %vm2778, %v2771, %v2775
  %v2780 = vand.u32 2147483647, %v2770
  %vm2781 = vcmp.eq.f32.partialorder %v2780, 8.507059e+37
  %v2782 = vand.u32 %v2770, 2147483648
  %v2783 = vor.u32 1.1754944e-38, %v2782
  %v2784 = vsel %vm2781, %v2783, %v2779
  %v2785 = vmul.f32 1.0, %v2784
  %v2786 = vtanh.pop %v2746
  %v2787 = vxor.u32 %v2747, 2147483648
  %v2788 = vmul.f32 %v2787, 1.442695
  %v2789 = vpow.pop %v2788
  %v2790 = vadd.f32 %v2789, 1.0
  %v2791 = vrcp.pop %v2790
  %v2792 = vmul.f32 %v2790, %v2791
  %v2793 = vsub.f32 1.0, %v2792
  %v2794 = vmul.f32 %v2791, %v2793
  %v2795 = vadd.f32 %v2791, %v2794
  %vm2796 = vweird.f32 %v2790
  %vm2797 = vweird.f32 %v2791
  %vm2798 = vmor %vm2796, %vm2797
  %v2799 = vsel %vm2798, %v2791, %v2795
  %v2800 = vand.u32 2147483647, %v2790
  %vm2801 = vcmp.eq.f32.partialorder %v2800, 8.507059e+37
  %v2802 = vand.u32 %v2790, 2147483648
  %v2803 = vor.u32 1.1754944e-38, %v2802
  %v2804 = vsel %vm2801, %v2803, %v2799
  %v2805 = vmul.f32 1.0, %v2804
  %v2806 = vmul.f32 %v2785, %v2429
  %v2807 = vmul.f32 %v2766, %v2786
  %v2808 = vadd.f32 %v2806, %v2807
  %v2809 = vtanh.pop %v2808
  %v2810 = vmul.f32 %v2805, %v2809
  %s2811 = scalar_lea.vmem [#allocation2], 192
  %v2812 = vld [vmem:[%s2811] sm:$0xff]
  %v2813 = vld [vmem:[%s2811 + $0x8] sm:$0xff]
  %v2814 = vld [vmem:[%s2811 + $0x10] sm:$0xff]
  %v2815 = vld [vmem:[%s2811 + $0x18] sm:$0xff]
  %2816 = vmatpush.msra.mxu0 %v410
  %2817 = vmatpush.msra.mxu0 %v406
  %2818 = vmatpush.msra.mxu0 %v402
  %2819 = vmatpush.msra.mxu0 %v398
  %2820 = vmatpush.msra.mxu0 %v394
  %2821 = vmatpush.msra.mxu0 %v390
  %2822 = vmatpush.msra.mxu0 %v386
  %2823 = vmatpush.msra.mxu0 %v382
  %2824 = vmatpush.msra.mxu0 %v378
  %2825 = vmatpush.msra.mxu0 %v374
  %2826 = vmatpush.msra.mxu0 %v370
  %2827 = vmatpush.msra.mxu0 %v366
  %2828 = vmatpush.msra.mxu0 %v362
  %2829 = vmatpush.msra.mxu0 %v358
  %2830 = vmatpush.msra.mxu0 %v354
  %2831 = vmatpush.msra.mxu0 %v350
  %2832 = vmatmul.f32.gmra.mxu0 %v2583
  %v2833 = vpop.f32.mrf.mxu0
  %v2834 = vadd.f32 0.0, %v2833
  %2835 = vdwg.mxu0
  %2836 = vmatpush.msra.mxu0 %v411
  %2837 = vmatpush.msra.mxu0 %v407
  %2838 = vmatpush.msra.mxu0 %v403
  %2839 = vmatpush.msra.mxu0 %v399
  %2840 = vmatpush.msra.mxu0 %v395
  %2841 = vmatpush.msra.mxu0 %v391
  %2842 = vmatpush.msra.mxu0 %v387
  %2843 = vmatpush.msra.mxu0 %v383
  %2844 = vmatpush.msra.mxu0 %v379
  %2845 = vmatpush.msra.mxu0 %v375
  %2846 = vmatpush.msra.mxu0 %v371
  %2847 = vmatpush.msra.mxu0 %v367
  %2848 = vmatpush.msra.mxu0 %v363
  %2849 = vmatpush.msra.mxu0 %v359
  %2850 = vmatpush.msra.mxu0 %v355
  %2851 = vmatpush.msra.mxu0 %v351
  %2852 = vmatmul.f32.gmra.mxu0 %v2583
  %v2853 = vpop.f32.mrf.mxu0
  %v2854 = vadd.f32 0.0, %v2853
  %2855 = vdwg.mxu0
  %2856 = vmatpush.msra.mxu0 %v412
  %2857 = vmatpush.msra.mxu0 %v408
  %2858 = vmatpush.msra.mxu0 %v404
  %2859 = vmatpush.msra.mxu0 %v400
  %2860 = vmatpush.msra.mxu0 %v396
  %2861 = vmatpush.msra.mxu0 %v392
  %2862 = vmatpush.msra.mxu0 %v388
  %2863 = vmatpush.msra.mxu0 %v384
  %2864 = vmatpush.msra.mxu0 %v380
  %2865 = vmatpush.msra.mxu0 %v376
  %2866 = vmatpush.msra.mxu0 %v372
  %2867 = vmatpush.msra.mxu0 %v368
  %2868 = vmatpush.msra.mxu0 %v364
  %2869 = vmatpush.msra.mxu0 %v360
  %2870 = vmatpush.msra.mxu0 %v356
  %2871 = vmatpush.msra.mxu0 %v352
  %2872 = vmatmul.f32.gmra.mxu0 %v2583
  %v2873 = vpop.f32.mrf.mxu0
  %v2874 = vadd.f32 0.0, %v2873
  %2875 = vdwg.mxu0
  %2876 = vmatpush.msra.mxu0 %v413
  %2877 = vmatpush.msra.mxu0 %v409
  %2878 = vmatpush.msra.mxu0 %v405
  %2879 = vmatpush.msra.mxu0 %v401
  %2880 = vmatpush.msra.mxu0 %v397
  %2881 = vmatpush.msra.mxu0 %v393
  %2882 = vmatpush.msra.mxu0 %v389
  %2883 = vmatpush.msra.mxu0 %v385
  %2884 = vmatpush.msra.mxu0 %v381
  %2885 = vmatpush.msra.mxu0 %v377
  %2886 = vmatpush.msra.mxu0 %v373
  %2887 = vmatpush.msra.mxu0 %v369
  %2888 = vmatpush.msra.mxu0 %v365
  %2889 = vmatpush.msra.mxu0 %v361
  %2890 = vmatpush.msra.mxu0 %v357
  %2891 = vmatpush.msra.mxu0 %v353
  %2892 = vmatmul.f32.gmra.mxu0 %v2583
  %v2893 = vpop.f32.mrf.mxu0
  %v2894 = vadd.f32 0.0, %v2893
  %2895 = vdwg.mxu0
  %v2896 = vadd.f32 %v2812, %v2834
  %v2897 = vadd.f32 %v2813, %v2854
  %v2898 = vadd.f32 %v2814, %v2874
  %v2899 = vadd.f32 %v2815, %v2894
  %v2900 = vxor.u32 %v2896, 2147483648
  %v2901 = vmul.f32 %v2900, 1.442695
  %v2902 = vpow.pop %v2901
  %v2903 = vadd.f32 %v2902, 1.0
  %v2904 = vrcp.pop %v2903
  %v2905 = vmul.f32 %v2903, %v2904
  %v2906 = vsub.f32 1.0, %v2905
  %v2907 = vmul.f32 %v2904, %v2906
  %v2908 = vadd.f32 %v2904, %v2907
  %vm2909 = vweird.f32 %v2903
  %vm2910 = vweird.f32 %v2904
  %vm2911 = vmor %vm2909, %vm2910
  %v2912 = vsel %vm2911, %v2904, %v2908
  %v2913 = vand.u32 2147483647, %v2903
  %vm2914 = vcmp.eq.f32.partialorder %v2913, 8.507059e+37
  %v2915 = vand.u32 %v2903, 2147483648
  %v2916 = vor.u32 1.1754944e-38, %v2915
  %v2917 = vsel %vm2914, %v2916, %v2912
  %v2918 = vmul.f32 1.0, %v2917
  %v2919 = vxor.u32 %v2897, 2147483648
  %v2920 = vmul.f32 %v2919, 1.442695
  %v2921 = vpow.pop %v2920
  %v2922 = vadd.f32 %v2921, 1.0
  %v2923 = vrcp.pop %v2922
  %v2924 = vmul.f32 %v2922, %v2923
  %v2925 = vsub.f32 1.0, %v2924
  %v2926 = vmul.f32 %v2923, %v2925
  %v2927 = vadd.f32 %v2923, %v2926
  %vm2928 = vweird.f32 %v2922
  %vm2929 = vweird.f32 %v2923
  %vm2930 = vmor %vm2928, %vm2929
  %v2931 = vsel %vm2930, %v2923, %v2927
  %v2932 = vand.u32 2147483647, %v2922
  %vm2933 = vcmp.eq.f32.partialorder %v2932, 8.507059e+37
  %v2934 = vand.u32 %v2922, 2147483648
  %v2935 = vor.u32 1.1754944e-38, %v2934
  %v2936 = vsel %vm2933, %v2935, %v2931
  %v2937 = vmul.f32 1.0, %v2936
  %v2938 = vtanh.pop %v2898
  %v2939 = vxor.u32 %v2899, 2147483648
  %v2940 = vmul.f32 %v2939, 1.442695
  %v2941 = vpow.pop %v2940
  %v2942 = vadd.f32 %v2941, 1.0
  %v2943 = vrcp.pop %v2942
  %v2944 = vmul.f32 %v2942, %v2943
  %v2945 = vsub.f32 1.0, %v2944
  %v2946 = vmul.f32 %v2943, %v2945
  %v2947 = vadd.f32 %v2943, %v2946
  %vm2948 = vweird.f32 %v2942
  %vm2949 = vweird.f32 %v2943
  %vm2950 = vmor %vm2948, %vm2949
  %v2951 = vsel %vm2950, %v2943, %v2947
  %v2952 = vand.u32 2147483647, %v2942
  %vm2953 = vcmp.eq.f32.partialorder %v2952, 8.507059e+37
  %v2954 = vand.u32 %v2942, 2147483648
  %v2955 = vor.u32 1.1754944e-38, %v2954
  %v2956 = vsel %vm2953, %v2955, %v2951
  %v2957 = vmul.f32 1.0, %v2956
  %v2958 = vmul.f32 %v2937, %v2581
  %v2959 = vmul.f32 %v2918, %v2938
  %v2960 = vadd.f32 %v2958, %v2959
  %v2961 = vtanh.pop %v2960
  %v2962 = vmul.f32 %v2957, %v2961
  %2963 = vmatpush.msra.mxu0 %v685
  %2964 = vmatpush.msra.mxu0 %v681
  %2965 = vmatpush.msra.mxu0 %v677
  %2966 = vmatpush.msra.mxu0 %v673
  %2967 = vmatpush.msra.mxu0 %v669
  %2968 = vmatpush.msra.mxu0 %v665
  %2969 = vmatpush.msra.mxu0 %v661
  %2970 = vmatpush.msra.mxu0 %v657
  %2971 = vmatpush.msra.mxu0 %v653
  %2972 = vmatpush.msra.mxu0 %v649
  %2973 = vmatpush.msra.mxu0 %v645
  %2974 = vmatpush.msra.mxu0 %v641
  %2975 = vmatpush.msra.mxu0 %v637
  %2976 = vmatpush.msra.mxu0 %v633
  %2977 = vmatpush.msra.mxu0 %v629
  %2978 = vmatpush.msra.mxu0 %v625
  %2979 = vmatmul.f32.gmra.mxu0 %v2810
  %v2980 = vpop.f32.mrf.mxu0
  %v2981 = vadd.f32 0.0, %v2980
  %2982 = vdwg.mxu0
  %2983 = vmatpush.msra.mxu0 %v686
  %2984 = vmatpush.msra.mxu0 %v682
  %2985 = vmatpush.msra.mxu0 %v678
  %2986 = vmatpush.msra.mxu0 %v674
  %2987 = vmatpush.msra.mxu0 %v670
  %2988 = vmatpush.msra.mxu0 %v666
  %2989 = vmatpush.msra.mxu0 %v662
  %2990 = vmatpush.msra.mxu0 %v658
  %2991 = vmatpush.msra.mxu0 %v654
  %2992 = vmatpush.msra.mxu0 %v650
  %2993 = vmatpush.msra.mxu0 %v646
  %2994 = vmatpush.msra.mxu0 %v642
  %2995 = vmatpush.msra.mxu0 %v638
  %2996 = vmatpush.msra.mxu0 %v634
  %2997 = vmatpush.msra.mxu0 %v630
  %2998 = vmatpush.msra.mxu0 %v626
  %2999 = vmatmul.f32.gmra.mxu0 %v2810
  %v3000 = vpop.f32.mrf.mxu0
  %v3001 = vadd.f32 0.0, %v3000
  %3002 = vdwg.mxu0
  %3003 = vmatpush.msra.mxu0 %v687
  %3004 = vmatpush.msra.mxu0 %v683
  %3005 = vmatpush.msra.mxu0 %v679
  %3006 = vmatpush.msra.mxu0 %v675
  %3007 = vmatpush.msra.mxu0 %v671
  %3008 = vmatpush.msra.mxu0 %v667
  %3009 = vmatpush.msra.mxu0 %v663
  %3010 = vmatpush.msra.mxu0 %v659
  %3011 = vmatpush.msra.mxu0 %v655
  %3012 = vmatpush.msra.mxu0 %v651
  %3013 = vmatpush.msra.mxu0 %v647
  %3014 = vmatpush.msra.mxu0 %v643
  %3015 = vmatpush.msra.mxu0 %v639
  %3016 = vmatpush.msra.mxu0 %v635
  %3017 = vmatpush.msra.mxu0 %v631
  %3018 = vmatpush.msra.mxu0 %v627
  %3019 = vmatmul.f32.gmra.mxu0 %v2810
  %v3020 = vpop.f32.mrf.mxu0
  %v3021 = vadd.f32 0.0, %v3020
  %3022 = vdwg.mxu0
  %3023 = vmatpush.msra.mxu0 %v688
  %3024 = vmatpush.msra.mxu0 %v684
  %3025 = vmatpush.msra.mxu0 %v680
  %3026 = vmatpush.msra.mxu0 %v676
  %3027 = vmatpush.msra.mxu0 %v672
  %3028 = vmatpush.msra.mxu0 %v668
  %3029 = vmatpush.msra.mxu0 %v664
  %3030 = vmatpush.msra.mxu0 %v660
  %3031 = vmatpush.msra.mxu0 %v656
  %3032 = vmatpush.msra.mxu0 %v652
  %3033 = vmatpush.msra.mxu0 %v648
  %3034 = vmatpush.msra.mxu0 %v644
  %3035 = vmatpush.msra.mxu0 %v640
  %3036 = vmatpush.msra.mxu0 %v636
  %3037 = vmatpush.msra.mxu0 %v632
  %3038 = vmatpush.msra.mxu0 %v628
  %3039 = vmatmul.f32.gmra.mxu0 %v2810
  %v3040 = vpop.f32.mrf.mxu0
  %v3041 = vadd.f32 0.0, %v3040
  %3042 = vdwg.mxu0
  %3043 = vmatpush.msra.mxu0 %v621
  %3044 = vmatpush.msra.mxu0 %v617
  %3045 = vmatpush.msra.mxu0 %v613
  %3046 = vmatpush.msra.mxu0 %v609
  %3047 = vmatpush.msra.mxu0 %v605
  %3048 = vmatpush.msra.mxu0 %v601
  %3049 = vmatpush.msra.mxu0 %v597
  %3050 = vmatpush.msra.mxu0 %v593
  %3051 = vmatpush.msra.mxu0 %v589
  %3052 = vmatpush.msra.mxu0 %v585
  %3053 = vmatpush.msra.mxu0 %v581
  %3054 = vmatpush.msra.mxu0 %v577
  %3055 = vmatpush.msra.mxu0 %v573
  %3056 = vmatpush.msra.mxu0 %v569
  %3057 = vmatpush.msra.mxu0 %v565
  %3058 = vmatpush.msra.mxu0 %v561
  %3059 = vmatmul.f32.gmra.mxu0 %v2962
  %v3060 = vpop.f32.mrf.mxu0
  %v3061 = vadd.f32 %v2981, %v3060
  %3062 = vdwg.mxu0
  %3063 = vmatpush.msra.mxu0 %v622
  %3064 = vmatpush.msra.mxu0 %v618
  %3065 = vmatpush.msra.mxu0 %v614
  %3066 = vmatpush.msra.mxu0 %v610
  %3067 = vmatpush.msra.mxu0 %v606
  %3068 = vmatpush.msra.mxu0 %v602
  %3069 = vmatpush.msra.mxu0 %v598
  %3070 = vmatpush.msra.mxu0 %v594
  %3071 = vmatpush.msra.mxu0 %v590
  %3072 = vmatpush.msra.mxu0 %v586
  %3073 = vmatpush.msra.mxu0 %v582
  %3074 = vmatpush.msra.mxu0 %v578
  %3075 = vmatpush.msra.mxu0 %v574
  %3076 = vmatpush.msra.mxu0 %v570
  %3077 = vmatpush.msra.mxu0 %v566
  %3078 = vmatpush.msra.mxu0 %v562
  %3079 = vmatmul.f32.gmra.mxu0 %v2962
  %v3080 = vpop.f32.mrf.mxu0
  %v3081 = vadd.f32 %v3001, %v3080
  %3082 = vdwg.mxu0
  %3083 = vmatpush.msra.mxu0 %v623
  %3084 = vmatpush.msra.mxu0 %v619
  %3085 = vmatpush.msra.mxu0 %v615
  %3086 = vmatpush.msra.mxu0 %v611
  %3087 = vmatpush.msra.mxu0 %v607
  %3088 = vmatpush.msra.mxu0 %v603
  %3089 = vmatpush.msra.mxu0 %v599
  %3090 = vmatpush.msra.mxu0 %v595
  %3091 = vmatpush.msra.mxu0 %v591
  %3092 = vmatpush.msra.mxu0 %v587
  %3093 = vmatpush.msra.mxu0 %v583
  %3094 = vmatpush.msra.mxu0 %v579
  %3095 = vmatpush.msra.mxu0 %v575
  %3096 = vmatpush.msra.mxu0 %v571
  %3097 = vmatpush.msra.mxu0 %v567
  %3098 = vmatpush.msra.mxu0 %v563
  %3099 = vmatmul.f32.gmra.mxu0 %v2962
  %v3100 = vpop.f32.mrf.mxu0
  %v3101 = vadd.f32 %v3021, %v3100
  %3102 = vdwg.mxu0
  %3103 = vmatpush.msra.mxu0 %v624
  %3104 = vmatpush.msra.mxu0 %v620
  %3105 = vmatpush.msra.mxu0 %v616
  %3106 = vmatpush.msra.mxu0 %v612
  %3107 = vmatpush.msra.mxu0 %v608
  %3108 = vmatpush.msra.mxu0 %v604
  %3109 = vmatpush.msra.mxu0 %v600
  %3110 = vmatpush.msra.mxu0 %v596
  %3111 = vmatpush.msra.mxu0 %v592
  %3112 = vmatpush.msra.mxu0 %v588
  %3113 = vmatpush.msra.mxu0 %v584
  %3114 = vmatpush.msra.mxu0 %v580
  %3115 = vmatpush.msra.mxu0 %v576
  %3116 = vmatpush.msra.mxu0 %v572
  %3117 = vmatpush.msra.mxu0 %v568
  %3118 = vmatpush.msra.mxu0 %v564
  %3119 = vmatmul.f32.gmra.mxu0 %v2962
  %v3120 = vpop.f32.mrf.mxu0
  %v3121 = vadd.f32 %v3041, %v3120
  %3122 = vdwg.mxu0
  %v3123 = vadd.f32 %v3061, %v334
  %v3124 = vadd.f32 %v3081, %v335
  %v3125 = vadd.f32 %v3101, %v336
  %v3126 = vadd.f32 %v3121, %v337
  %v3127 = vxor.u32 %v3123, 2147483648
  %v3128 = vmul.f32 %v3127, 1.442695
  %v3129 = vpow.pop %v3128
  %v3130 = vadd.f32 %v3129, 1.0
  %v3131 = vrcp.pop %v3130
  %v3132 = vmul.f32 %v3130, %v3131
  %v3133 = vsub.f32 1.0, %v3132
  %v3134 = vmul.f32 %v3131, %v3133
  %v3135 = vadd.f32 %v3131, %v3134
  %vm3136 = vweird.f32 %v3130
  %vm3137 = vweird.f32 %v3131
  %vm3138 = vmor %vm3136, %vm3137
  %v3139 = vsel %vm3138, %v3131, %v3135
  %v3140 = vand.u32 2147483647, %v3130
  %vm3141 = vcmp.eq.f32.partialorder %v3140, 8.507059e+37
  %v3142 = vand.u32 %v3130, 2147483648
  %v3143 = vor.u32 1.1754944e-38, %v3142
  %v3144 = vsel %vm3141, %v3143, %v3139
  %v3145 = vmul.f32 1.0, %v3144
  %v3146 = vxor.u32 %v3124, 2147483648
  %v3147 = vmul.f32 %v3146, 1.442695
  %v3148 = vpow.pop %v3147
  %v3149 = vadd.f32 %v3148, 1.0
  %v3150 = vrcp.pop %v3149
  %v3151 = vmul.f32 %v3149, %v3150
  %v3152 = vsub.f32 1.0, %v3151
  %v3153 = vmul.f32 %v3150, %v3152
  %v3154 = vadd.f32 %v3150, %v3153
  %vm3155 = vweird.f32 %v3149
  %vm3156 = vweird.f32 %v3150
  %vm3157 = vmor %vm3155, %vm3156
  %v3158 = vsel %vm3157, %v3150, %v3154
  %v3159 = vand.u32 2147483647, %v3149
  %vm3160 = vcmp.eq.f32.partialorder %v3159, 8.507059e+37
  %v3161 = vand.u32 %v3149, 2147483648
  %v3162 = vor.u32 1.1754944e-38, %v3161
  %v3163 = vsel %vm3160, %v3162, %v3158
  %v3164 = vmul.f32 1.0, %v3163
  %v3165 = vtanh.pop %v3125
  %v3166 = vxor.u32 %v3126, 2147483648
  %v3167 = vmul.f32 %v3166, 1.442695
  %v3168 = vpow.pop %v3167
  %v3169 = vadd.f32 %v3168, 1.0
  %v3170 = vrcp.pop %v3169
  %v3171 = vmul.f32 %v3169, %v3170
  %v3172 = vsub.f32 1.0, %v3171
  %v3173 = vmul.f32 %v3170, %v3172
  %v3174 = vadd.f32 %v3170, %v3173
  %vm3175 = vweird.f32 %v3169
  %vm3176 = vweird.f32 %v3170
  %vm3177 = vmor %vm3175, %vm3176
  %v3178 = vsel %vm3177, %v3170, %v3174
  %v3179 = vand.u32 2147483647, %v3169
  %vm3180 = vcmp.eq.f32.partialorder %v3179, 8.507059e+37
  %v3181 = vand.u32 %v3169, 2147483648
  %v3182 = vor.u32 1.1754944e-38, %v3181
  %v3183 = vsel %vm3180, %v3182, %v3178
  %v3184 = vmul.f32 1.0, %v3183
  %v3185 = vmul.f32 %v3164, %v2808
  %v3186 = vmul.f32 %v3145, %v3165
  %v3187 = vadd.f32 %v3185, %v3186
  %v3188 = vtanh.pop %v3187
  %v3189 = vmul.f32 %v3184, %v3188
  %s3190 = scalar_lea.vmem [#allocation2], 224
  %v3191 = vld [vmem:[%s3190] sm:$0xff]
  %v3192 = vld [vmem:[%s3190 + $0x8] sm:$0xff]
  %v3193 = vld [vmem:[%s3190 + $0x10] sm:$0xff]
  %v3194 = vld [vmem:[%s3190 + $0x18] sm:$0xff]
  %3195 = vmatpush.msra.mxu0 %v410
  %3196 = vmatpush.msra.mxu0 %v406
  %3197 = vmatpush.msra.mxu0 %v402
  %3198 = vmatpush.msra.mxu0 %v398
  %3199 = vmatpush.msra.mxu0 %v394
  %3200 = vmatpush.msra.mxu0 %v390
  %3201 = vmatpush.msra.mxu0 %v386
  %3202 = vmatpush.msra.mxu0 %v382
  %3203 = vmatpush.msra.mxu0 %v378
  %3204 = vmatpush.msra.mxu0 %v374
  %3205 = vmatpush.msra.mxu0 %v370
  %3206 = vmatpush.msra.mxu0 %v366
  %3207 = vmatpush.msra.mxu0 %v362
  %3208 = vmatpush.msra.mxu0 %v358
  %3209 = vmatpush.msra.mxu0 %v354
  %3210 = vmatpush.msra.mxu0 %v350
  %3211 = vmatmul.f32.gmra.mxu0 %v2962
  %v3212 = vpop.f32.mrf.mxu0
  %v3213 = vadd.f32 0.0, %v3212
  %3214 = vdwg.mxu0
  %3215 = vmatpush.msra.mxu0 %v411
  %3216 = vmatpush.msra.mxu0 %v407
  %3217 = vmatpush.msra.mxu0 %v403
  %3218 = vmatpush.msra.mxu0 %v399
  %3219 = vmatpush.msra.mxu0 %v395
  %3220 = vmatpush.msra.mxu0 %v391
  %3221 = vmatpush.msra.mxu0 %v387
  %3222 = vmatpush.msra.mxu0 %v383
  %3223 = vmatpush.msra.mxu0 %v379
  %3224 = vmatpush.msra.mxu0 %v375
  %3225 = vmatpush.msra.mxu0 %v371
  %3226 = vmatpush.msra.mxu0 %v367
  %3227 = vmatpush.msra.mxu0 %v363
  %3228 = vmatpush.msra.mxu0 %v359
  %3229 = vmatpush.msra.mxu0 %v355
  %3230 = vmatpush.msra.mxu0 %v351
  %3231 = vmatmul.f32.gmra.mxu0 %v2962
  %v3232 = vpop.f32.mrf.mxu0
  %v3233 = vadd.f32 0.0, %v3232
  %3234 = vdwg.mxu0
  %3235 = vmatpush.msra.mxu0 %v412
  %3236 = vmatpush.msra.mxu0 %v408
  %3237 = vmatpush.msra.mxu0 %v404
  %3238 = vmatpush.msra.mxu0 %v400
  %3239 = vmatpush.msra.mxu0 %v396
  %3240 = vmatpush.msra.mxu0 %v392
  %3241 = vmatpush.msra.mxu0 %v388
  %3242 = vmatpush.msra.mxu0 %v384
  %3243 = vmatpush.msra.mxu0 %v380
  %3244 = vmatpush.msra.mxu0 %v376
  %3245 = vmatpush.msra.mxu0 %v372
  %3246 = vmatpush.msra.mxu0 %v368
  %3247 = vmatpush.msra.mxu0 %v364
  %3248 = vmatpush.msra.mxu0 %v360
  %3249 = vmatpush.msra.mxu0 %v356
  %3250 = vmatpush.msra.mxu0 %v352
  %3251 = vmatmul.f32.gmra.mxu0 %v2962
  %v3252 = vpop.f32.mrf.mxu0
  %v3253 = vadd.f32 0.0, %v3252
  %3254 = vdwg.mxu0
  %3255 = vmatpush.msra.mxu0 %v413
  %3256 = vmatpush.msra.mxu0 %v409
  %3257 = vmatpush.msra.mxu0 %v405
  %3258 = vmatpush.msra.mxu0 %v401
  %3259 = vmatpush.msra.mxu0 %v397
  %3260 = vmatpush.msra.mxu0 %v393
  %3261 = vmatpush.msra.mxu0 %v389
  %3262 = vmatpush.msra.mxu0 %v385
  %3263 = vmatpush.msra.mxu0 %v381
  %3264 = vmatpush.msra.mxu0 %v377
  %3265 = vmatpush.msra.mxu0 %v373
  %3266 = vmatpush.msra.mxu0 %v369
  %3267 = vmatpush.msra.mxu0 %v365
  %3268 = vmatpush.msra.mxu0 %v361
  %3269 = vmatpush.msra.mxu0 %v357
  %3270 = vmatpush.msra.mxu0 %v353
  %3271 = vmatmul.f32.gmra.mxu0 %v2962
  %v3272 = vpop.f32.mrf.mxu0
  %v3273 = vadd.f32 0.0, %v3272
  %3274 = vdwg.mxu0
  %v3275 = vadd.f32 %v3191, %v3213
  %v3276 = vadd.f32 %v3192, %v3233
  %v3277 = vadd.f32 %v3193, %v3253
  %v3278 = vadd.f32 %v3194, %v3273
  %v3279 = vxor.u32 %v3275, 2147483648
  %v3280 = vmul.f32 %v3279, 1.442695
  %v3281 = vpow.pop %v3280
  %v3282 = vadd.f32 %v3281, 1.0
  %v3283 = vrcp.pop %v3282
  %v3284 = vmul.f32 %v3282, %v3283
  %v3285 = vsub.f32 1.0, %v3284
  %v3286 = vmul.f32 %v3283, %v3285
  %v3287 = vadd.f32 %v3283, %v3286
  %vm3288 = vweird.f32 %v3282
  %vm3289 = vweird.f32 %v3283
  %vm3290 = vmor %vm3288, %vm3289
  %v3291 = vsel %vm3290, %v3283, %v3287
  %v3292 = vand.u32 2147483647, %v3282
  %vm3293 = vcmp.eq.f32.partialorder %v3292, 8.507059e+37
  %v3294 = vand.u32 %v3282, 2147483648
  %v3295 = vor.u32 1.1754944e-38, %v3294
  %v3296 = vsel %vm3293, %v3295, %v3291
  %v3297 = vmul.f32 1.0, %v3296
  %v3298 = vxor.u32 %v3276, 2147483648
  %v3299 = vmul.f32 %v3298, 1.442695
  %v3300 = vpow.pop %v3299
  %v3301 = vadd.f32 %v3300, 1.0
  %v3302 = vrcp.pop %v3301
  %v3303 = vmul.f32 %v3301, %v3302
  %v3304 = vsub.f32 1.0, %v3303
  %v3305 = vmul.f32 %v3302, %v3304
  %v3306 = vadd.f32 %v3302, %v3305
  %vm3307 = vweird.f32 %v3301
  %vm3308 = vweird.f32 %v3302
  %vm3309 = vmor %vm3307, %vm3308
  %v3310 = vsel %vm3309, %v3302, %v3306
  %v3311 = vand.u32 2147483647, %v3301
  %vm3312 = vcmp.eq.f32.partialorder %v3311, 8.507059e+37
  %v3313 = vand.u32 %v3301, 2147483648
  %v3314 = vor.u32 1.1754944e-38, %v3313
  %v3315 = vsel %vm3312, %v3314, %v3310
  %v3316 = vmul.f32 1.0, %v3315
  %v3317 = vtanh.pop %v3277
  %v3318 = vxor.u32 %v3278, 2147483648
  %v3319 = vmul.f32 %v3318, 1.442695
  %v3320 = vpow.pop %v3319
  %v3321 = vadd.f32 %v3320, 1.0
  %v3322 = vrcp.pop %v3321
  %v3323 = vmul.f32 %v3321, %v3322
  %v3324 = vsub.f32 1.0, %v3323
  %v3325 = vmul.f32 %v3322, %v3324
  %v3326 = vadd.f32 %v3322, %v3325
  %vm3327 = vweird.f32 %v3321
  %vm3328 = vweird.f32 %v3322
  %vm3329 = vmor %vm3327, %vm3328
  %v3330 = vsel %vm3329, %v3322, %v3326
  %v3331 = vand.u32 2147483647, %v3321
  %vm3332 = vcmp.eq.f32.partialorder %v3331, 8.507059e+37
  %v3333 = vand.u32 %v3321, 2147483648
  %v3334 = vor.u32 1.1754944e-38, %v3333
  %v3335 = vsel %vm3332, %v3334, %v3330
  %v3336 = vmul.f32 1.0, %v3335
  %v3337 = vmul.f32 %v3316, %v2960
  %v3338 = vmul.f32 %v3297, %v3317
  %v3339 = vadd.f32 %v3337, %v3338
  %v3340 = vtanh.pop %v3339
  %v3341 = vmul.f32 %v3336, %v3340
  %3342 = vmatpush.msra.mxu0 %v685
  %3343 = vmatpush.msra.mxu0 %v681
  %3344 = vmatpush.msra.mxu0 %v677
  %3345 = vmatpush.msra.mxu0 %v673
  %3346 = vmatpush.msra.mxu0 %v669
  %3347 = vmatpush.msra.mxu0 %v665
  %3348 = vmatpush.msra.mxu0 %v661
  %3349 = vmatpush.msra.mxu0 %v657
  %3350 = vmatpush.msra.mxu0 %v653
  %3351 = vmatpush.msra.mxu0 %v649
  %3352 = vmatpush.msra.mxu0 %v645
  %3353 = vmatpush.msra.mxu0 %v641
  %3354 = vmatpush.msra.mxu0 %v637
  %3355 = vmatpush.msra.mxu0 %v633
  %3356 = vmatpush.msra.mxu0 %v629
  %3357 = vmatpush.msra.mxu0 %v625
  %3358 = vmatmul.f32.gmra.mxu0 %v3189
  %v3359 = vpop.f32.mrf.mxu0
  %v3360 = vadd.f32 0.0, %v3359
  %3361 = vdwg.mxu0
  %3362 = vmatpush.msra.mxu0 %v686
  %3363 = vmatpush.msra.mxu0 %v682
  %3364 = vmatpush.msra.mxu0 %v678
  %3365 = vmatpush.msra.mxu0 %v674
  %3366 = vmatpush.msra.mxu0 %v670
  %3367 = vmatpush.msra.mxu0 %v666
  %3368 = vmatpush.msra.mxu0 %v662
  %3369 = vmatpush.msra.mxu0 %v658
  %3370 = vmatpush.msra.mxu0 %v654
  %3371 = vmatpush.msra.mxu0 %v650
  %3372 = vmatpush.msra.mxu0 %v646
  %3373 = vmatpush.msra.mxu0 %v642
  %3374 = vmatpush.msra.mxu0 %v638
  %3375 = vmatpush.msra.mxu0 %v634
  %3376 = vmatpush.msra.mxu0 %v630
  %3377 = vmatpush.msra.mxu0 %v626
  %3378 = vmatmul.f32.gmra.mxu0 %v3189
  %v3379 = vpop.f32.mrf.mxu0
  %v3380 = vadd.f32 0.0, %v3379
  %3381 = vdwg.mxu0
  %3382 = vmatpush.msra.mxu0 %v687
  %3383 = vmatpush.msra.mxu0 %v683
  %3384 = vmatpush.msra.mxu0 %v679
  %3385 = vmatpush.msra.mxu0 %v675
  %3386 = vmatpush.msra.mxu0 %v671
  %3387 = vmatpush.msra.mxu0 %v667
  %3388 = vmatpush.msra.mxu0 %v663
  %3389 = vmatpush.msra.mxu0 %v659
  %3390 = vmatpush.msra.mxu0 %v655
  %3391 = vmatpush.msra.mxu0 %v651
  %3392 = vmatpush.msra.mxu0 %v647
  %3393 = vmatpush.msra.mxu0 %v643
  %3394 = vmatpush.msra.mxu0 %v639
  %3395 = vmatpush.msra.mxu0 %v635
  %3396 = vmatpush.msra.mxu0 %v631
  %3397 = vmatpush.msra.mxu0 %v627
  %3398 = vmatmul.f32.gmra.mxu0 %v3189
  %v3399 = vpop.f32.mrf.mxu0
  %v3400 = vadd.f32 0.0, %v3399
  %3401 = vdwg.mxu0
  %3402 = vmatpush.msra.mxu0 %v688
  %3403 = vmatpush.msra.mxu0 %v684
  %3404 = vmatpush.msra.mxu0 %v680
  %3405 = vmatpush.msra.mxu0 %v676
  %3406 = vmatpush.msra.mxu0 %v672
  %3407 = vmatpush.msra.mxu0 %v668
  %3408 = vmatpush.msra.mxu0 %v664
  %3409 = vmatpush.msra.mxu0 %v660
  %3410 = vmatpush.msra.mxu0 %v656
  %3411 = vmatpush.msra.mxu0 %v652
  %3412 = vmatpush.msra.mxu0 %v648
  %3413 = vmatpush.msra.mxu0 %v644
  %3414 = vmatpush.msra.mxu0 %v640
  %3415 = vmatpush.msra.mxu0 %v636
  %3416 = vmatpush.msra.mxu0 %v632
  %3417 = vmatpush.msra.mxu0 %v628
  %3418 = vmatmul.f32.gmra.mxu0 %v3189
  %v3419 = vpop.f32.mrf.mxu0
  %v3420 = vadd.f32 0.0, %v3419
  %3421 = vdwg.mxu0
  %3422 = vmatpush.msra.mxu0 %v621
  %3423 = vmatpush.msra.mxu0 %v617
  %3424 = vmatpush.msra.mxu0 %v613
  %3425 = vmatpush.msra.mxu0 %v609
  %3426 = vmatpush.msra.mxu0 %v605
  %3427 = vmatpush.msra.mxu0 %v601
  %3428 = vmatpush.msra.mxu0 %v597
  %3429 = vmatpush.msra.mxu0 %v593
  %3430 = vmatpush.msra.mxu0 %v589
  %3431 = vmatpush.msra.mxu0 %v585
  %3432 = vmatpush.msra.mxu0 %v581
  %3433 = vmatpush.msra.mxu0 %v577
  %3434 = vmatpush.msra.mxu0 %v573
  %3435 = vmatpush.msra.mxu0 %v569
  %3436 = vmatpush.msra.mxu0 %v565
  %3437 = vmatpush.msra.mxu0 %v561
  %3438 = vmatmul.f32.gmra.mxu0 %v3341
  %v3439 = vpop.f32.mrf.mxu0
  %v3440 = vadd.f32 %v3360, %v3439
  %3441 = vdwg.mxu0
  %3442 = vmatpush.msra.mxu0 %v622
  %3443 = vmatpush.msra.mxu0 %v618
  %3444 = vmatpush.msra.mxu0 %v614
  %3445 = vmatpush.msra.mxu0 %v610
  %3446 = vmatpush.msra.mxu0 %v606
  %3447 = vmatpush.msra.mxu0 %v602
  %3448 = vmatpush.msra.mxu0 %v598
  %3449 = vmatpush.msra.mxu0 %v594
  %3450 = vmatpush.msra.mxu0 %v590
  %3451 = vmatpush.msra.mxu0 %v586
  %3452 = vmatpush.msra.mxu0 %v582
  %3453 = vmatpush.msra.mxu0 %v578
  %3454 = vmatpush.msra.mxu0 %v574
  %3455 = vmatpush.msra.mxu0 %v570
  %3456 = vmatpush.msra.mxu0 %v566
  %3457 = vmatpush.msra.mxu0 %v562
  %3458 = vmatmul.f32.gmra.mxu0 %v3341
  %v3459 = vpop.f32.mrf.mxu0
  %v3460 = vadd.f32 %v3380, %v3459
  %3461 = vdwg.mxu0
  %3462 = vmatpush.msra.mxu0 %v623
  %3463 = vmatpush.msra.mxu0 %v619
  %3464 = vmatpush.msra.mxu0 %v615
  %3465 = vmatpush.msra.mxu0 %v611
  %3466 = vmatpush.msra.mxu0 %v607
  %3467 = vmatpush.msra.mxu0 %v603
  %3468 = vmatpush.msra.mxu0 %v599
  %3469 = vmatpush.msra.mxu0 %v595
  %3470 = vmatpush.msra.mxu0 %v591
  %3471 = vmatpush.msra.mxu0 %v587
  %3472 = vmatpush.msra.mxu0 %v583
  %3473 = vmatpush.msra.mxu0 %v579
  %3474 = vmatpush.msra.mxu0 %v575
  %3475 = vmatpush.msra.mxu0 %v571
  %3476 = vmatpush.msra.mxu0 %v567
  %3477 = vmatpush.msra.mxu0 %v563
  %3478 = vmatmul.f32.gmra.mxu0 %v3341
  %v3479 = vpop.f32.mrf.mxu0
  %v3480 = vadd.f32 %v3400, %v3479
  %3481 = vdwg.mxu0
  %3482 = vmatpush.msra.mxu0 %v624
  %3483 = vmatpush.msra.mxu0 %v620
  %3484 = vmatpush.msra.mxu0 %v616
  %3485 = vmatpush.msra.mxu0 %v612
  %3486 = vmatpush.msra.mxu0 %v608
  %3487 = vmatpush.msra.mxu0 %v604
  %3488 = vmatpush.msra.mxu0 %v600
  %3489 = vmatpush.msra.mxu0 %v596
  %3490 = vmatpush.msra.mxu0 %v592
  %3491 = vmatpush.msra.mxu0 %v588
  %3492 = vmatpush.msra.mxu0 %v584
  %3493 = vmatpush.msra.mxu0 %v580
  %3494 = vmatpush.msra.mxu0 %v576
  %3495 = vmatpush.msra.mxu0 %v572
  %3496 = vmatpush.msra.mxu0 %v568
  %3497 = vmatpush.msra.mxu0 %v564
  %3498 = vmatmul.f32.gmra.mxu0 %v3341
  %v3499 = vpop.f32.mrf.mxu0
  %v3500 = vadd.f32 %v3420, %v3499
  %3501 = vdwg.mxu0
  %v3502 = vadd.f32 %v3440, %v334
  %v3503 = vadd.f32 %v3460, %v335
  %v3504 = vadd.f32 %v3480, %v336
  %v3505 = vadd.f32 %v3500, %v337
  %v3506 = vxor.u32 %v3502, 2147483648
  %v3507 = vmul.f32 %v3506, 1.442695
  %v3508 = vpow.pop %v3507
  %v3509 = vadd.f32 %v3508, 1.0
  %v3510 = vrcp.pop %v3509
  %v3511 = vmul.f32 %v3509, %v3510
  %v3512 = vsub.f32 1.0, %v3511
  %v3513 = vmul.f32 %v3510, %v3512
  %v3514 = vadd.f32 %v3510, %v3513
  %vm3515 = vweird.f32 %v3509
  %vm3516 = vweird.f32 %v3510
  %vm3517 = vmor %vm3515, %vm3516
  %v3518 = vsel %vm3517, %v3510, %v3514
  %v3519 = vand.u32 2147483647, %v3509
  %vm3520 = vcmp.eq.f32.partialorder %v3519, 8.507059e+37
  %v3521 = vand.u32 %v3509, 2147483648
  %v3522 = vor.u32 1.1754944e-38, %v3521
  %v3523 = vsel %vm3520, %v3522, %v3518
  %v3524 = vmul.f32 1.0, %v3523
  %v3525 = vxor.u32 %v3503, 2147483648
  %v3526 = vmul.f32 %v3525, 1.442695
  %v3527 = vpow.pop %v3526
  %v3528 = vadd.f32 %v3527, 1.0
  %v3529 = vrcp.pop %v3528
  %v3530 = vmul.f32 %v3528, %v3529
  %v3531 = vsub.f32 1.0, %v3530
  %v3532 = vmul.f32 %v3529, %v3531
  %v3533 = vadd.f32 %v3529, %v3532
  %vm3534 = vweird.f32 %v3528
  %vm3535 = vweird.f32 %v3529
  %vm3536 = vmor %vm3534, %vm3535
  %v3537 = vsel %vm3536, %v3529, %v3533
  %v3538 = vand.u32 2147483647, %v3528
  %vm3539 = vcmp.eq.f32.partialorder %v3538, 8.507059e+37
  %v3540 = vand.u32 %v3528, 2147483648
  %v3541 = vor.u32 1.1754944e-38, %v3540
  %v3542 = vsel %vm3539, %v3541, %v3537
  %v3543 = vmul.f32 1.0, %v3542
  %v3544 = vtanh.pop %v3504
  %v3545 = vxor.u32 %v3505, 2147483648
  %v3546 = vmul.f32 %v3545, 1.442695
  %v3547 = vpow.pop %v3546
  %v3548 = vadd.f32 %v3547, 1.0
  %v3549 = vrcp.pop %v3548
  %v3550 = vmul.f32 %v3548, %v3549
  %v3551 = vsub.f32 1.0, %v3550
  %v3552 = vmul.f32 %v3549, %v3551
  %v3553 = vadd.f32 %v3549, %v3552
  %vm3554 = vweird.f32 %v3548
  %vm3555 = vweird.f32 %v3549
  %vm3556 = vmor %vm3554, %vm3555
  %v3557 = vsel %vm3556, %v3549, %v3553
  %v3558 = vand.u32 2147483647, %v3548
  %vm3559 = vcmp.eq.f32.partialorder %v3558, 8.507059e+37
  %v3560 = vand.u32 %v3548, 2147483648
  %v3561 = vor.u32 1.1754944e-38, %v3560
  %v3562 = vsel %vm3559, %v3561, %v3557
  %v3563 = vmul.f32 1.0, %v3562
  %v3564 = vmul.f32 %v3543, %v3187
  %v3565 = vmul.f32 %v3524, %v3544
  %v3566 = vadd.f32 %v3564, %v3565
  %v3567 = vtanh.pop %v3566
  %v3568 = vmul.f32 %v3563, %v3567
  %3569 = vst [vmem:[%s11] sm:$0xff] %v3341
  %3570 = vst [vmem:[%s12] sm:$0xff] %v3339
  %3571 = vst [vmem:[%s13] sm:$0xff] %v3568
  %3572 = vst [vmem:[%s14] sm:$0xff] %v3566
  // Predicated region
  $region50: #{rnn_model_forward.2} parent=0 // pred_check
    _
  $region51: #{rnn_model_forward.2} parent=0 // pred_check_branch
    %3574 = sbr.rel (0) target = $region53
  $region52: #{rnn_model_forward.2} parent=0 // pred_region
    _
  $region53: #{rnn_model_forward.2} parent=0 // pred_fallthru
    _
  // Predicated region
  $region54: #{rnn_model_forward.2} parent=0 // pred_check
    _
  $region55: #{rnn_model_forward.2} parent=0 // pred_check_branch
    %3576 = sbr.rel (0) target = $region57
  $region56: #{rnn_model_forward.2} parent=0 // pred_region
    _
  $region57: #{rnn_model_forward.2} parent=0 // pred_fallthru
    _
  // Predicated region
  $region58: #{rnn_model_forward.2} parent=0 // pred_check
    _
  $region59: #{rnn_model_forward.2} parent=0 // pred_check_branch
    %3578 = sbr.rel (0) target = $region61
  $region60: #{rnn_model_forward.2} parent=0 // pred_region
    _
  $region61: #{rnn_model_forward.2} parent=0 // pred_fallthru
    _
  // Predicated region
  $region62: #{rnn_model_forward.2} parent=0 // pred_check
    _
  $region63: #{rnn_model_forward.2} parent=0 // pred_check_branch
    %3580 = sbr.rel (0) target = $region65
  $region64: #{rnn_model_forward.2} parent=0 // pred_region
    _
  $region65: #{rnn_model_forward.2} parent=0 // pred_fallthru
    _
  // Predicated region
  $region66: #{rnn_model_forward.2} parent=0 // pred_check
    _
  $region67: #{rnn_model_forward.2} parent=0 // pred_check_branch
    %3582 = sbr.rel (0) target = $region69
  $region68: #{rnn_model_forward.2} parent=0 // pred_region
    _
  $region69: #{rnn_model_forward.2} parent=0 // pred_fallthru
    _
  // Predicated region
  $region70: #{rnn_model_forward.2} parent=0 // pred_check
    _
  $region71: #{rnn_model_forward.2} parent=0 // pred_check_branch
    %3584 = sbr.rel (0) target = $region73
  $region72: #{rnn_model_forward.2} parent=0 // pred_region
    _
  $region73: #{rnn_model_forward.2} parent=0 // pred_fallthru
    _
  // Predicated region
  $region74: #{rnn_model_forward.2} parent=0 // pred_check
    _
  $region75: #{rnn_model_forward.2} parent=0 // pred_check_branch
    %3586 = sbr.rel (0) target = $region77
  $region76: #{rnn_model_forward.2} parent=0 // pred_region
    _
  $region77: #{rnn_model_forward.2} parent=0 // pred_fallthru
    _
  // Predicated region
  $region78: #{rnn_model_forward.2} parent=0 // pred_check
    _
  $region79: #{rnn_model_forward.2} parent=0 // pred_check_branch
    %3588 = sbr.rel (0) target = $region81
  $region80: #{rnn_model_forward.2} parent=0 // pred_region
    _
  $region81: #{rnn_model_forward.2} parent=0 // pred_fallthru
    _

</llo_original>
